<compile_context>
chip_gen: v7x
topology: tpu7x:2x2x1
jax: 0.10.0
libtpu: 0.0.40
codegen_flags: <defaults>
</compile_context>

<pallas_src>
import functools

import jax
import jax.numpy as jnp
from jax.experimental import pallas as pl
from jax.experimental.pallas import tpu as pltpu


def _round_up(x, m):
    return (x + m - 1) // m * m


# --------------------------------------------------------------------------- #
# Fused conv + bias + 2x2 max-pool + ReLU (per-batch grid)
# --------------------------------------------------------------------------- #
def _conv_pool_relu_kernel(p_ref, w_ref, b_ref, d_ref, o_ref, *, pop):
    """p_ref: (1, K, Pp) im2col patches (lane-padded); w_ref: (Cout, K);
    b_ref: (Cout, 1); d_ref: (Pp, 4*Pop) precomputed one-hot that gathers the
    4 corners of every 2x2 pooling window (resident in VMEM across the grid);
    o_ref: (1, Cout, Pop)."""
    acc = jnp.dot(w_ref[...], p_ref[0], preferred_element_type=jnp.float32)
    acc = acc + b_ref[...]                                      # (Cout, Pp)
    # Single MXU gather matmul pulls all 4 corners; max over the 4 lane-aligned
    # 128-multiple chunks implements MaxPool2d(2, stride=2).
    g = jnp.dot(acc, d_ref[...], preferred_element_type=jnp.float32)
    m = jnp.maximum(jnp.maximum(g[:, 0 * pop:1 * pop], g[:, 1 * pop:2 * pop]),
                    jnp.maximum(g[:, 2 * pop:3 * pop], g[:, 3 * pop:4 * pop]))
    o_ref[0] = jnp.maximum(m, 0.0).astype(o_ref.dtype)


def _im2col(x, kh, kw):
    """XLA glue: (N, Cin, H, W) -> (N, Cin*KH*KW, Hc*Wc), (ci, ky, kx)-major."""
    n, cin, h, w = x.shape
    hc, wc = h - kh + 1, w - kw + 1
    cols = []
    for ky in range(kh):
        for kx in range(kw):
            cols.append(x[:, :, ky:ky + hc, kx:kx + wc])        # (N, Cin, Hc, Wc)
    p = jnp.stack(cols, axis=2)                                 # (N, Cin, KK, Hc, Wc)
    return p.reshape(n, cin * kh * kw, hc * wc), hc, wc


def _make_pool_gather(hc, wc, ho, wo, pp, pop):
    """(Pp, 4*Pop) one-hot: column k*Pop + q selects corner k of window q
    (corners 0,1,wc,wc+1 relative to top-left 2*(q//wo)*wc + 2*(q%wo)).
    Columns q >= ho*wo (lane padding) are all-zero."""
    q = jnp.arange(pop)
    base = 2 * (q // wo) * wc + 2 * (q % wo)
    valid = q < ho * wo
    p_iota = jnp.arange(pp)[:, None]
    mats = []
    for off in (0, 1, wc, wc + 1):
        tgt = jnp.where(valid, base + off, -1)                  # -1 never matches
        mats.append((p_iota == tgt[None, :]).astype(jnp.float32))
    return jnp.concatenate(mats, axis=1)                        # (Pp, 4*Pop)


def conv_pool_relu(x, w, b):
    """valid conv (NCHW) + MaxPool2d(2,2) + ReLU, fused in one kernel."""
    n, cin, _, _ = x.shape
    cout, _, kh, kw = w.shape
    patches, hc, wc = _im2col(x, kh, kw)
    ho, wo = hc // 2, wc // 2
    K, P, Po = cin * kh * kw, hc * wc, ho * wo
    Pp, Pop = _round_up(P, 128), _round_up(Po, 128)
    patches = jnp.pad(patches, ((0, 0), (0, 0), (0, Pp - P)))   # lane-dense
    gather = _make_pool_gather(hc, wc, ho, wo, Pp, Pop)

    out = pl.pallas_call(
        functools.partial(_conv_pool_relu_kernel, pop=Pop),
        out_shape=jax.ShapeDtypeStruct((n, cout, Pop), jnp.float32),
        grid=(n,),
        in_specs=[
            pl.BlockSpec((1, K, Pp), lambda i: (i, 0, 0)),
            pl.BlockSpec((cout, K), lambda i: (0, 0)),          # resident
            pl.BlockSpec((cout, 1), lambda i: (0, 0)),          # resident
            pl.BlockSpec((Pp, 4 * Pop), lambda i: (0, 0)),      # resident
        ],
        out_specs=pl.BlockSpec((1, cout, Pop), lambda i: (i, 0, 0)),
        compiler_params=pltpu.CompilerParams(
            dimension_semantics=("parallel",),
            vmem_limit_bytes=32 * 1024 * 1024,
        ),
    )(patches, w.reshape(cout, K), b.reshape(cout, 1), gather)
    return out[:, :, :Po].reshape(n, cout, ho, wo)


# --------------------------------------------------------------------------- #
# Fused fc_loc + affine_grid + grid_sample (bilinear, zeros, align_corners=F)
# --------------------------------------------------------------------------- #
def _stn_sample_kernel(xs_ref, w1_ref, b1_ref, w2_ref, b2_ref,
                       bx_ref, by_ref, x_ref, o_ref, *, H, W, C, cx, cy):
    """xs_ref: (1, 1, F) flattened localization features; w1/b1/w2/b2: fc_loc
    params; bx/by: (6, Pp) precomputed affine bases (unnormalization folded);
    x_ref: (1, C, H, W); o_ref: (1, C, Pp)."""
    # fc_loc: Linear -> ReLU -> Linear (tiny MXU matmuls, per batch row)
    h = jnp.dot(xs_ref[0], w1_ref[...], preferred_element_type=jnp.float32)
    h = jnp.maximum(h + b1_ref[...], 0.0)                       # (1, 32)
    t = jnp.dot(h, w2_ref[...], preferred_element_type=jnp.float32) + b2_ref[...]

    # sample coords: ix = (W/2)*(t00*xb + t01*yb + t02) + (W-1)/2, iy likewise
    ix = jnp.dot(t, bx_ref[...], preferred_element_type=jnp.float32) + cx  # (1, Pp)
    iy = jnp.dot(t, by_ref[...], preferred_element_type=jnp.float32) + cy  # (1, Pp)

    pp = ix.shape[1]
    wi = jax.lax.broadcasted_iota(jnp.int32, (W, pp), 0).astype(jnp.float32)
    hi = jax.lax.broadcasted_iota(jnp.int32, (H, pp), 0).astype(jnp.float32)
    # Separable bilinear hat weights; out-of-range samples get weight 0, which
    # reproduces zeros padding exactly.
    wxm = jnp.maximum(1.0 - jnp.abs(wi - ix), 0.0)              # (W, Pp)
    wym = jnp.maximum(1.0 - jnp.abs(hi - iy), 0.0)              # (H, Pp)

    for c in range(C):                                          # C small & static
        zc = jnp.dot(x_ref[0, c], wxm, preferred_element_type=jnp.float32)  # (H, Pp)
        o_ref[0, c, :] = jnp.sum(zc * wym, axis=0).astype(o_ref.dtype)


def stn_sample(x, xs, w1, b1, w2, b2):
    """x: (N, C, H, W), xs: (N, F) localization features -> (N, C, H, W)."""
    n, c, h, w = x.shape
    f = xs.shape[1]
    P = h * w
    Pp = _round_up(P, 128)

    # Precompute affine_grid bases (align_corners=False) with the grid_sample
    # unnormalization folded in; lane-padded to Pp.
    p = jnp.arange(Pp)
    col = (p % w).astype(jnp.float32)
    row = (p // w).astype(jnp.float32)
    xb = (2.0 * col + 1.0) / w - 1.0
    yb = (2.0 * row + 1.0) / h - 1.0
    ones = jnp.ones_like(xb)
    zeros = jnp.zeros_like(xb)
    bx = jnp.stack([xb, yb, ones, zeros, zeros, zeros], 0) * (w / 2.0)   # (6, Pp)
    by = jnp.stack([zeros, zeros, zeros, xb, yb, ones], 0) * (h / 2.0)   # (6, Pp)

    kern = functools.partial(_stn_sample_kernel, H=h, W=w, C=c,
                             cx=(w - 1) / 2.0, cy=(h - 1) / 2.0)
    out = pl.pallas_call(
        kern,
        out_shape=jax.ShapeDtypeStruct((n, c, Pp), x.dtype),
        grid=(n,),
        in_specs=[
            pl.BlockSpec((1, 1, f), lambda i: (i, 0, 0)),
            pl.BlockSpec(w1.shape, lambda i: (0, 0)),            # resident
            pl.BlockSpec((1, w1.shape[1]), lambda i: (0, 0)),    # resident
            pl.BlockSpec(w2.shape, lambda i: (0, 0)),            # resident
            pl.BlockSpec((1, w2.shape[1]), lambda i: (0, 0)),    # resident
            pl.BlockSpec((6, Pp), lambda i: (0, 0)),             # resident
            pl.BlockSpec((6, Pp), lambda i: (0, 0)),             # resident
            pl.BlockSpec((1, c, h, w), lambda i: (i, 0, 0, 0)),
        ],
        out_specs=pl.BlockSpec((1, c, Pp), lambda i: (i, 0, 0)),
        compiler_params=pltpu.CompilerParams(
            dimension_semantics=("parallel",),
            vmem_limit_bytes=32 * 1024 * 1024,
        ),
    )(xs.reshape(n, 1, f), w1, b1.reshape(1, -1), w2, b2.reshape(1, -1),
      bx, by, x)
    return out[:, :, :P].reshape(n, c, h, w)


# --------------------------------------------------------------------------- #
# STN forward (glue) — 3 pallas_call dispatches total
# --------------------------------------------------------------------------- #
def init_params(key, cin, fc_in):
    ks = jax.random.split(key, 8)

    def u(k, shape, fan_in):
        bound = 1.0 / float(fan_in) ** 0.5
        return jax.random.uniform(k, shape, jnp.float32, -bound, bound)

    return dict(
        w1=u(ks[0], (8, cin, 7, 7), cin * 49),
        b1=u(ks[1], (8,), cin * 49),
        w2=u(ks[2], (10, 8, 5, 5), 8 * 25),
        b2=u(ks[3], (10,), 8 * 25),
        wf1=u(ks[4], (fc_in, 32), fc_in),
        bf1=u(ks[5], (32,), fc_in),
        wf2=u(ks[6], (32, 6), 32),
        bf2=u(ks[7], (6,), 32),
    )


def stn_forward(params, x):
    n = x.shape[0]
    # localization: [Conv(7)+Pool+ReLU] -> [Conv(5)+Pool+ReLU]  (2 fused kernels)
    xs = conv_pool_relu(x, params["w1"], params["b1"])
    xs = conv_pool_relu(xs, params["w2"], params["b2"])
    xs = xs.reshape(n, -1)                                      # (N, fc_in)
    # fc_loc + affine_grid + grid_sample in ONE kernel
    return stn_sample(x, xs, params["wf1"], params["bf1"],
                      params["wf2"], params["bf2"])


if __name__ == "__main__":
    key = jax.random.PRNGKey(0)
    kx, kp = jax.random.split(key)

    # spatial must be large enough to survive the localization net
    N, C, H, W = 2, 2, 28, 28
    x = jax.random.normal(kx, (N, C, H, W), jnp.float32)

    # localization output spatial dims: conv7 -> pool2 -> conv5 -> pool2
    h2 = ((H - 7 + 1) // 2 - 5 + 1) // 2
    w2 = ((W - 7 + 1) // 2 - 5 + 1) // 2
    fc_in = 10 * h2 * w2

    params = init_params(kp, C, fc_in)
    out = jax.jit(stn_forward)(params, x)
    out = jax.block_until_ready(out)
    assert out.shape == (N, C, H, W), out.shape
    assert bool(jnp.all(jnp.isfinite(out)))
    print("KERNEL_OK")
</pallas_src>

<mosaic_0001>
module attributes {stable_mosaic.version = 11 : i64} {
  func.func @_conv_pool_relu_kernel(%arg0: i32, %arg1: memref<1x98x512xf32, #tpu.memory_space<vmem>>, %arg2: memref<8x98xf32, #tpu.memory_space<vmem>>, %arg3: memref<8x1xf32, #tpu.memory_space<vmem>>, %arg4: memref<512x512xf32, #tpu.memory_space<vmem>>, %arg5: memref<1x8x128xf32, #tpu.memory_space<vmem>>) attributes {dimension_semantics = [#tpu.dimension_semantics<parallel>], iteration_bounds = array<i64: 2>, scalar_prefetch = 0 : i64, scratch_operands = 0 : i64, tpu.core_type = #tpu.core_type<tc>, window_params = [{transform_indices = @transform_0, window_bounds = array<i64: 1, 98, 512>}, {pipeline_mode = #tpu.pipeline_mode<synchronous>, transform_indices = @transform_1, window_bounds = array<i64: 8, 98>}, {pipeline_mode = #tpu.pipeline_mode<synchronous>, transform_indices = @transform_2, window_bounds = array<i64: 8, 1>}, {pipeline_mode = #tpu.pipeline_mode<synchronous>, transform_indices = @transform_3, window_bounds = array<i64: 512, 512>}, {transform_indices = @transform_4, window_bounds = array<i64: 1, 8, 128>}]} {
    %c0 = arith.constant 0 : index
    %c0_0 = arith.constant 0 : index
    %0 = vector.load %arg2[%c0, %c0_0] : memref<8x98xf32, #tpu.memory_space<vmem>>, vector<8x98xf32>
    %c0_1 = arith.constant 0 : index
    %c0_2 = arith.constant 0 : index
    %c0_3 = arith.constant 0 : index
    %1 = vector.load %arg1[%c0_1, %c0_2, %c0_3] : memref<1x98x512xf32, #tpu.memory_space<vmem>>, vector<1x98x512xf32>
    %2 = vector.shape_cast %1 : vector<1x98x512xf32> to vector<98x512xf32>
    %cst = arith.constant dense<0.000000e+00> : vector<8x512xf32>
    %3 = tpu.matmul %0, %2, %cst {dimension_numbers = #tpu.dot_dimension_numbers<[1], [0], [0], [1], [0, 0, 1, 1], [], []>} : vector<8x98xf32>, vector<98x512xf32>, vector<8x512xf32> -> vector<8x512xf32>
    %c0_4 = arith.constant 0 : index
    %c0_5 = arith.constant 0 : index
    %4 = vector.load %arg3[%c0_4, %c0_5] : memref<8x1xf32, #tpu.memory_space<vmem>>, vector<8x1xf32>
    %5 = vector.broadcast %4 : vector<8x1xf32> to vector<8x512xf32>
    %6 = arith.addf %3, %5 : vector<8x512xf32>
    %c0_6 = arith.constant 0 : index
    %c0_7 = arith.constant 0 : index
    %7 = vector.load %arg4[%c0_6, %c0_7] : memref<512x512xf32, #tpu.memory_space<vmem>>, vector<512x512xf32>
    %cst_8 = arith.constant dense<0.000000e+00> : vector<8x512xf32>
    %8 = tpu.matmul %6, %7, %cst_8 {dimension_numbers = #tpu.dot_dimension_numbers<[1], [0], [0], [1], [0, 0, 1, 1], [], []>} : vector<8x512xf32>, vector<512x512xf32>, vector<8x512xf32> -> vector<8x512xf32>
    %9 = vector.extract_strided_slice %8 {offsets = [0, 0], sizes = [8, 128], strides = [1, 1]} : vector<8x512xf32> to vector<8x128xf32>
    %10 = vector.extract_strided_slice %8 {offsets = [0, 128], sizes = [8, 128], strides = [1, 1]} : vector<8x512xf32> to vector<8x128xf32>
    %11 = arith.maximumf %9, %10 : vector<8x128xf32>
    %12 = vector.extract_strided_slice %8 {offsets = [0, 256], sizes = [8, 128], strides = [1, 1]} : vector<8x512xf32> to vector<8x128xf32>
    %13 = vector.extract_strided_slice %8 {offsets = [0, 384], sizes = [8, 128], strides = [1, 1]} : vector<8x512xf32> to vector<8x128xf32>
    %14 = arith.maximumf %12, %13 : vector<8x128xf32>
    %15 = arith.maximumf %11, %14 : vector<8x128xf32>
    %cst_9 = arith.constant 0.000000e+00 : f32
    %16 = vector.broadcast %cst_9 : f32 to vector<8x128xf32>
    %17 = arith.maximumf %15, %16 : vector<8x128xf32>
    %c0_10 = arith.constant 0 : index
    %c0_11 = arith.constant 0 : index
    %c0_12 = arith.constant 0 : index
    %18 = vector.load %arg5[%c0_10, %c0_11, %c0_12] : memref<1x8x128xf32, #tpu.memory_space<vmem>>, vector<1x8x128xf32>
    %19 = vector.shape_cast %18 : vector<1x8x128xf32> to vector<8x128xf32>
    %20 = vector.shape_cast %17 : vector<8x128xf32> to vector<1x8x128xf32>
    tpu.vector_store %arg5[%c0_10, %c0_11, %c0_12], %20 {strides = array<i32>} : memref<1x8x128xf32, #tpu.memory_space<vmem>>, vector<1x8x128xf32>,
    return
  }
  func.func @transform_0(%arg0: i32) -> (i32, i32, i32) {
    %c0_i32 = arith.constant 0 : i32
    %c0_i32_0 = arith.constant 0 : i32
    %c0_i32_1 = arith.constant 0 : i32
    return %arg0, %c0_i32, %c0_i32_0 : i32, i32, i32
  }
  func.func @transform_1(%arg0: i32) -> (i32, i32) {
    %c0_i32 = arith.constant 0 : i32
    %c0_i32_0 = arith.constant 0 : i32
    %c0_i32_1 = arith.constant 0 : i32
    return %c0_i32, %c0_i32_0 : i32, i32
  }
  func.func @transform_2(%arg0: i32) -> (i32, i32) {
    %c0_i32 = arith.constant 0 : i32
    %c0_i32_0 = arith.constant 0 : i32
    %c0_i32_1 = arith.constant 0 : i32
    return %c0_i32, %c0_i32_0 : i32, i32
  }
  func.func @transform_3(%arg0: i32) -> (i32, i32) {
    %c0_i32 = arith.constant 0 : i32
    %c0_i32_0 = arith.constant 0 : i32
    %c0_i32_1 = arith.constant 0 : i32
    return %c0_i32, %c0_i32_0 : i32, i32
  }
  func.func @transform_4(%arg0: i32) -> (i32, i32, i32) {
    %c0_i32 = arith.constant 0 : i32
    %c0_i32_0 = arith.constant 0 : i32
    %c0_i32_1 = arith.constant 0 : i32
    return %arg0, %c0_i32, %c0_i32_0 : i32, i32, i32
  }
}

module attributes {stable_mosaic.version = 11 : i64} {
  func.func @_conv_pool_relu_kernel(%arg0: i32, %arg1: memref<1x200x128xf32, #tpu.memory_space<vmem>>, %arg2: memref<10x200xf32, #tpu.memory_space<vmem>>, %arg3: memref<10x1xf32, #tpu.memory_space<vmem>>, %arg4: memref<128x512xf32, #tpu.memory_space<vmem>>, %arg5: memref<1x10x128xf32, #tpu.memory_space<vmem>>) attributes {dimension_semantics = [#tpu.dimension_semantics<parallel>], iteration_bounds = array<i64: 2>, scalar_prefetch = 0 : i64, scratch_operands = 0 : i64, tpu.core_type = #tpu.core_type<tc>, window_params = [{transform_indices = @transform_0, window_bounds = array<i64: 1, 200, 128>}, {pipeline_mode = #tpu.pipeline_mode<synchronous>, transform_indices = @transform_1, window_bounds = array<i64: 10, 200>}, {pipeline_mode = #tpu.pipeline_mode<synchronous>, transform_indices = @transform_2, window_bounds = array<i64: 10, 1>}, {pipeline_mode = #tpu.pipeline_mode<synchronous>, transform_indices = @transform_3, window_bounds = array<i64: 128, 512>}, {transform_indices = @transform_4, window_bounds = array<i64: 1, 10, 128>}]} {
    %c0 = arith.constant 0 : index
    %c0_0 = arith.constant 0 : index
    %0 = vector.load %arg2[%c0, %c0_0] : memref<10x200xf32, #tpu.memory_space<vmem>>, vector<10x200xf32>
    %c0_1 = arith.constant 0 : index
    %c0_2 = arith.constant 0 : index
    %c0_3 = arith.constant 0 : index
    %1 = vector.load %arg1[%c0_1, %c0_2, %c0_3] : memref<1x200x128xf32, #tpu.memory_space<vmem>>, vector<1x200x128xf32>
    %2 = vector.shape_cast %1 : vector<1x200x128xf32> to vector<200x128xf32>
    %cst = arith.constant dense<0.000000e+00> : vector<10x128xf32>
    %3 = tpu.matmul %0, %2, %cst {dimension_numbers = #tpu.dot_dimension_numbers<[1], [0], [0], [1], [0, 0, 1, 1], [], []>} : vector<10x200xf32>, vector<200x128xf32>, vector<10x128xf32> -> vector<10x128xf32>
    %c0_4 = arith.constant 0 : index
    %c0_5 = arith.constant 0 : index
    %4 = vector.load %arg3[%c0_4, %c0_5] : memref<10x1xf32, #tpu.memory_space<vmem>>, vector<10x1xf32>
    %5 = vector.broadcast %4 : vector<10x1xf32> to vector<10x128xf32>
    %6 = arith.addf %3, %5 : vector<10x128xf32>
    %c0_6 = arith.constant 0 : index
    %c0_7 = arith.constant 0 : index
    %7 = vector.load %arg4[%c0_6, %c0_7] : memref<128x512xf32, #tpu.memory_space<vmem>>, vector<128x512xf32>
    %cst_8 = arith.constant dense<0.000000e+00> : vector<10x512xf32>
    %8 = tpu.matmul %6, %7, %cst_8 {dimension_numbers = #tpu.dot_dimension_numbers<[1], [0], [0], [1], [0, 0, 1, 1], [], []>} : vector<10x128xf32>, vector<128x512xf32>, vector<10x512xf32> -> vector<10x512xf32>
    %9 = vector.extract_strided_slice %8 {offsets = [0, 0], sizes = [10, 128], strides = [1, 1]} : vector<10x512xf32> to vector<10x128xf32>
    %10 = vector.extract_strided_slice %8 {offsets = [0, 128], sizes = [10, 128], strides = [1, 1]} : vector<10x512xf32> to vector<10x128xf32>
    %11 = arith.maximumf %9, %10 : vector<10x128xf32>
    %12 = vector.extract_strided_slice %8 {offsets = [0, 256], sizes = [10, 128], strides = [1, 1]} : vector<10x512xf32> to vector<10x128xf32>
    %13 = vector.extract_strided_slice %8 {offsets = [0, 384], sizes = [10, 128], strides = [1, 1]} : vector<10x512xf32> to vector<10x128xf32>
    %14 = arith.maximumf %12, %13 : vector<10x128xf32>
    %15 = arith.maximumf %11, %14 : vector<10x128xf32>
    %cst_9 = arith.constant 0.000000e+00 : f32
    %16 = vector.broadcast %cst_9 : f32 to vector<10x128xf32>
    %17 = arith.maximumf %15, %16 : vector<10x128xf32>
    %c0_10 = arith.constant 0 : index
    %c0_11 = arith.constant 0 : index
    %c0_12 = arith.constant 0 : index
    %18 = vector.load %arg5[%c0_10, %c0_11, %c0_12] : memref<1x10x128xf32, #tpu.memory_space<vmem>>, vector<1x10x128xf32>
    %19 = vector.shape_cast %18 : vector<1x10x128xf32> to vector<10x128xf32>
    %20 = vector.shape_cast %17 : vector<10x128xf32> to vector<1x10x128xf32>
    tpu.vector_store %arg5[%c0_10, %c0_11, %c0_12], %20 {strides = array<i32>} : memref<1x10x128xf32, #tpu.memory_space<vmem>>, vector<1x10x128xf32>,
    return
  }
  func.func @transform_0(%arg0: i32) -> (i32, i32, i32) {
    %c0_i32 = arith.constant 0 : i32
    %c0_i32_0 = arith.constant 0 : i32
    %c0_i32_1 = arith.constant 0 : i32
    return %arg0, %c0_i32, %c0_i32_0 : i32, i32, i32
  }
  func.func @transform_1(%arg0: i32) -> (i32, i32) {
    %c0_i32 = arith.constant 0 : i32
    %c0_i32_0 = arith.constant 0 : i32
    %c0_i32_1 = arith.constant 0 : i32
    return %c0_i32, %c0_i32_0 : i32, i32
  }
  func.func @transform_2(%arg0: i32) -> (i32, i32) {
    %c0_i32 = arith.constant 0 : i32
    %c0_i32_0 = arith.constant 0 : i32
    %c0_i32_1 = arith.constant 0 : i32
    return %c0_i32, %c0_i32_0 : i32, i32
  }
  func.func @transform_3(%arg0: i32) -> (i32, i32) {
    %c0_i32 = arith.constant 0 : i32
    %c0_i32_0 = arith.constant 0 : i32
    %c0_i32_1 = arith.constant 0 : i32
    return %c0_i32, %c0_i32_0 : i32, i32
  }
  func.func @transform_4(%arg0: i32) -> (i32, i32, i32) {
    %c0_i32 = arith.constant 0 : i32
    %c0_i32_0 = arith.constant 0 : i32
    %c0_i32_1 = arith.constant 0 : i32
    return %arg0, %c0_i32, %c0_i32_0 : i32, i32, i32
  }
}

module attributes {stable_mosaic.version = 11 : i64} {
  func.func @_stn_sample_kernel(%arg0: i32, %arg1: memref<1x1x90xf32, #tpu.memory_space<vmem>>, %arg2: memref<90x32xf32, #tpu.memory_space<vmem>>, %arg3: memref<1x32xf32, #tpu.memory_space<vmem>>, %arg4: memref<32x6xf32, #tpu.memory_space<vmem>>, %arg5: memref<1x6xf32, #tpu.memory_space<vmem>>, %arg6: memref<6x896xf32, #tpu.memory_space<vmem>>, %arg7: memref<6x896xf32, #tpu.memory_space<vmem>>, %arg8: memref<1x2x28x28xf32, #tpu.memory_space<vmem>>, %arg9: memref<1x2x896xf32, #tpu.memory_space<vmem>>) attributes {dimension_semantics = [#tpu.dimension_semantics<parallel>], iteration_bounds = array<i64: 2>, scalar_prefetch = 0 : i64, scratch_operands = 0 : i64, tpu.core_type = #tpu.core_type<tc>, window_params = [{transform_indices = @transform_0, window_bounds = array<i64: 1, 1, 90>}, {pipeline_mode = #tpu.pipeline_mode<synchronous>, transform_indices = @transform_1, window_bounds = array<i64: 90, 32>}, {pipeline_mode = #tpu.pipeline_mode<synchronous>, transform_indices = @transform_2, window_bounds = array<i64: 1, 32>}, {pipeline_mode = #tpu.pipeline_mode<synchronous>, transform_indices = @transform_3, window_bounds = array<i64: 32, 6>}, {pipeline_mode = #tpu.pipeline_mode<synchronous>, transform_indices = @transform_4, window_bounds = array<i64: 1, 6>}, {pipeline_mode = #tpu.pipeline_mode<synchronous>, transform_indices = @transform_5, window_bounds = array<i64: 6, 896>}, {pipeline_mode = #tpu.pipeline_mode<synchronous>, transform_indices = @transform_6, window_bounds = array<i64: 6, 896>}, {transform_indices = @transform_7, window_bounds = array<i64: 1, 2, 28, 28>}, {transform_indices = @transform_8, window_bounds = array<i64: 1, 2, 896>}]} {
    %c0 = arith.constant 0 : index
    %c0_0 = arith.constant 0 : index
    %c0_1 = arith.constant 0 : index
    %0 = vector.load %arg1[%c0, %c0_0, %c0_1] : memref<1x1x90xf32, #tpu.memory_space<vmem>>, vector<1x1x90xf32>
    %1 = vector.shape_cast %0 : vector<1x1x90xf32> to vector<1x90xf32>
    %c0_2 = arith.constant 0 : index
    %c0_3 = arith.constant 0 : index
    %2 = vector.load %arg2[%c0_2, %c0_3] : memref<90x32xf32, #tpu.memory_space<vmem>>, vector<90x32xf32>
    %cst = arith.constant dense<0.000000e+00> : vector<1x32xf32>
    %3 = tpu.matmul %1, %2, %cst {dimension_numbers = #tpu.dot_dimension_numbers<[1], [0], [0], [1], [0, 0, 1, 1], [], []>} : vector<1x90xf32>, vector<90x32xf32>, vector<1x32xf32> -> vector<1x32xf32>
    %c0_4 = arith.constant 0 : index
    %c0_5 = arith.constant 0 : index
    %4 = vector.load %arg3[%c0_4, %c0_5] : memref<1x32xf32, #tpu.memory_space<vmem>>, vector<1x32xf32>
    %5 = arith.addf %3, %4 : vector<1x32xf32>
    %cst_6 = arith.constant 0.000000e+00 : f32
    %6 = vector.broadcast %cst_6 : f32 to vector<1x32xf32>
    %7 = arith.maximumf %5, %6 : vector<1x32xf32>
    %c0_7 = arith.constant 0 : index
    %c0_8 = arith.constant 0 : index
    %8 = vector.load %arg4[%c0_7, %c0_8] : memref<32x6xf32, #tpu.memory_space<vmem>>, vector<32x6xf32>
    %cst_9 = arith.constant dense<0.000000e+00> : vector<1x6xf32>
    %9 = tpu.matmul %7, %8, %cst_9 {dimension_numbers = #tpu.dot_dimension_numbers<[1], [0], [0], [1], [0, 0, 1, 1], [], []>} : vector<1x32xf32>, vector<32x6xf32>, vector<1x6xf32> -> vector<1x6xf32>
    %c0_10 = arith.constant 0 : index
    %c0_11 = arith.constant 0 : index
    %10 = vector.load %arg5[%c0_10, %c0_11] : memref<1x6xf32, #tpu.memory_space<vmem>>, vector<1x6xf32>
    %11 = arith.addf %9, %10 : vector<1x6xf32>
    %c0_12 = arith.constant 0 : index
    %c0_13 = arith.constant 0 : index
    %12 = vector.load %arg6[%c0_12, %c0_13] : memref<6x896xf32, #tpu.memory_space<vmem>>, vector<6x896xf32>
    %cst_14 = arith.constant dense<0.000000e+00> : vector<1x896xf32>
    %13 = tpu.matmul %11, %12, %cst_14 {dimension_numbers = #tpu.dot_dimension_numbers<[1], [0], [0], [1], [0, 0, 1, 1], [], []>} : vector<1x6xf32>, vector<6x896xf32>, vector<1x896xf32> -> vector<1x896xf32>
    %cst_15 = arith.constant 1.350000e+01 : f32
    %14 = vector.broadcast %cst_15 : f32 to vector<1x896xf32>
    %15 = arith.addf %13, %14 : vector<1x896xf32>
    %c0_16 = arith.constant 0 : index
    %c0_17 = arith.constant 0 : index
    %16 = vector.load %arg7[%c0_16, %c0_17] : memref<6x896xf32, #tpu.memory_space<vmem>>, vector<6x896xf32>
    %cst_18 = arith.constant dense<0.000000e+00> : vector<1x896xf32>
    %17 = tpu.matmul %11, %16, %cst_18 {dimension_numbers = #tpu.dot_dimension_numbers<[1], [0], [0], [1], [0, 0, 1, 1], [], []>} : vector<1x6xf32>, vector<6x896xf32>, vector<1x896xf32> -> vector<1x896xf32>
    %cst_19 = arith.constant 1.350000e+01 : f32
    %18 = vector.broadcast %cst_19 : f32 to vector<1x896xf32>
    %19 = arith.addf %17, %18 : vector<1x896xf32>
    %20 = tpu.iota {dimensions = array<i32: 0>} : vector<28x896xi32>
    %21 = arith.sitofp %20 : vector<28x896xi32> to vector<28x896xf32>
    %22 = tpu.iota {dimensions = array<i32: 0>} : vector<28x896xi32>
    %23 = arith.sitofp %22 : vector<28x896xi32> to vector<28x896xf32>
    %24 = vector.broadcast %15 : vector<1x896xf32> to vector<28x896xf32>
    %25 = arith.subf %21, %24 : vector<28x896xf32>
    %26 = math.absf %25 : vector<28x896xf32>
    %cst_20 = arith.constant 1.000000e+00 : f32
    %27 = vector.broadcast %cst_20 : f32 to vector<28x896xf32>
    %28 = arith.subf %27, %26 : vector<28x896xf32>
    %cst_21 = arith.constant 0.000000e+00 : f32
    %29 = vector.broadcast %cst_21 : f32 to vector<28x896xf32>
    %30 = arith.maximumf %28, %29 : vector<28x896xf32>
    %31 = vector.broadcast %19 : vector<1x896xf32> to vector<28x896xf32>
    %32 = arith.subf %23, %31 : vector<28x896xf32>
    %33 = math.absf %32 : vector<28x896xf32>
    %cst_22 = arith.constant 1.000000e+00 : f32
    %34 = vector.broadcast %cst_22 : f32 to vector<28x896xf32>
    %35 = arith.subf %34, %33 : vector<28x896xf32>
    %cst_23 = arith.constant 0.000000e+00 : f32
    %36 = vector.broadcast %cst_23 : f32 to vector<28x896xf32>
    %37 = arith.maximumf %35, %36 : vector<28x896xf32>
    %c0_24 = arith.constant 0 : index
    %c0_25 = arith.constant 0 : index
    %c0_26 = arith.constant 0 : index
    %c0_27 = arith.constant 0 : index
    %38 = vector.load %arg8[%c0_24, %c0_25, %c0_26, %c0_27] : memref<1x2x28x28xf32, #tpu.memory_space<vmem>>, vector<1x1x28x28xf32>
    %39 = vector.shape_cast %38 : vector<1x1x28x28xf32> to vector<28x28xf32>
    %cst_28 = arith.constant dense<0.000000e+00> : vector<28x896xf32>
    %40 = tpu.matmul %39, %30, %cst_28 {dimension_numbers = #tpu.dot_dimension_numbers<[1], [0], [0], [1], [0, 0, 1, 1], [], []>} : vector<28x28xf32>, vector<28x896xf32>, vector<28x896xf32> -> vector<28x896xf32>
    %41 = arith.mulf %40, %37 : vector<28x896xf32>
    %cst_29 = arith.constant dense<0.000000e+00> : vector<896xf32>
    %42 = vector.multi_reduction <add>, %41, %cst_29 [0] : vector<28x896xf32> to vector<896xf32>
    %c0_30 = arith.constant 0 : index
    %c0_31 = arith.constant 0 : index
    %c0_32 = arith.constant 0 : index
    %43 = vector.load %arg9[%c0_30, %c0_31, %c0_32] : memref<1x2x896xf32, #tpu.memory_space<vmem>>, vector<1x1x896xf32>
    %44 = vector.shape_cast %43 : vector<1x1x896xf32> to vector<896xf32>
    %45 = vector.shape_cast %42 : vector<896xf32> to vector<1x1x896xf32>
    tpu.vector_store %arg9[%c0_30, %c0_31, %c0_32], %45 {strides = array<i32>} : memref<1x2x896xf32, #tpu.memory_space<vmem>>, vector<1x1x896xf32>,
    %c0_33 = arith.constant 0 : index
    %c1 = arith.constant 1 : index
    %c0_34 = arith.constant 0 : index
    %c0_35 = arith.constant 0 : index
    %46 = vector.load %arg8[%c0_33, %c1, %c0_34, %c0_35] : memref<1x2x28x28xf32, #tpu.memory_space<vmem>>, vector<1x1x28x28xf32>
    %47 = vector.shape_cast %46 : vector<1x1x28x28xf32> to vector<28x28xf32>
    %cst_36 = arith.constant dense<0.000000e+00> : vector<28x896xf32>
    %48 = tpu.matmul %47, %30, %cst_36 {dimension_numbers = #tpu.dot_dimension_numbers<[1], [0], [0], [1], [0, 0, 1, 1], [], []>} : vector<28x28xf32>, vector<28x896xf32>, vector<28x896xf32> -> vector<28x896xf32>
    %49 = arith.mulf %48, %37 : vector<28x896xf32>
    %cst_37 = arith.constant dense<0.000000e+00> : vector<896xf32>
    %50 = vector.multi_reduction <add>, %49, %cst_37 [0] : vector<28x896xf32> to vector<896xf32>
    %c0_38 = arith.constant 0 : index
    %c1_39 = arith.constant 1 : index
    %c0_40 = arith.constant 0 : index
    %51 = vector.load %arg9[%c0_38, %c1_39, %c0_40] : memref<1x2x896xf32, #tpu.memory_space<vmem>>, vector<1x1x896xf32>
    %52 = vector.shape_cast %51 : vector<1x1x896xf32> to vector<896xf32>
    %53 = vector.shape_cast %50 : vector<896xf32> to vector<1x1x896xf32>
    tpu.vector_store %arg9[%c0_38, %c1_39, %c0_40], %53 {strides = array<i32>} : memref<1x2x896xf32, #tpu.memory_space<vmem>>, vector<1x1x896xf32>,
    return
  }
  func.func @transform_0(%arg0: i32) -> (i32, i32, i32) {
    %c0_i32 = arith.constant 0 : i32
    %c0_i32_0 = arith.constant 0 : i32
    %c0_i32_1 = arith.constant 0 : i32
    return %arg0, %c0_i32, %c0_i32_0 : i32, i32, i32
  }
  func.func @transform_1(%arg0: i32) -> (i32, i32) {
    %c0_i32 = arith.constant 0 : i32
    %c0_i32_0 = arith.constant 0 : i32
    %c0_i32_1 = arith.constant 0 : i32
    return %c0_i32, %c0_i32_0 : i32, i32
  }
  func.func @transform_2(%arg0: i32) -> (i32, i32) {
    %c0_i32 = arith.constant 0 : i32
    %c0_i32_0 = arith.constant 0 : i32
    %c0_i32_1 = arith.constant 0 : i32
    return %c0_i32, %c0_i32_0 : i32, i32
  }
  func.func @transform_3(%arg0: i32) -> (i32, i32) {
    %c0_i32 = arith.constant 0 : i32
    %c0_i32_0 = arith.constant 0 : i32
    %c0_i32_1 = arith.constant 0 : i32
    return %c0_i32, %c0_i32_0 : i32, i32
  }
  func.func @transform_4(%arg0: i32) -> (i32, i32) {
    %c0_i32 = arith.constant 0 : i32
    %c0_i32_0 = arith.constant 0 : i32
    %c0_i32_1 = arith.constant 0 : i32
    return %c0_i32, %c0_i32_0 : i32, i32
  }
  func.func @transform_5(%arg0: i32) -> (i32, i32) {
    %c0_i32 = arith.constant 0 : i32
    %c0_i32_0 = arith.constant 0 : i32
    %c0_i32_1 = arith.constant 0 : i32
    return %c0_i32, %c0_i32_0 : i32, i32
  }
  func.func @transform_6(%arg0: i32) -> (i32, i32) {
    %c0_i32 = arith.constant 0 : i32
    %c0_i32_0 = arith.constant 0 : i32
    %c0_i32_1 = arith.constant 0 : i32
    return %c0_i32, %c0_i32_0 : i32, i32
  }
  func.func @transform_7(%arg0: i32) -> (i32, i32, i32, i32) {
    %c0_i32 = arith.constant 0 : i32
    %c0_i32_0 = arith.constant 0 : i32
    %c0_i32_1 = arith.constant 0 : i32
    %c0_i32_2 = arith.constant 0 : i32
    return %arg0, %c0_i32, %c0_i32_0, %c0_i32_1 : i32, i32, i32, i32
  }
  func.func @transform_8(%arg0: i32) -> (i32, i32, i32) {
    %c0_i32 = arith.constant 0 : i32
    %c0_i32_0 = arith.constant 0 : i32
    %c0_i32_1 = arith.constant 0 : i32
    return %arg0, %c0_i32, %c0_i32_0 : i32, i32, i32
  }
}

</mosaic_0001>

<llo_original>
// kernel: stn_forward.3
$region0: #{stn_forward.3}
  #allocation0 [shape = 'u32[]', space=smem, size = 0x4, offset = 0x4, fixed_abs, tag = 'smem constant byte address 0x4 - core index']
  #allocation1 [shape = 'u32[144,128]{1,0:T(1,128)}', space=vmem, size = 0x12000, scoped, tag = 'internal scratch']
  %s0 = inlined_call_operand.vmem [shape: f32[2,98,512], index: 0, kind: input, shape index: {}]
  %s1 = inlined_call_operand.vmem [shape: f32[8,98], index: 1, kind: input, shape index: {}]
  %s2 = inlined_call_operand.vmem [shape: f32[8,1], index: 2, kind: input, shape index: {}]
  %s3 = inlined_call_operand.vmem [shape: f32[512,512], index: 3, kind: input, shape index: {}]
  %s4 = inlined_call_operand.vmem [shape: f32[2,8,128], index: 4, kind: output, shape index: {}]
  %s5 = sld [smem:[#allocation0]]
  $region49: #{stn_forward.3} parent=0
    _
  %s7 = ssub.s32 1, %s5
  %s8 = scalar_select 0, %s7, %s5
  loop: start=0, step=1, limit=4
  $region2: #{stn_forward.3} parent=0 // loop_pre_header
    _
  $region3: #{stn_forward.3} parent=0 // loop_header
    %s10 = sphi 0, %s14
    %p11 = scmp.ge.s32.totalorder %s10, 4
    %s20 = sphi 0, %s22
    %s23 = sphi 0, %s20
    %s24 = sphi 0, %s23
    %s40 = sphi 0, %s24
    %s44 = sphi 0, %s44
    %s46 = sphi 0, %s44
    %s47 = sphi 0, %s46
    %s61 = sphi 0, %s47
    %s65 = sphi 0, %s65
    %s67 = sphi 0, %s65
    %s68 = sphi 0, %s67
    %s82 = sphi 0, %s68
    %s86 = sphi 0, %s86
    %s88 = sphi 0, %s86
    %s89 = sphi 0, %s88
    %s103 = sphi 0, %s89
    %s109 = sphi 0, %s111
    %s112 = sphi 0, %s109
    %s113 = sphi 0, %s112
    %s129 = sphi 0, %s113
  $region4: #{stn_forward.3} parent=0 // loop_header_branch
    %13 = sbr.rel (%p11) target = $region8
  $region5: #{stn_forward.3} parent=0 // loop_body
    %s15 = ssub.s32 %s10, 1
    %s16 = ssub.s32 %s10, 2
    %s17 = sadd.s32 %s10, 1
    %s18 = ssub.s32 %s10, %s17
    %p19 = scmp.eq.s32.totalorder %s18, 0
    %s21 = sadd.s32 %s20, 1
    %s22 = scalar_select %p19, %s20, %s21
    %p25 = pneg %p19
    %p26 = scmp.eq.s32.totalorder %s10, 1
    %p27 = por %p25, %p26
    %p28 = scmp.ne.s32.totalorder %s20, %s23
    %p29 = scmp.eq.s32.totalorder %s10, 0
    %p30 = por %p28, %p29
    %p31 = scmp.ne.s32.totalorder %s20, %s23
    %p32 = scmp.eq.s32.totalorder %s15, 1
    %p33 = por %p31, %p32
    %p34 = scmp.ne.s32.totalorder %s23, %s24
    %p35 = scmp.eq.s32.totalorder %s15, 0
    %p36 = por %p34, %p35
    %p37 = scmp.ne.s32.totalorder %s23, %s24
    %p38 = scmp.eq.s32.totalorder %s16, 1
    %p39 = por %p37, %p38
    %p41 = scmp.ne.s32.totalorder %s24, %s40
    %p42 = scmp.eq.s32.totalorder %s16, 0
    %p43 = por %p41, %p42
    %s45 = sadd.s32 %s44, 1
    %p48 = scmp.eq.s32.totalorder %s10, 1
    %p49 = scmp.ne.s32.totalorder %s44, %s46
    %p50 = scmp.eq.s32.totalorder %s10, 0
    %p51 = por %p49, %p50
    %p52 = scmp.ne.s32.totalorder %s44, %s46
    %p53 = scmp.eq.s32.totalorder %s15, 1
    %p54 = por %p52, %p53
    %p55 = scmp.ne.s32.totalorder %s46, %s47
    %p56 = scmp.eq.s32.totalorder %s15, 0
    %p57 = por %p55, %p56
    %p58 = scmp.ne.s32.totalorder %s46, %s47
    %p59 = scmp.eq.s32.totalorder %s16, 1
    %p60 = por %p58, %p59
    %p62 = scmp.ne.s32.totalorder %s47, %s61
    %p63 = scmp.eq.s32.totalorder %s16, 0
    %p64 = por %p62, %p63
    %s66 = sadd.s32 %s65, 1
    %p69 = scmp.eq.s32.totalorder %s10, 1
    %p70 = scmp.ne.s32.totalorder %s65, %s67
    %p71 = scmp.eq.s32.totalorder %s10, 0
    %p72 = por %p70, %p71
    %p73 = scmp.ne.s32.totalorder %s65, %s67
    %p74 = scmp.eq.s32.totalorder %s15, 1
    %p75 = por %p73, %p74
    %p76 = scmp.ne.s32.totalorder %s67, %s68
    %p77 = scmp.eq.s32.totalorder %s15, 0
    %p78 = por %p76, %p77
    %p79 = scmp.ne.s32.totalorder %s67, %s68
    %p80 = scmp.eq.s32.totalorder %s16, 1
    %p81 = por %p79, %p80
    %p83 = scmp.ne.s32.totalorder %s68, %s82
    %p84 = scmp.eq.s32.totalorder %s16, 0
    %p85 = por %p83, %p84
    %s87 = sadd.s32 %s86, 1
    %p90 = scmp.eq.s32.totalorder %s10, 1
    %p91 = scmp.ne.s32.totalorder %s86, %s88
    %p92 = scmp.eq.s32.totalorder %s10, 0
    %p93 = por %p91, %p92
    %p94 = scmp.ne.s32.totalorder %s86, %s88
    %p95 = scmp.eq.s32.totalorder %s15, 1
    %p96 = por %p94, %p95
    %p97 = scmp.ne.s32.totalorder %s88, %s89
    %p98 = scmp.eq.s32.totalorder %s15, 0
    %p99 = por %p97, %p98
    %p100 = scmp.ne.s32.totalorder %s88, %s89
    %p101 = scmp.eq.s32.totalorder %s16, 1
    %p102 = por %p100, %p101
    %p104 = scmp.ne.s32.totalorder %s89, %s103
    %p105 = scmp.eq.s32.totalorder %s16, 0
    %p106 = por %p104, %p105
    %s107 = ssub.s32 %s10, %s17
    %p108 = scmp.eq.s32.totalorder %s107, 0
    %s110 = sadd.s32 %s109, 1
    %s111 = scalar_select %p108, %s109, %s110
    %p114 = pneg %p108
    %p115 = scmp.eq.s32.totalorder %s10, 1
    %p116 = por %p114, %p115
    %p117 = scmp.ne.s32.totalorder %s109, %s112
    %p118 = scmp.eq.s32.totalorder %s10, 0
    %p119 = por %p117, %p118
    %p120 = scmp.ne.s32.totalorder %s109, %s112
    %p121 = scmp.eq.s32.totalorder %s15, 1
    %p122 = por %p120, %p121
    %p123 = scmp.ne.s32.totalorder %s112, %s113
    %p124 = scmp.eq.s32.totalorder %s15, 0
    %p125 = por %p123, %p124
    %p126 = scmp.ne.s32.totalorder %s112, %s113
    %p127 = scmp.eq.s32.totalorder %s16, 1
    %p128 = por %p126, %p127
    %p130 = scmp.ne.s32.totalorder %s113, %s129
    %p131 = scmp.eq.s32.totalorder %s16, 0
    %p132 = por %p130, %p131
    %p133 = scmp.le.s32.totalorder 1, %s10
    %p134 = scmp.lt.s32.totalorder %s10, 3
    %p135 = pnand %p133, %p134
    %p136 = pneg %p135
    // Predicated region
    $region9: #{stn_forward.3} parent=5 // pred_check
      _
    $region10: #{stn_forward.3} parent=5 // pred_check_branch
      %138 = sbr.rel (%p135) target = $region12
    $region11: #{stn_forward.3} parent=5 // pred_region
      %s139 = ssub.s32 %s10, 1
      // Predicated region
      $region13: #{stn_forward.3} parent=11 // pred_check
        %p140 = pneg %p57
      $region14: #{stn_forward.3} parent=11 // pred_check_branch
        %142 = sbr.rel (%p140) target = $region16
      $region15: #{stn_forward.3} parent=11 // pred_region
        _
      $region16: #{stn_forward.3} parent=11 // pred_fallthru
        _
      // Predicated region
      $region17: #{stn_forward.3} parent=11 // pred_check
        %p143 = pneg %p78
      $region18: #{stn_forward.3} parent=11 // pred_check_branch
        %145 = sbr.rel (%p143) target = $region20
      $region19: #{stn_forward.3} parent=11 // pred_region
        _
      $region20: #{stn_forward.3} parent=11 // pred_fallthru
        _
      // Predicated region
      $region21: #{stn_forward.3} parent=11 // pred_check
        %p146 = pneg %p99
      $region22: #{stn_forward.3} parent=11 // pred_check_branch
        %148 = sbr.rel (%p146) target = $region24
      $region23: #{stn_forward.3} parent=11 // pred_region
        _
      $region24: #{stn_forward.3} parent=11 // pred_fallthru
        _
    $region12: #{stn_forward.3} parent=5 // pred_fallthru
      _
    %p149 = scmp.lt.s32.totalorder %s10, 2
    // Predicated region
    $region25: #{stn_forward.3} parent=5 // pred_check
      %p150 = pneg %p149
    $region26: #{stn_forward.3} parent=5 // pred_check_branch
      %152 = sbr.rel (%p150) target = $region28
    $region27: #{stn_forward.3} parent=5 // pred_region
      // Predicated region
      $region29: #{stn_forward.3} parent=27 // pred_check
        %p153 = pneg %p30
      $region30: #{stn_forward.3} parent=27 // pred_check_branch
        %155 = sbr.rel (%p153) target = $region32
      $region31: #{stn_forward.3} parent=27 // pred_region
        %p156 = scmp.lt.s32.totalorder %s10, 1
        %s157 = scalar_select %p156, %s10, 1
        %s158 = smul.addr %s157, 52
        %s159 = smul.addr %s158, 8
        %s160 = scalar_lea.vmem %s0, %s159
      $region32: #{stn_forward.3} parent=27 // pred_fallthru
        _
    $region28: #{stn_forward.3} parent=5 // pred_fallthru
      _
    %p161 = scmp.le.s32.totalorder 1, %s10
    %p162 = scmp.lt.s32.totalorder %s10, 3
    %p163 = pnand %p161, %p162
    %p164 = pneg %p163
    // Predicated region
    $region33: #{stn_forward.3} parent=5 // pred_check
      _
    $region34: #{stn_forward.3} parent=5 // pred_check_branch
      %166 = sbr.rel (%p163) target = $region36
    $region35: #{stn_forward.3} parent=5 // pred_region
      %s167 = ssub.s32 %s10, 1
      %p168 = scmp.lt.s32.totalorder %s15, 1
      %s169 = scalar_select %p168, %s15, 1
      %s170 = smul.addr %s169, 52
      %s171 = smul.addr %s170, 8
      %s172 = scalar_lea.vmem %s0, %s171
      %p173 = pneg %p36
      %p174 = pneg %p33
      %p175 = pneg %p57
      %p176 = pneg %p54
      %p177 = pneg %p78
      %p178 = pneg %p75
      %p179 = pneg %p99
      %p180 = pneg %p96
      %p181 = pneg %p125
      %p182 = pneg %p122
      %p183 = scmp.lt.s32.totalorder %s15, 1
      %s184 = scalar_select %p183, %s15, 1
      %s185 = smul.addr %s184, 8
      %s186 = scalar_lea.vmem %s4, %s185
      %p187 = scmp.lt.s32.totalorder %s15, 1
      %s188 = scalar_select %p187, %s15, 1
      %s189 = smul.addr %s188, 52
      %s190 = smul.addr %s189, 8
      %s191 = scalar_lea.vmem %s0, %s190
      %p192 = scmp.lt.s32.totalorder %s15, 1
      %s193 = scalar_select %p192, %s15, 1
      %s194 = smul.addr %s193, 8
      %s195 = scalar_lea.vmem %s4, %s194
      %v196 = vld [vmem:[%s1] sm:$0xff]
      %v197 = vld [vmem:[%s191] sm:$0xff]
      %v198 = vld [vmem:[%s191 + $0x8] sm:$0xff]
      %v199 = vld [vmem:[%s191 + $0x10] sm:$0xff]
      %v200 = vld [vmem:[%s191 + $0x18] sm:$0xff]
      %v201 = vld [vmem:[%s191 + $0x20] sm:$0xff]
      %v202 = vld [vmem:[%s191 + $0x28] sm:$0xff]
      %v203 = vld [vmem:[%s191 + $0x30] sm:$0xff]
      %v204 = vld [vmem:[%s191 + $0x38] sm:$0xff]
      %v205 = vld [vmem:[%s191 + $0x40] sm:$0xff]
      %v206 = vld [vmem:[%s191 + $0x48] sm:$0xff]
      %v207 = vld [vmem:[%s191 + $0x50] sm:$0xff]
      %v208 = vld [vmem:[%s191 + $0x58] sm:$0xff]
      %v209 = vld [vmem:[%s191 + $0x60] sm:$0xff]
      %v210 = vld [vmem:[%s191 + $0x68] sm:$0xff]
      %v211 = vld [vmem:[%s191 + $0x70] sm:$0xff]
      %v212 = vld [vmem:[%s191 + $0x78] sm:$0xff]
      %v213 = vld [vmem:[%s191 + $0x80] sm:$0xff]
      %v214 = vld [vmem:[%s191 + $0x88] sm:$0xff]
      %v215 = vld [vmem:[%s191 + $0x90] sm:$0xff]
      %v216 = vld [vmem:[%s191 + $0x98] sm:$0xff]
      %v217 = vld [vmem:[%s191 + $0xa0] sm:$0xff]
      %v218 = vld [vmem:[%s191 + $0xa8] sm:$0xff]
      %v219 = vld [vmem:[%s191 + $0xb0] sm:$0xff]
      %v220 = vld [vmem:[%s191 + $0xb8] sm:$0xff]
      %v221 = vld [vmem:[%s191 + $0xc0] sm:$0xff]
      %v222 = vld [vmem:[%s191 + $0xc8] sm:$0xff]
      %v223 = vld [vmem:[%s191 + $0xd0] sm:$0xff]
      %v224 = vld [vmem:[%s191 + $0xd8] sm:$0xff]
      %v225 = vld [vmem:[%s191 + $0xe0] sm:$0xff]
      %v226 = vld [vmem:[%s191 + $0xe8] sm:$0xff]
      %v227 = vld [vmem:[%s191 + $0xf0] sm:$0xff]
      %v228 = vld [vmem:[%s191 + $0xf8] sm:$0xff]
      %v229 = vld [vmem:[%s191 + $0x100] sm:$0xff]
      %v230 = vld [vmem:[%s191 + $0x108] sm:$0xff]
      %v231 = vld [vmem:[%s191 + $0x110] sm:$0xff]
      %v232 = vld [vmem:[%s191 + $0x118] sm:$0xff]
      %v233 = vld [vmem:[%s191 + $0x120] sm:$0xff]
      %v234 = vld [vmem:[%s191 + $0x128] sm:$0xff]
      %v235 = vld [vmem:[%s191 + $0x130] sm:$0xff]
      %v236 = vld [vmem:[%s191 + $0x138] sm:$0xff]
      %v237 = vld [vmem:[%s191 + $0x140] sm:$0xff]
      %v238 = vld [vmem:[%s191 + $0x148] sm:$0xff]
      %v239 = vld [vmem:[%s191 + $0x150] sm:$0xff]
      %v240 = vld [vmem:[%s191 + $0x158] sm:$0xff]
      %v241 = vld [vmem:[%s191 + $0x160] sm:$0xff]
      %v242 = vld [vmem:[%s191 + $0x168] sm:$0xff]
      %v243 = vld [vmem:[%s191 + $0x170] sm:$0xff]
      %v244 = vld [vmem:[%s191 + $0x178] sm:$0xff]
      %v245 = vld [vmem:[%s191 + $0x180] sm:$0x3]
      %v246 = vld [vmem:[%s191 + $0x188] sm:$0x3]
      %v247 = vld [vmem:[%s191 + $0x190] sm:$0x3]
      %v248 = vld [vmem:[%s191 + $0x198] sm:$0x3]
      %v249 = vld [vmem:[%s2] sm:$0xff]
      %251 = vset.pattern.permute.xlu0 0
      %252 = vperm.xlu0 %251, %v249
      %v253 = vpop.permute.xlu0 %252
      %vm255 = vcmask 801792
      %v257 = vsel %vm255, %v196, 0
      %vm259 = vcmask 1041408
      %v261 = vsel %vm259, %v245, 0
      %v264 = vsel %vm259, %v246, 0
      %v267 = vsel %vm259, %v247, 0
      %v270 = vsel %vm259, %v248, 0
      %272 = vmatprep.subr.mxu0 %v198
      %273 = vmatpush1.msra.mxu0 %v197
      %274 = vmatprep.subr.mxu0 %v202
      %275 = vmatpush1.msra.mxu0 %v201
      %276 = vmatprep.subr.mxu0 %v206
      %277 = vmatpush1.msra.mxu0 %v205
      %278 = vmatprep.subr.mxu0 %v210
      %279 = vmatpush1.msra.mxu0 %v209
      %280 = vmatprep.subr.mxu0 %v214
      %281 = vmatpush1.msra.mxu0 %v213
      %282 = vmatprep.subr.mxu0 %v218
      %283 = vmatpush1.msra.mxu0 %v217
      %284 = vmatprep.subr.mxu0 %v222
      %285 = vmatpush1.msra.mxu0 %v221
      %286 = vmatprep.subr.mxu0 %v226
      %287 = vmatpush1.msra.mxu0 %v225
      %288 = vmatprep.subr.mxu0 %v230
      %289 = vmatpush1.msra.mxu0 %v229
      %290 = vmatprep.subr.mxu0 %v234
      %291 = vmatpush1.msra.mxu0 %v233
      %292 = vmatprep.subr.mxu0 %v238
      %293 = vmatpush1.msra.mxu0 %v237
      %294 = vmatprep.subr.mxu0 %v242
      %295 = vmatpush1.msra.mxu0 %v241
      %296 = vmatprep.subr.mxu0 %v264
      %297 = vmatpush1.msra.mxu0 %v261
      %298 = vmatprep.subr.mxu0 0.0
      %299 = vmatpush1.msra.mxu0 0.0
      %300 = vmatprep.subr.mxu0 0.0
      %301 = vmatpush1.msra.mxu0 0.0
      %302 = vmatprep.subr.mxu0 0.0
      %303 = vmatpush1.msra.mxu0 0.0
      %304 = vmatprep.subr.mxu0 0.0
      %305 = vmatpush1.msra.mxu0 0.0
      %306 = vmatprep.subr.mxu0 0.0
      %307 = vmatpush1.msra.mxu0 0.0
      %308 = vmatprep.subr.mxu0 0.0
      %309 = vmatpush1.msra.mxu0 0.0
      %310 = vmatprep.subr.mxu0 0.0
      %311 = vmatpush1.msra.mxu0 0.0
      %312 = vmatprep.subr.mxu0 0.0
      %313 = vmatpush1.msra.mxu0 0.0
      %314 = vmatprep.subr.mxu0 0.0
      %315 = vmatpush1.msra.mxu0 0.0
      %316 = vmatprep.subr.mxu0 0.0
      %317 = vmatpush1.msra.mxu0 0.0
      %318 = vmatprep.subr.mxu0 0.0
      %319 = vmatpush1.msra.mxu0 0.0
      %320 = vmatprep.subr.mxu0 0.0
      %321 = vmatpush1.msra.mxu0 0.0
      %322 = vmatprep.subr.mxu0 0.0
      %323 = vmatpush1.msra.mxu0 0.0
      %324 = vmatprep.subr.mxu0 0.0
      %325 = vmatpush1.msra.mxu0 0.0
      %326 = vmatprep.subr.mxu0 0.0
      %327 = vmatpush1.msra.mxu0 0.0
      %328 = vmatprep.subr.mxu0 0.0
      %329 = vmatpush1.msra.mxu0 0.0
      %330 = vmatprep.subr.mxu0 0.0
      %331 = vmatpush1.msra.mxu0 0.0
      %332 = vmatprep.subr.mxu0 0.0
      %333 = vmatpush1.msra.mxu0 0.0
      %334 = vmatprep.subr.mxu0 0.0
      %335 = vmatpush1.msra.mxu0 0.0
      %336 = vmatprep.mubr.f32.mxu0 0.0
      %337 = vmatmul.mubr.f32.gmra.mrb[0].mxu0 %v257
      %v338 = vpop.f32.mrb[0].mxu0
      %v339 = vadd.f32 %v253, %v338
      %v340 = vpop.f32.mrb[0].mxu0
      %v341 = vadd.f32 %v253, %v340
      %342 = vdwg.mxu0
      %343 = vmatprep.subr.mxu0 %v200
      %344 = vmatpush1.msra.mxu0 %v199
      %345 = vmatprep.subr.mxu0 %v204
      %346 = vmatpush1.msra.mxu0 %v203
      %347 = vmatprep.subr.mxu0 %v208
      %348 = vmatpush1.msra.mxu0 %v207
      %349 = vmatprep.subr.mxu0 %v212
      %350 = vmatpush1.msra.mxu0 %v211
      %351 = vmatprep.subr.mxu0 %v216
      %352 = vmatpush1.msra.mxu0 %v215
      %353 = vmatprep.subr.mxu0 %v220
      %354 = vmatpush1.msra.mxu0 %v219
      %355 = vmatprep.subr.mxu0 %v224
      %356 = vmatpush1.msra.mxu0 %v223
      %357 = vmatprep.subr.mxu0 %v228
      %358 = vmatpush1.msra.mxu0 %v227
      %359 = vmatprep.subr.mxu0 %v232
      %360 = vmatpush1.msra.mxu0 %v231
      %361 = vmatprep.subr.mxu0 %v236
      %362 = vmatpush1.msra.mxu0 %v235
      %363 = vmatprep.subr.mxu0 %v240
      %364 = vmatpush1.msra.mxu0 %v239
      %365 = vmatprep.subr.mxu0 %v244
      %366 = vmatpush1.msra.mxu0 %v243
      %367 = vmatprep.subr.mxu0 %v270
      %368 = vmatpush1.msra.mxu0 %v267
      %369 = vmatprep.subr.mxu0 0.0
      %370 = vmatpush1.msra.mxu0 0.0
      %371 = vmatprep.subr.mxu0 0.0
      %372 = vmatpush1.msra.mxu0 0.0
      %373 = vmatprep.subr.mxu0 0.0
      %374 = vmatpush1.msra.mxu0 0.0
      %375 = vmatprep.subr.mxu0 0.0
      %376 = vmatpush1.msra.mxu0 0.0
      %377 = vmatprep.subr.mxu0 0.0
      %378 = vmatpush1.msra.mxu0 0.0
      %379 = vmatprep.subr.mxu0 0.0
      %380 = vmatpush1.msra.mxu0 0.0
      %381 = vmatprep.subr.mxu0 0.0
      %382 = vmatpush1.msra.mxu0 0.0
      %383 = vmatprep.subr.mxu0 0.0
      %384 = vmatpush1.msra.mxu0 0.0
      %385 = vmatprep.subr.mxu0 0.0
      %386 = vmatpush1.msra.mxu0 0.0
      %387 = vmatprep.subr.mxu0 0.0
      %388 = vmatpush1.msra.mxu0 0.0
      %389 = vmatprep.subr.mxu0 0.0
      %390 = vmatpush1.msra.mxu0 0.0
      %391 = vmatprep.subr.mxu0 0.0
      %392 = vmatpush1.msra.mxu0 0.0
      %393 = vmatprep.subr.mxu0 0.0
      %394 = vmatpush1.msra.mxu0 0.0
      %395 = vmatprep.subr.mxu0 0.0
      %396 = vmatpush1.msra.mxu0 0.0
      %397 = vmatprep.subr.mxu0 0.0
      %398 = vmatpush1.msra.mxu0 0.0
      %399 = vmatprep.subr.mxu0 0.0
      %400 = vmatpush1.msra.mxu0 0.0
      %401 = vmatprep.subr.mxu0 0.0
      %402 = vmatpush1.msra.mxu0 0.0
      %403 = vmatprep.subr.mxu0 0.0
      %404 = vmatpush1.msra.mxu0 0.0
      %405 = vmatprep.subr.mxu0 0.0
      %406 = vmatpush1.msra.mxu0 0.0
      %407 = vmatprep.mubr.f32.mxu0 0.0
      %408 = vmatmul.mubr.f32.gmra.mrb[0].mxu0 %v257
      %v409 = vpop.f32.mrb[0].mxu0
      %v410 = vadd.f32 %v253, %v409
      %v411 = vpop.f32.mrb[0].mxu0
      %v412 = vadd.f32 %v253, %v411
      %413 = vdwg.mxu0
      %v414 = vld [vmem:[%s3] sm:$0xff]
      %v415 = vld [vmem:[%s3 + $0x8] sm:$0xff]
      %v416 = vld [vmem:[%s3 + $0x10] sm:$0xff]
      %v417 = vld [vmem:[%s3 + $0x18] sm:$0xff]
      %v418 = vld [vmem:[%s3 + $0x20] sm:$0xff]
      %v419 = vld [vmem:[%s3 + $0x28] sm:$0xff]
      %v420 = vld [vmem:[%s3 + $0x30] sm:$0xff]
      %v421 = vld [vmem:[%s3 + $0x38] sm:$0xff]
      %v422 = vld [vmem:[%s3 + $0x40] sm:$0xff]
      %v423 = vld [vmem:[%s3 + $0x48] sm:$0xff]
      %v424 = vld [vmem:[%s3 + $0x50] sm:$0xff]
      %v425 = vld [vmem:[%s3 + $0x58] sm:$0xff]
      %v426 = vld [vmem:[%s3 + $0x60] sm:$0xff]
      %v427 = vld [vmem:[%s3 + $0x68] sm:$0xff]
      %v428 = vld [vmem:[%s3 + $0x70] sm:$0xff]
      %v429 = vld [vmem:[%s3 + $0x78] sm:$0xff]
      %v430 = vld [vmem:[%s3 + $0x80] sm:$0xff]
      %v431 = vld [vmem:[%s3 + $0x88] sm:$0xff]
      %v432 = vld [vmem:[%s3 + $0x90] sm:$0xff]
      %v433 = vld [vmem:[%s3 + $0x98] sm:$0xff]
      %v434 = vld [vmem:[%s3 + $0xa0] sm:$0xff]
      %v435 = vld [vmem:[%s3 + $0xa8] sm:$0xff]
      %v436 = vld [vmem:[%s3 + $0xb0] sm:$0xff]
      %v437 = vld [vmem:[%s3 + $0xb8] sm:$0xff]
      %v438 = vld [vmem:[%s3 + $0xc0] sm:$0xff]
      %v439 = vld [vmem:[%s3 + $0xc8] sm:$0xff]
      %v440 = vld [vmem:[%s3 + $0xd0] sm:$0xff]
      %v441 = vld [vmem:[%s3 + $0xd8] sm:$0xff]
      %v442 = vld [vmem:[%s3 + $0xe0] sm:$0xff]
      %v443 = vld [vmem:[%s3 + $0xe8] sm:$0xff]
      %v444 = vld [vmem:[%s3 + $0xf0] sm:$0xff]
      %v445 = vld [vmem:[%s3 + $0xf8] sm:$0xff]
      %v446 = vld [vmem:[%s3 + $0x100] sm:$0xff]
      %v447 = vld [vmem:[%s3 + $0x108] sm:$0xff]
      %v448 = vld [vmem:[%s3 + $0x110] sm:$0xff]
      %v449 = vld [vmem:[%s3 + $0x118] sm:$0xff]
      %v450 = vld [vmem:[%s3 + $0x120] sm:$0xff]
      %v451 = vld [vmem:[%s3 + $0x128] sm:$0xff]
      %v452 = vld [vmem:[%s3 + $0x130] sm:$0xff]
      %v453 = vld [vmem:[%s3 + $0x138] sm:$0xff]
      %v454 = vld [vmem:[%s3 + $0x140] sm:$0xff]
      %v455 = vld [vmem:[%s3 + $0x148] sm:$0xff]
      %v456 = vld [vmem:[%s3 + $0x150] sm:$0xff]
      %v457 = vld [vmem:[%s3 + $0x158] sm:$0xff]
      %v458 = vld [vmem:[%s3 + $0x160] sm:$0xff]
      %v459 = vld [vmem:[%s3 + $0x168] sm:$0xff]
      %v460 = vld [vmem:[%s3 + $0x170] sm:$0xff]
      %v461 = vld [vmem:[%s3 + $0x178] sm:$0xff]
      %v462 = vld [vmem:[%s3 + $0x180] sm:$0xff]
      %v463 = vld [vmem:[%s3 + $0x188] sm:$0xff]
      %v464 = vld [vmem:[%s3 + $0x190] sm:$0xff]
      %v465 = vld [vmem:[%s3 + $0x198] sm:$0xff]
      %v466 = vld [vmem:[%s3 + $0x1a0] sm:$0xff]
      %v467 = vld [vmem:[%s3 + $0x1a8] sm:$0xff]
      %v468 = vld [vmem:[%s3 + $0x1b0] sm:$0xff]
      %v469 = vld [vmem:[%s3 + $0x1b8] sm:$0xff]
      %v470 = vld [vmem:[%s3 + $0x1c0] sm:$0xff]
      %v471 = vld [vmem:[%s3 + $0x1c8] sm:$0xff]
      %v472 = vld [vmem:[%s3 + $0x1d0] sm:$0xff]
      %v473 = vld [vmem:[%s3 + $0x1d8] sm:$0xff]
      %v474 = vld [vmem:[%s3 + $0x1e0] sm:$0xff]
      %v475 = vld [vmem:[%s3 + $0x1e8] sm:$0xff]
      %v476 = vld [vmem:[%s3 + $0x1f0] sm:$0xff]
      %v477 = vld [vmem:[%s3 + $0x1f8] sm:$0xff]
      %v478 = vld [vmem:[%s3 + $0x200] sm:$0xff]
      %v479 = vld [vmem:[%s3 + $0x208] sm:$0xff]
      %v480 = vld [vmem:[%s3 + $0x210] sm:$0xff]
      %v481 = vld [vmem:[%s3 + $0x218] sm:$0xff]
      %v482 = vld [vmem:[%s3 + $0x220] sm:$0xff]
      %v483 = vld [vmem:[%s3 + $0x228] sm:$0xff]
      %v484 = vld [vmem:[%s3 + $0x230] sm:$0xff]
      %v485 = vld [vmem:[%s3 + $0x238] sm:$0xff]
      %v486 = vld [vmem:[%s3 + $0x240] sm:$0xff]
      %v487 = vld [vmem:[%s3 + $0x248] sm:$0xff]
      %v488 = vld [vmem:[%s3 + $0x250] sm:$0xff]
      %v489 = vld [vmem:[%s3 + $0x258] sm:$0xff]
      %v490 = vld [vmem:[%s3 + $0x260] sm:$0xff]
      %v491 = vld [vmem:[%s3 + $0x268] sm:$0xff]
      %v492 = vld [vmem:[%s3 + $0x270] sm:$0xff]
      %v493 = vld [vmem:[%s3 + $0x278] sm:$0xff]
      %v494 = vld [vmem:[%s3 + $0x280] sm:$0xff]
      %v495 = vld [vmem:[%s3 + $0x288] sm:$0xff]
      %v496 = vld [vmem:[%s3 + $0x290] sm:$0xff]
      %v497 = vld [vmem:[%s3 + $0x298] sm:$0xff]
      %v498 = vld [vmem:[%s3 + $0x2a0] sm:$0xff]
      %v499 = vld [vmem:[%s3 + $0x2a8] sm:$0xff]
      %v500 = vld [vmem:[%s3 + $0x2b0] sm:$0xff]
      %v501 = vld [vmem:[%s3 + $0x2b8] sm:$0xff]
      %v502 = vld [vmem:[%s3 + $0x2c0] sm:$0xff]
      %v503 = vld [vmem:[%s3 + $0x2c8] sm:$0xff]
      %v504 = vld [vmem:[%s3 + $0x2d0] sm:$0xff]
      %v505 = vld [vmem:[%s3 + $0x2d8] sm:$0xff]
      %v506 = vld [vmem:[%s3 + $0x2e0] sm:$0xff]
      %v507 = vld [vmem:[%s3 + $0x2e8] sm:$0xff]
      %v508 = vld [vmem:[%s3 + $0x2f0] sm:$0xff]
      %v509 = vld [vmem:[%s3 + $0x2f8] sm:$0xff]
      %v510 = vld [vmem:[%s3 + $0x300] sm:$0xff]
      %v511 = vld [vmem:[%s3 + $0x308] sm:$0xff]
      %v512 = vld [vmem:[%s3 + $0x310] sm:$0xff]
      %v513 = vld [vmem:[%s3 + $0x318] sm:$0xff]
      %v514 = vld [vmem:[%s3 + $0x320] sm:$0xff]
      %v515 = vld [vmem:[%s3 + $0x328] sm:$0xff]
      %v516 = vld [vmem:[%s3 + $0x330] sm:$0xff]
      %v517 = vld [vmem:[%s3 + $0x338] sm:$0xff]
      %v518 = vld [vmem:[%s3 + $0x340] sm:$0xff]
      %v519 = vld [vmem:[%s3 + $0x348] sm:$0xff]
      %v520 = vld [vmem:[%s3 + $0x350] sm:$0xff]
      %v521 = vld [vmem:[%s3 + $0x358] sm:$0xff]
      %v522 = vld [vmem:[%s3 + $0x360] sm:$0xff]
      %v523 = vld [vmem:[%s3 + $0x368] sm:$0xff]
      %v524 = vld [vmem:[%s3 + $0x370] sm:$0xff]
      %v525 = vld [vmem:[%s3 + $0x378] sm:$0xff]
      %v526 = vld [vmem:[%s3 + $0x380] sm:$0xff]
      %v527 = vld [vmem:[%s3 + $0x388] sm:$0xff]
      %v528 = vld [vmem:[%s3 + $0x390] sm:$0xff]
      %v529 = vld [vmem:[%s3 + $0x398] sm:$0xff]
      %v530 = vld [vmem:[%s3 + $0x3a0] sm:$0xff]
      %v531 = vld [vmem:[%s3 + $0x3a8] sm:$0xff]
      %v532 = vld [vmem:[%s3 + $0x3b0] sm:$0xff]
      %v533 = vld [vmem:[%s3 + $0x3b8] sm:$0xff]
      %v534 = vld [vmem:[%s3 + $0x3c0] sm:$0xff]
      %v535 = vld [vmem:[%s3 + $0x3c8] sm:$0xff]
      %v536 = vld [vmem:[%s3 + $0x3d0] sm:$0xff]
      %v537 = vld [vmem:[%s3 + $0x3d8] sm:$0xff]
      %v538 = vld [vmem:[%s3 + $0x3e0] sm:$0xff]
      %v539 = vld [vmem:[%s3 + $0x3e8] sm:$0xff]
      %v540 = vld [vmem:[%s3 + $0x3f0] sm:$0xff]
      %v541 = vld [vmem:[%s3 + $0x3f8] sm:$0xff]
      %v542 = vld [vmem:[%s3 + $0x400] sm:$0xff]
      %v543 = vld [vmem:[%s3 + $0x408] sm:$0xff]
      %v544 = vld [vmem:[%s3 + $0x410] sm:$0xff]
      %v545 = vld [vmem:[%s3 + $0x418] sm:$0xff]
      %v546 = vld [vmem:[%s3 + $0x420] sm:$0xff]
      %v547 = vld [vmem:[%s3 + $0x428] sm:$0xff]
      %v548 = vld [vmem:[%s3 + $0x430] sm:$0xff]
      %v549 = vld [vmem:[%s3 + $0x438] sm:$0xff]
      %v550 = vld [vmem:[%s3 + $0x440] sm:$0xff]
      %v551 = vld [vmem:[%s3 + $0x448] sm:$0xff]
      %v552 = vld [vmem:[%s3 + $0x450] sm:$0xff]
      %v553 = vld [vmem:[%s3 + $0x458] sm:$0xff]
      %v554 = vld [vmem:[%s3 + $0x460] sm:$0xff]
      %v555 = vld [vmem:[%s3 + $0x468] sm:$0xff]
      %v556 = vld [vmem:[%s3 + $0x470] sm:$0xff]
      %v557 = vld [vmem:[%s3 + $0x478] sm:$0xff]
      %v558 = vld [vmem:[%s3 + $0x480] sm:$0xff]
      %v559 = vld [vmem:[%s3 + $0x488] sm:$0xff]
      %v560 = vld [vmem:[%s3 + $0x490] sm:$0xff]
      %v561 = vld [vmem:[%s3 + $0x498] sm:$0xff]
      %v562 = vld [vmem:[%s3 + $0x4a0] sm:$0xff]
      %v563 = vld [vmem:[%s3 + $0x4a8] sm:$0xff]
      %v564 = vld [vmem:[%s3 + $0x4b0] sm:$0xff]
      %v565 = vld [vmem:[%s3 + $0x4b8] sm:$0xff]
      %v566 = vld [vmem:[%s3 + $0x4c0] sm:$0xff]
      %v567 = vld [vmem:[%s3 + $0x4c8] sm:$0xff]
      %v568 = vld [vmem:[%s3 + $0x4d0] sm:$0xff]
      %v569 = vld [vmem:[%s3 + $0x4d8] sm:$0xff]
      %v570 = vld [vmem:[%s3 + $0x4e0] sm:$0xff]
      %v571 = vld [vmem:[%s3 + $0x4e8] sm:$0xff]
      %v572 = vld [vmem:[%s3 + $0x4f0] sm:$0xff]
      %v573 = vld [vmem:[%s3 + $0x4f8] sm:$0xff]
      %v574 = vld [vmem:[%s3 + $0x500] sm:$0xff]
      %v575 = vld [vmem:[%s3 + $0x508] sm:$0xff]
      %v576 = vld [vmem:[%s3 + $0x510] sm:$0xff]
      %v577 = vld [vmem:[%s3 + $0x518] sm:$0xff]
      %v578 = vld [vmem:[%s3 + $0x520] sm:$0xff]
      %v579 = vld [vmem:[%s3 + $0x528] sm:$0xff]
      %v580 = vld [vmem:[%s3 + $0x530] sm:$0xff]
      %v581 = vld [vmem:[%s3 + $0x538] sm:$0xff]
      %v582 = vld [vmem:[%s3 + $0x540] sm:$0xff]
      %v583 = vld [vmem:[%s3 + $0x548] sm:$0xff]
      %v584 = vld [vmem:[%s3 + $0x550] sm:$0xff]
      %v585 = vld [vmem:[%s3 + $0x558] sm:$0xff]
      %v586 = vld [vmem:[%s3 + $0x560] sm:$0xff]
      %v587 = vld [vmem:[%s3 + $0x568] sm:$0xff]
      %v588 = vld [vmem:[%s3 + $0x570] sm:$0xff]
      %v589 = vld [vmem:[%s3 + $0x578] sm:$0xff]
      %v590 = vld [vmem:[%s3 + $0x580] sm:$0xff]
      %v591 = vld [vmem:[%s3 + $0x588] sm:$0xff]
      %v592 = vld [vmem:[%s3 + $0x590] sm:$0xff]
      %v593 = vld [vmem:[%s3 + $0x598] sm:$0xff]
      %v594 = vld [vmem:[%s3 + $0x5a0] sm:$0xff]
      %v595 = vld [vmem:[%s3 + $0x5a8] sm:$0xff]
      %v596 = vld [vmem:[%s3 + $0x5b0] sm:$0xff]
      %v597 = vld [vmem:[%s3 + $0x5b8] sm:$0xff]
      %v598 = vld [vmem:[%s3 + $0x5c0] sm:$0xff]
      %v599 = vld [vmem:[%s3 + $0x5c8] sm:$0xff]
      %v600 = vld [vmem:[%s3 + $0x5d0] sm:$0xff]
      %v601 = vld [vmem:[%s3 + $0x5d8] sm:$0xff]
      %v602 = vld [vmem:[%s3 + $0x5e0] sm:$0xff]
      %v603 = vld [vmem:[%s3 + $0x5e8] sm:$0xff]
      %v604 = vld [vmem:[%s3 + $0x5f0] sm:$0xff]
      %v605 = vld [vmem:[%s3 + $0x5f8] sm:$0xff]
      %v606 = vld [vmem:[%s3 + $0x600] sm:$0xff]
      %v607 = vld [vmem:[%s3 + $0x608] sm:$0xff]
      %v608 = vld [vmem:[%s3 + $0x610] sm:$0xff]
      %v609 = vld [vmem:[%s3 + $0x618] sm:$0xff]
      %v610 = vld [vmem:[%s3 + $0x620] sm:$0xff]
      %v611 = vld [vmem:[%s3 + $0x628] sm:$0xff]
      %v612 = vld [vmem:[%s3 + $0x630] sm:$0xff]
      %v613 = vld [vmem:[%s3 + $0x638] sm:$0xff]
      %v614 = vld [vmem:[%s3 + $0x640] sm:$0xff]
      %v615 = vld [vmem:[%s3 + $0x648] sm:$0xff]
      %v616 = vld [vmem:[%s3 + $0x650] sm:$0xff]
      %v617 = vld [vmem:[%s3 + $0x658] sm:$0xff]
      %v618 = vld [vmem:[%s3 + $0x660] sm:$0xff]
      %v619 = vld [vmem:[%s3 + $0x668] sm:$0xff]
      %v620 = vld [vmem:[%s3 + $0x670] sm:$0xff]
      %v621 = vld [vmem:[%s3 + $0x678] sm:$0xff]
      %v622 = vld [vmem:[%s3 + $0x680] sm:$0xff]
      %v623 = vld [vmem:[%s3 + $0x688] sm:$0xff]
      %v624 = vld [vmem:[%s3 + $0x690] sm:$0xff]
      %v625 = vld [vmem:[%s3 + $0x698] sm:$0xff]
      %v626 = vld [vmem:[%s3 + $0x6a0] sm:$0xff]
      %v627 = vld [vmem:[%s3 + $0x6a8] sm:$0xff]
      %v628 = vld [vmem:[%s3 + $0x6b0] sm:$0xff]
      %v629 = vld [vmem:[%s3 + $0x6b8] sm:$0xff]
      %v630 = vld [vmem:[%s3 + $0x6c0] sm:$0xff]
      %v631 = vld [vmem:[%s3 + $0x6c8] sm:$0xff]
      %v632 = vld [vmem:[%s3 + $0x6d0] sm:$0xff]
      %v633 = vld [vmem:[%s3 + $0x6d8] sm:$0xff]
      %v634 = vld [vmem:[%s3 + $0x6e0] sm:$0xff]
      %v635 = vld [vmem:[%s3 + $0x6e8] sm:$0xff]
      %v636 = vld [vmem:[%s3 + $0x6f0] sm:$0xff]
      %v637 = vld [vmem:[%s3 + $0x6f8] sm:$0xff]
      %v638 = vld [vmem:[%s3 + $0x700] sm:$0xff]
      %v639 = vld [vmem:[%s3 + $0x708] sm:$0xff]
      %v640 = vld [vmem:[%s3 + $0x710] sm:$0xff]
      %v641 = vld [vmem:[%s3 + $0x718] sm:$0xff]
      %v642 = vld [vmem:[%s3 + $0x720] sm:$0xff]
      %v643 = vld [vmem:[%s3 + $0x728] sm:$0xff]
      %v644 = vld [vmem:[%s3 + $0x730] sm:$0xff]
      %v645 = vld [vmem:[%s3 + $0x738] sm:$0xff]
      %v646 = vld [vmem:[%s3 + $0x740] sm:$0xff]
      %v647 = vld [vmem:[%s3 + $0x748] sm:$0xff]
      %v648 = vld [vmem:[%s3 + $0x750] sm:$0xff]
      %v649 = vld [vmem:[%s3 + $0x758] sm:$0xff]
      %v650 = vld [vmem:[%s3 + $0x760] sm:$0xff]
      %v651 = vld [vmem:[%s3 + $0x768] sm:$0xff]
      %v652 = vld [vmem:[%s3 + $0x770] sm:$0xff]
      %v653 = vld [vmem:[%s3 + $0x778] sm:$0xff]
      %v654 = vld [vmem:[%s3 + $0x780] sm:$0xff]
      %v655 = vld [vmem:[%s3 + $0x788] sm:$0xff]
      %v656 = vld [vmem:[%s3 + $0x790] sm:$0xff]
      %v657 = vld [vmem:[%s3 + $0x798] sm:$0xff]
      %v658 = vld [vmem:[%s3 + $0x7a0] sm:$0xff]
      %v659 = vld [vmem:[%s3 + $0x7a8] sm:$0xff]
      %v660 = vld [vmem:[%s3 + $0x7b0] sm:$0xff]
      %v661 = vld [vmem:[%s3 + $0x7b8] sm:$0xff]
      %v662 = vld [vmem:[%s3 + $0x7c0] sm:$0xff]
      %v663 = vld [vmem:[%s3 + $0x7c8] sm:$0xff]
      %v664 = vld [vmem:[%s3 + $0x7d0] sm:$0xff]
      %v665 = vld [vmem:[%s3 + $0x7d8] sm:$0xff]
      %v666 = vld [vmem:[%s3 + $0x7e0] sm:$0xff]
      %v667 = vld [vmem:[%s3 + $0x7e8] sm:$0xff]
      %v668 = vld [vmem:[%s3 + $0x7f0] sm:$0xff]
      %v669 = vld [vmem:[%s3 + $0x7f8] sm:$0xff]
      %670 = vmatprep.subr.mxu0 %v415
      %671 = vmatpush1.msra.mxu0 %v414
      %672 = vmatprep.subr.mxu0 %v419
      %673 = vmatpush1.msra.mxu0 %v418
      %674 = vmatprep.subr.mxu0 %v423
      %675 = vmatpush1.msra.mxu0 %v422
      %676 = vmatprep.subr.mxu0 %v427
      %677 = vmatpush1.msra.mxu0 %v426
      %678 = vmatprep.subr.mxu0 %v431
      %679 = vmatpush1.msra.mxu0 %v430
      %680 = vmatprep.subr.mxu0 %v435
      %681 = vmatpush1.msra.mxu0 %v434
      %682 = vmatprep.subr.mxu0 %v439
      %683 = vmatpush1.msra.mxu0 %v438
      %684 = vmatprep.subr.mxu0 %v443
      %685 = vmatpush1.msra.mxu0 %v442
      %686 = vmatprep.subr.mxu0 %v447
      %687 = vmatpush1.msra.mxu0 %v446
      %688 = vmatprep.subr.mxu0 %v451
      %689 = vmatpush1.msra.mxu0 %v450
      %690 = vmatprep.subr.mxu0 %v455
      %691 = vmatpush1.msra.mxu0 %v454
      %692 = vmatprep.subr.mxu0 %v459
      %693 = vmatpush1.msra.mxu0 %v458
      %694 = vmatprep.subr.mxu0 %v463
      %695 = vmatpush1.msra.mxu0 %v462
      %696 = vmatprep.subr.mxu0 %v467
      %697 = vmatpush1.msra.mxu0 %v466
      %698 = vmatprep.subr.mxu0 %v471
      %699 = vmatpush1.msra.mxu0 %v470
      %700 = vmatprep.subr.mxu0 %v475
      %701 = vmatpush1.msra.mxu0 %v474
      %702 = vmatprep.subr.mxu0 %v479
      %703 = vmatpush1.msra.mxu0 %v478
      %704 = vmatprep.subr.mxu0 %v483
      %705 = vmatpush1.msra.mxu0 %v482
      %706 = vmatprep.subr.mxu0 %v487
      %707 = vmatpush1.msra.mxu0 %v486
      %708 = vmatprep.subr.mxu0 %v491
      %709 = vmatpush1.msra.mxu0 %v490
      %710 = vmatprep.subr.mxu0 %v495
      %711 = vmatpush1.msra.mxu0 %v494
      %712 = vmatprep.subr.mxu0 %v499
      %713 = vmatpush1.msra.mxu0 %v498
      %714 = vmatprep.subr.mxu0 %v503
      %715 = vmatpush1.msra.mxu0 %v502
      %716 = vmatprep.subr.mxu0 %v507
      %717 = vmatpush1.msra.mxu0 %v506
      %718 = vmatprep.subr.mxu0 %v511
      %719 = vmatpush1.msra.mxu0 %v510
      %720 = vmatprep.subr.mxu0 %v515
      %721 = vmatpush1.msra.mxu0 %v514
      %722 = vmatprep.subr.mxu0 %v519
      %723 = vmatpush1.msra.mxu0 %v518
      %724 = vmatprep.subr.mxu0 %v523
      %725 = vmatpush1.msra.mxu0 %v522
      %726 = vmatprep.subr.mxu0 %v527
      %727 = vmatpush1.msra.mxu0 %v526
      %728 = vmatprep.subr.mxu0 %v531
      %729 = vmatpush1.msra.mxu0 %v530
      %730 = vmatprep.subr.mxu0 %v535
      %731 = vmatpush1.msra.mxu0 %v534
      %732 = vmatprep.subr.mxu0 %v539
      %733 = vmatpush1.msra.mxu0 %v538
      %734 = vmatprep.mubr.f32.mxu0 %v341
      %735 = vmatmul.mubr.f32.gmra.mrb[0].mxu0 %v339
      %v736 = vpop.f32.mrb[0].mxu0
      %v737 = vadd.f32 0.0, %v736
      %v738 = vpop.f32.mrb[0].mxu0
      %v739 = vadd.f32 0.0, %v738
      %740 = vdwg.mxu0
      %741 = vmatprep.subr.mxu0 %v543
      %742 = vmatpush1.msra.mxu0 %v542
      %743 = vmatprep.subr.mxu0 %v547
      %744 = vmatpush1.msra.mxu0 %v546
      %745 = vmatprep.subr.mxu0 %v551
      %746 = vmatpush1.msra.mxu0 %v550
      %747 = vmatprep.subr.mxu0 %v555
      %748 = vmatpush1.msra.mxu0 %v554
      %749 = vmatprep.subr.mxu0 %v559
      %750 = vmatpush1.msra.mxu0 %v558
      %751 = vmatprep.subr.mxu0 %v563
      %752 = vmatpush1.msra.mxu0 %v562
      %753 = vmatprep.subr.mxu0 %v567
      %754 = vmatpush1.msra.mxu0 %v566
      %755 = vmatprep.subr.mxu0 %v571
      %756 = vmatpush1.msra.mxu0 %v570
      %757 = vmatprep.subr.mxu0 %v575
      %758 = vmatpush1.msra.mxu0 %v574
      %759 = vmatprep.subr.mxu0 %v579
      %760 = vmatpush1.msra.mxu0 %v578
      %761 = vmatprep.subr.mxu0 %v583
      %762 = vmatpush1.msra.mxu0 %v582
      %763 = vmatprep.subr.mxu0 %v587
      %764 = vmatpush1.msra.mxu0 %v586
      %765 = vmatprep.subr.mxu0 %v591
      %766 = vmatpush1.msra.mxu0 %v590
      %767 = vmatprep.subr.mxu0 %v595
      %768 = vmatpush1.msra.mxu0 %v594
      %769 = vmatprep.subr.mxu0 %v599
      %770 = vmatpush1.msra.mxu0 %v598
      %771 = vmatprep.subr.mxu0 %v603
      %772 = vmatpush1.msra.mxu0 %v602
      %773 = vmatprep.subr.mxu0 %v607
      %774 = vmatpush1.msra.mxu0 %v606
      %775 = vmatprep.subr.mxu0 %v611
      %776 = vmatpush1.msra.mxu0 %v610
      %777 = vmatprep.subr.mxu0 %v615
      %778 = vmatpush1.msra.mxu0 %v614
      %779 = vmatprep.subr.mxu0 %v619
      %780 = vmatpush1.msra.mxu0 %v618
      %781 = vmatprep.subr.mxu0 %v623
      %782 = vmatpush1.msra.mxu0 %v622
      %783 = vmatprep.subr.mxu0 %v627
      %784 = vmatpush1.msra.mxu0 %v626
      %785 = vmatprep.subr.mxu0 %v631
      %786 = vmatpush1.msra.mxu0 %v630
      %787 = vmatprep.subr.mxu0 %v635
      %788 = vmatpush1.msra.mxu0 %v634
      %789 = vmatprep.subr.mxu0 %v639
      %790 = vmatpush1.msra.mxu0 %v638
      %791 = vmatprep.subr.mxu0 %v643
      %792 = vmatpush1.msra.mxu0 %v642
      %793 = vmatprep.subr.mxu0 %v647
      %794 = vmatpush1.msra.mxu0 %v646
      %795 = vmatprep.subr.mxu0 %v651
      %796 = vmatpush1.msra.mxu0 %v650
      %797 = vmatprep.subr.mxu0 %v655
      %798 = vmatpush1.msra.mxu0 %v654
      %799 = vmatprep.subr.mxu0 %v659
      %800 = vmatpush1.msra.mxu0 %v658
      %801 = vmatprep.subr.mxu0 %v663
      %802 = vmatpush1.msra.mxu0 %v662
      %803 = vmatprep.subr.mxu0 %v667
      %804 = vmatpush1.msra.mxu0 %v666
      %805 = vmatprep.mubr.f32.mxu0 %v412
      %806 = vmatmul.mubr.f32.gmra.mrb[0].mxu0 %v410
      %v807 = vpop.f32.mrb[0].mxu0
      %v808 = vadd.f32 %v737, %v807
      %v809 = vpop.f32.mrb[0].mxu0
      %v810 = vadd.f32 %v739, %v809
      %811 = vdwg.mxu0
      %812 = vmatprep.subr.mxu0 %v417
      %813 = vmatpush1.msra.mxu0 %v416
      %814 = vmatprep.subr.mxu0 %v421
      %815 = vmatpush1.msra.mxu0 %v420
      %816 = vmatprep.subr.mxu0 %v425
      %817 = vmatpush1.msra.mxu0 %v424
      %818 = vmatprep.subr.mxu0 %v429
      %819 = vmatpush1.msra.mxu0 %v428
      %820 = vmatprep.subr.mxu0 %v433
      %821 = vmatpush1.msra.mxu0 %v432
      %822 = vmatprep.subr.mxu0 %v437
      %823 = vmatpush1.msra.mxu0 %v436
      %824 = vmatprep.subr.mxu0 %v441
      %825 = vmatpush1.msra.mxu0 %v440
      %826 = vmatprep.subr.mxu0 %v445
      %827 = vmatpush1.msra.mxu0 %v444
      %828 = vmatprep.subr.mxu0 %v449
      %829 = vmatpush1.msra.mxu0 %v448
      %830 = vmatprep.subr.mxu0 %v453
      %831 = vmatpush1.msra.mxu0 %v452
      %832 = vmatprep.subr.mxu0 %v457
      %833 = vmatpush1.msra.mxu0 %v456
      %834 = vmatprep.subr.mxu0 %v461
      %835 = vmatpush1.msra.mxu0 %v460
      %836 = vmatprep.subr.mxu0 %v465
      %837 = vmatpush1.msra.mxu0 %v464
      %838 = vmatprep.subr.mxu0 %v469
      %839 = vmatpush1.msra.mxu0 %v468
      %840 = vmatprep.subr.mxu0 %v473
      %841 = vmatpush1.msra.mxu0 %v472
      %842 = vmatprep.subr.mxu0 %v477
      %843 = vmatpush1.msra.mxu0 %v476
      %844 = vmatprep.subr.mxu0 %v481
      %845 = vmatpush1.msra.mxu0 %v480
      %846 = vmatprep.subr.mxu0 %v485
      %847 = vmatpush1.msra.mxu0 %v484
      %848 = vmatprep.subr.mxu0 %v489
      %849 = vmatpush1.msra.mxu0 %v488
      %850 = vmatprep.subr.mxu0 %v493
      %851 = vmatpush1.msra.mxu0 %v492
      %852 = vmatprep.subr.mxu0 %v497
      %853 = vmatpush1.msra.mxu0 %v496
      %854 = vmatprep.subr.mxu0 %v501
      %855 = vmatpush1.msra.mxu0 %v500
      %856 = vmatprep.subr.mxu0 %v505
      %857 = vmatpush1.msra.mxu0 %v504
      %858 = vmatprep.subr.mxu0 %v509
      %859 = vmatpush1.msra.mxu0 %v508
      %860 = vmatprep.subr.mxu0 %v513
      %861 = vmatpush1.msra.mxu0 %v512
      %862 = vmatprep.subr.mxu0 %v517
      %863 = vmatpush1.msra.mxu0 %v516
      %864 = vmatprep.subr.mxu0 %v521
      %865 = vmatpush1.msra.mxu0 %v520
      %866 = vmatprep.subr.mxu0 %v525
      %867 = vmatpush1.msra.mxu0 %v524
      %868 = vmatprep.subr.mxu0 %v529
      %869 = vmatpush1.msra.mxu0 %v528
      %870 = vmatprep.subr.mxu0 %v533
      %871 = vmatpush1.msra.mxu0 %v532
      %872 = vmatprep.subr.mxu0 %v537
      %873 = vmatpush1.msra.mxu0 %v536
      %874 = vmatprep.subr.mxu0 %v541
      %875 = vmatpush1.msra.mxu0 %v540
      %876 = vmatprep.mubr.f32.mxu0 %v341
      %877 = vmatmul.mubr.f32.gmra.mrb[0].mxu0 %v339
      %v878 = vpop.f32.mrb[0].mxu0
      %v879 = vadd.f32 0.0, %v878
      %v880 = vpop.f32.mrb[0].mxu0
      %v881 = vadd.f32 0.0, %v880
      %882 = vdwg.mxu0
      %883 = vmatprep.subr.mxu0 %v545
      %884 = vmatpush1.msra.mxu0 %v544
      %885 = vmatprep.subr.mxu0 %v549
      %886 = vmatpush1.msra.mxu0 %v548
      %887 = vmatprep.subr.mxu0 %v553
      %888 = vmatpush1.msra.mxu0 %v552
      %889 = vmatprep.subr.mxu0 %v557
      %890 = vmatpush1.msra.mxu0 %v556
      %891 = vmatprep.subr.mxu0 %v561
      %892 = vmatpush1.msra.mxu0 %v560
      %893 = vmatprep.subr.mxu0 %v565
      %894 = vmatpush1.msra.mxu0 %v564
      %895 = vmatprep.subr.mxu0 %v569
      %896 = vmatpush1.msra.mxu0 %v568
      %897 = vmatprep.subr.mxu0 %v573
      %898 = vmatpush1.msra.mxu0 %v572
      %899 = vmatprep.subr.mxu0 %v577
      %900 = vmatpush1.msra.mxu0 %v576
      %901 = vmatprep.subr.mxu0 %v581
      %902 = vmatpush1.msra.mxu0 %v580
      %903 = vmatprep.subr.mxu0 %v585
      %904 = vmatpush1.msra.mxu0 %v584
      %905 = vmatprep.subr.mxu0 %v589
      %906 = vmatpush1.msra.mxu0 %v588
      %907 = vmatprep.subr.mxu0 %v593
      %908 = vmatpush1.msra.mxu0 %v592
      %909 = vmatprep.subr.mxu0 %v597
      %910 = vmatpush1.msra.mxu0 %v596
      %911 = vmatprep.subr.mxu0 %v601
      %912 = vmatpush1.msra.mxu0 %v600
      %913 = vmatprep.subr.mxu0 %v605
      %914 = vmatpush1.msra.mxu0 %v604
      %915 = vmatprep.subr.mxu0 %v609
      %916 = vmatpush1.msra.mxu0 %v608
      %917 = vmatprep.subr.mxu0 %v613
      %918 = vmatpush1.msra.mxu0 %v612
      %919 = vmatprep.subr.mxu0 %v617
      %920 = vmatpush1.msra.mxu0 %v616
      %921 = vmatprep.subr.mxu0 %v621
      %922 = vmatpush1.msra.mxu0 %v620
      %923 = vmatprep.subr.mxu0 %v625
      %924 = vmatpush1.msra.mxu0 %v624
      %925 = vmatprep.subr.mxu0 %v629
      %926 = vmatpush1.msra.mxu0 %v628
      %927 = vmatprep.subr.mxu0 %v633
      %928 = vmatpush1.msra.mxu0 %v632
      %929 = vmatprep.subr.mxu0 %v637
      %930 = vmatpush1.msra.mxu0 %v636
      %931 = vmatprep.subr.mxu0 %v641
      %932 = vmatpush1.msra.mxu0 %v640
      %933 = vmatprep.subr.mxu0 %v645
      %934 = vmatpush1.msra.mxu0 %v644
      %935 = vmatprep.subr.mxu0 %v649
      %936 = vmatpush1.msra.mxu0 %v648
      %937 = vmatprep.subr.mxu0 %v653
      %938 = vmatpush1.msra.mxu0 %v652
      %939 = vmatprep.subr.mxu0 %v657
      %940 = vmatpush1.msra.mxu0 %v656
      %941 = vmatprep.subr.mxu0 %v661
      %942 = vmatpush1.msra.mxu0 %v660
      %943 = vmatprep.subr.mxu0 %v665
      %944 = vmatpush1.msra.mxu0 %v664
      %945 = vmatprep.subr.mxu0 %v669
      %946 = vmatpush1.msra.mxu0 %v668
      %947 = vmatprep.mubr.f32.mxu0 %v412
      %948 = vmatmul.mubr.f32.gmra.mrb[0].mxu0 %v410
      %v949 = vpop.f32.mrb[0].mxu0
      %v950 = vadd.f32 %v879, %v949
      %v951 = vpop.f32.mrb[0].mxu0
      %v952 = vadd.f32 %v881, %v951
      %953 = vdwg.mxu0
      %v954 = vmax.f32 %v808, %v810
      %v955 = vmax.f32 %v950, %v952
      %v956 = vmax.f32 %v954, %v955
      %v957 = vmax.f32 %v956, 0.0
      %958 = vst [vmem:[%s195] sm:$0xff] %v957
      %p959 = scmp.lt.s32.totalorder %s15, 1
      %s960 = scalar_select %p959, %s15, 1
      %s961 = smul.addr %s960, 8
      %s962 = scalar_lea.vmem %s4, %s961
      // Predicated region
      $region37: #{stn_forward.3} parent=35 // pred_check
        %p963 = pneg %p122
      $region38: #{stn_forward.3} parent=35 // pred_check_branch
        %965 = sbr.rel (%p963) target = $region40
      $region39: #{stn_forward.3} parent=35 // pred_region
        _
      $region40: #{stn_forward.3} parent=35 // pred_fallthru
        _
    $region36: #{stn_forward.3} parent=5 // pred_fallthru
      _
    %p966 = scmp.le.s32.totalorder 2, %s10
    // Predicated region
    $region41: #{stn_forward.3} parent=5 // pred_check
      %p967 = pneg %p966
    $region42: #{stn_forward.3} parent=5 // pred_check_branch
      %969 = sbr.rel (%p967) target = $region44
    $region43: #{stn_forward.3} parent=5 // pred_region
      %s970 = ssub.s32 %s10, 2
      // Predicated region
      $region45: #{stn_forward.3} parent=43 // pred_check
        %p971 = pneg %p128
      $region46: #{stn_forward.3} parent=43 // pred_check_branch
        %973 = sbr.rel (%p971) target = $region48
      $region47: #{stn_forward.3} parent=43 // pred_region
        %p974 = scmp.lt.s32.totalorder %s16, 1
        %s975 = scalar_select %p974, %s16, 1
        %s976 = smul.addr %s975, 8
        %s977 = scalar_lea.vmem %s4, %s976
      $region48: #{stn_forward.3} parent=43 // pred_fallthru
        _
    $region44: #{stn_forward.3} parent=5 // pred_fallthru
      _
  $region6: #{stn_forward.3} parent=0 // loop_footer
    %s14 = sadd.s32 1, %s10
  $region7: #{stn_forward.3} parent=0 // loop_footer_branch
    %9 = sbr.rel target = $region3
  $region8: #{stn_forward.3} parent=0 // loop_exit
    _

// kernel: stn_forward.4
$region0: #{stn_forward.4}
  #allocation0 [shape = 'u32[]', space=smem, size = 0x4, offset = 0x4, fixed_abs, tag = 'smem constant byte address 0x4 - core index']
  #allocation1 [shape = 'u32[144,128]{1,0:T(1,128)}', space=vmem, size = 0x12000, scoped, tag = 'internal scratch']
  %s0 = inlined_call_operand.vmem [shape: f32[2,200,128], index: 0, kind: input, shape index: {}]
  %s1 = inlined_call_operand.vmem [shape: f32[10,200], index: 1, kind: input, shape index: {}]
  %s2 = inlined_call_operand.vmem [shape: f32[10,1], index: 2, kind: input, shape index: {}]
  %s3 = inlined_call_operand.vmem [shape: f32[128,512], index: 3, kind: input, shape index: {}]
  %s4 = inlined_call_operand.vmem [shape: f32[2,10,128], index: 4, kind: output, shape index: {}]
  %s5 = sld [smem:[#allocation0]]
  $region49: #{stn_forward.4} parent=0
    _
  %s7 = ssub.s32 1, %s5
  %s8 = scalar_select 0, %s7, %s5
  loop: start=0, step=1, limit=4
  $region2: #{stn_forward.4} parent=0 // loop_pre_header
    _
  $region3: #{stn_forward.4} parent=0 // loop_header
    %s10 = sphi 0, %s14
    %p11 = scmp.ge.s32.totalorder %s10, 4
    %s20 = sphi 0, %s22
    %s23 = sphi 0, %s20
    %s24 = sphi 0, %s23
    %s40 = sphi 0, %s24
    %s44 = sphi 0, %s44
    %s46 = sphi 0, %s44
    %s47 = sphi 0, %s46
    %s61 = sphi 0, %s47
    %s65 = sphi 0, %s65
    %s67 = sphi 0, %s65
    %s68 = sphi 0, %s67
    %s82 = sphi 0, %s68
    %s86 = sphi 0, %s86
    %s88 = sphi 0, %s86
    %s89 = sphi 0, %s88
    %s103 = sphi 0, %s89
    %s109 = sphi 0, %s111
    %s112 = sphi 0, %s109
    %s113 = sphi 0, %s112
    %s129 = sphi 0, %s113
  $region4: #{stn_forward.4} parent=0 // loop_header_branch
    %13 = sbr.rel (%p11) target = $region8
  $region5: #{stn_forward.4} parent=0 // loop_body
    %s15 = ssub.s32 %s10, 1
    %s16 = ssub.s32 %s10, 2
    %s17 = sadd.s32 %s10, 1
    %s18 = ssub.s32 %s10, %s17
    %p19 = scmp.eq.s32.totalorder %s18, 0
    %s21 = sadd.s32 %s20, 1
    %s22 = scalar_select %p19, %s20, %s21
    %p25 = pneg %p19
    %p26 = scmp.eq.s32.totalorder %s10, 1
    %p27 = por %p25, %p26
    %p28 = scmp.ne.s32.totalorder %s20, %s23
    %p29 = scmp.eq.s32.totalorder %s10, 0
    %p30 = por %p28, %p29
    %p31 = scmp.ne.s32.totalorder %s20, %s23
    %p32 = scmp.eq.s32.totalorder %s15, 1
    %p33 = por %p31, %p32
    %p34 = scmp.ne.s32.totalorder %s23, %s24
    %p35 = scmp.eq.s32.totalorder %s15, 0
    %p36 = por %p34, %p35
    %p37 = scmp.ne.s32.totalorder %s23, %s24
    %p38 = scmp.eq.s32.totalorder %s16, 1
    %p39 = por %p37, %p38
    %p41 = scmp.ne.s32.totalorder %s24, %s40
    %p42 = scmp.eq.s32.totalorder %s16, 0
    %p43 = por %p41, %p42
    %s45 = sadd.s32 %s44, 1
    %p48 = scmp.eq.s32.totalorder %s10, 1
    %p49 = scmp.ne.s32.totalorder %s44, %s46
    %p50 = scmp.eq.s32.totalorder %s10, 0
    %p51 = por %p49, %p50
    %p52 = scmp.ne.s32.totalorder %s44, %s46
    %p53 = scmp.eq.s32.totalorder %s15, 1
    %p54 = por %p52, %p53
    %p55 = scmp.ne.s32.totalorder %s46, %s47
    %p56 = scmp.eq.s32.totalorder %s15, 0
    %p57 = por %p55, %p56
    %p58 = scmp.ne.s32.totalorder %s46, %s47
    %p59 = scmp.eq.s32.totalorder %s16, 1
    %p60 = por %p58, %p59
    %p62 = scmp.ne.s32.totalorder %s47, %s61
    %p63 = scmp.eq.s32.totalorder %s16, 0
    %p64 = por %p62, %p63
    %s66 = sadd.s32 %s65, 1
    %p69 = scmp.eq.s32.totalorder %s10, 1
    %p70 = scmp.ne.s32.totalorder %s65, %s67
    %p71 = scmp.eq.s32.totalorder %s10, 0
    %p72 = por %p70, %p71
    %p73 = scmp.ne.s32.totalorder %s65, %s67
    %p74 = scmp.eq.s32.totalorder %s15, 1
    %p75 = por %p73, %p74
    %p76 = scmp.ne.s32.totalorder %s67, %s68
    %p77 = scmp.eq.s32.totalorder %s15, 0
    %p78 = por %p76, %p77
    %p79 = scmp.ne.s32.totalorder %s67, %s68
    %p80 = scmp.eq.s32.totalorder %s16, 1
    %p81 = por %p79, %p80
    %p83 = scmp.ne.s32.totalorder %s68, %s82
    %p84 = scmp.eq.s32.totalorder %s16, 0
    %p85 = por %p83, %p84
    %s87 = sadd.s32 %s86, 1
    %p90 = scmp.eq.s32.totalorder %s10, 1
    %p91 = scmp.ne.s32.totalorder %s86, %s88
    %p92 = scmp.eq.s32.totalorder %s10, 0
    %p93 = por %p91, %p92
    %p94 = scmp.ne.s32.totalorder %s86, %s88
    %p95 = scmp.eq.s32.totalorder %s15, 1
    %p96 = por %p94, %p95
    %p97 = scmp.ne.s32.totalorder %s88, %s89
    %p98 = scmp.eq.s32.totalorder %s15, 0
    %p99 = por %p97, %p98
    %p100 = scmp.ne.s32.totalorder %s88, %s89
    %p101 = scmp.eq.s32.totalorder %s16, 1
    %p102 = por %p100, %p101
    %p104 = scmp.ne.s32.totalorder %s89, %s103
    %p105 = scmp.eq.s32.totalorder %s16, 0
    %p106 = por %p104, %p105
    %s107 = ssub.s32 %s10, %s17
    %p108 = scmp.eq.s32.totalorder %s107, 0
    %s110 = sadd.s32 %s109, 1
    %s111 = scalar_select %p108, %s109, %s110
    %p114 = pneg %p108
    %p115 = scmp.eq.s32.totalorder %s10, 1
    %p116 = por %p114, %p115
    %p117 = scmp.ne.s32.totalorder %s109, %s112
    %p118 = scmp.eq.s32.totalorder %s10, 0
    %p119 = por %p117, %p118
    %p120 = scmp.ne.s32.totalorder %s109, %s112
    %p121 = scmp.eq.s32.totalorder %s15, 1
    %p122 = por %p120, %p121
    %p123 = scmp.ne.s32.totalorder %s112, %s113
    %p124 = scmp.eq.s32.totalorder %s15, 0
    %p125 = por %p123, %p124
    %p126 = scmp.ne.s32.totalorder %s112, %s113
    %p127 = scmp.eq.s32.totalorder %s16, 1
    %p128 = por %p126, %p127
    %p130 = scmp.ne.s32.totalorder %s113, %s129
    %p131 = scmp.eq.s32.totalorder %s16, 0
    %p132 = por %p130, %p131
    %p133 = scmp.le.s32.totalorder 1, %s10
    %p134 = scmp.lt.s32.totalorder %s10, 3
    %p135 = pnand %p133, %p134
    %p136 = pneg %p135
    // Predicated region
    $region9: #{stn_forward.4} parent=5 // pred_check
      _
    $region10: #{stn_forward.4} parent=5 // pred_check_branch
      %138 = sbr.rel (%p135) target = $region12
    $region11: #{stn_forward.4} parent=5 // pred_region
      %s139 = ssub.s32 %s10, 1
      // Predicated region
      $region13: #{stn_forward.4} parent=11 // pred_check
        %p140 = pneg %p57
      $region14: #{stn_forward.4} parent=11 // pred_check_branch
        %142 = sbr.rel (%p140) target = $region16
      $region15: #{stn_forward.4} parent=11 // pred_region
        _
      $region16: #{stn_forward.4} parent=11 // pred_fallthru
        _
      // Predicated region
      $region17: #{stn_forward.4} parent=11 // pred_check
        %p143 = pneg %p78
      $region18: #{stn_forward.4} parent=11 // pred_check_branch
        %145 = sbr.rel (%p143) target = $region20
      $region19: #{stn_forward.4} parent=11 // pred_region
        _
      $region20: #{stn_forward.4} parent=11 // pred_fallthru
        _
      // Predicated region
      $region21: #{stn_forward.4} parent=11 // pred_check
        %p146 = pneg %p99
      $region22: #{stn_forward.4} parent=11 // pred_check_branch
        %148 = sbr.rel (%p146) target = $region24
      $region23: #{stn_forward.4} parent=11 // pred_region
        _
      $region24: #{stn_forward.4} parent=11 // pred_fallthru
        _
    $region12: #{stn_forward.4} parent=5 // pred_fallthru
      _
    %p149 = scmp.lt.s32.totalorder %s10, 2
    // Predicated region
    $region25: #{stn_forward.4} parent=5 // pred_check
      %p150 = pneg %p149
    $region26: #{stn_forward.4} parent=5 // pred_check_branch
      %152 = sbr.rel (%p150) target = $region28
    $region27: #{stn_forward.4} parent=5 // pred_region
      // Predicated region
      $region29: #{stn_forward.4} parent=27 // pred_check
        %p153 = pneg %p30
      $region30: #{stn_forward.4} parent=27 // pred_check_branch
        %155 = sbr.rel (%p153) target = $region32
      $region31: #{stn_forward.4} parent=27 // pred_region
        %p156 = scmp.lt.s32.totalorder %s10, 1
        %s157 = scalar_select %p156, %s10, 1
        %s158 = smul.addr %s157, 25
        %s159 = smul.addr %s158, 8
        %s160 = scalar_lea.vmem %s0, %s159
      $region32: #{stn_forward.4} parent=27 // pred_fallthru
        _
    $region28: #{stn_forward.4} parent=5 // pred_fallthru
      _
    %p161 = scmp.le.s32.totalorder 1, %s10
    %p162 = scmp.lt.s32.totalorder %s10, 3
    %p163 = pnand %p161, %p162
    %p164 = pneg %p163
    // Predicated region
    $region33: #{stn_forward.4} parent=5 // pred_check
      _
    $region34: #{stn_forward.4} parent=5 // pred_check_branch
      %166 = sbr.rel (%p163) target = $region36
    $region35: #{stn_forward.4} parent=5 // pred_region
      %s167 = ssub.s32 %s10, 1
      %p168 = scmp.lt.s32.totalorder %s15, 1
      %s169 = scalar_select %p168, %s15, 1
      %s170 = smul.addr %s169, 25
      %s171 = smul.addr %s170, 8
      %s172 = scalar_lea.vmem %s0, %s171
      %p173 = pneg %p36
      %p174 = pneg %p33
      %p175 = pneg %p57
      %p176 = pneg %p54
      %p177 = pneg %p78
      %p178 = pneg %p75
      %p179 = pneg %p99
      %p180 = pneg %p96
      %p181 = pneg %p125
      %p182 = pneg %p122
      %p183 = scmp.lt.s32.totalorder %s15, 1
      %s184 = scalar_select %p183, %s15, 1
      %s185 = smul.addr %s184, 2
      %s186 = smul.addr %s185, 8
      %s187 = scalar_lea.vmem %s4, %s186
      %p188 = scmp.lt.s32.totalorder %s15, 1
      %s189 = scalar_select %p188, %s15, 1
      %s190 = smul.addr %s189, 25
      %s191 = smul.addr %s190, 8
      %s192 = scalar_lea.vmem %s0, %s191
      %p193 = scmp.lt.s32.totalorder %s15, 1
      %s194 = scalar_select %p193, %s15, 1
      %s195 = smul.addr %s194, 2
      %s196 = smul.addr %s195, 8
      %s197 = scalar_lea.vmem %s4, %s196
      %v198 = vld [vmem:[%s1] sm:$0xff]
      %v199 = vld [vmem:[%s1 + $0x8] sm:$0xff]
      %v200 = vld [vmem:[%s1 + $0x10] sm:$0x3]
      %v201 = vld [vmem:[%s1 + $0x18] sm:$0x3]
      %v202 = vld [vmem:[%s192] sm:$0xff]
      %v203 = vld [vmem:[%s192 + $0x8] sm:$0xff]
      %v204 = vld [vmem:[%s192 + $0x10] sm:$0xff]
      %v205 = vld [vmem:[%s192 + $0x18] sm:$0xff]
      %v206 = vld [vmem:[%s192 + $0x20] sm:$0xff]
      %v207 = vld [vmem:[%s192 + $0x28] sm:$0xff]
      %v208 = vld [vmem:[%s192 + $0x30] sm:$0xff]
      %v209 = vld [vmem:[%s192 + $0x38] sm:$0xff]
      %v210 = vld [vmem:[%s192 + $0x40] sm:$0xff]
      %v211 = vld [vmem:[%s192 + $0x48] sm:$0xff]
      %v212 = vld [vmem:[%s192 + $0x50] sm:$0xff]
      %v213 = vld [vmem:[%s192 + $0x58] sm:$0xff]
      %v214 = vld [vmem:[%s192 + $0x60] sm:$0xff]
      %v215 = vld [vmem:[%s192 + $0x68] sm:$0xff]
      %v216 = vld [vmem:[%s192 + $0x70] sm:$0xff]
      %v217 = vld [vmem:[%s192 + $0x78] sm:$0xff]
      %v218 = vld [vmem:[%s192 + $0x80] sm:$0xff]
      %v219 = vld [vmem:[%s192 + $0x88] sm:$0xff]
      %v220 = vld [vmem:[%s192 + $0x90] sm:$0xff]
      %v221 = vld [vmem:[%s192 + $0x98] sm:$0xff]
      %v222 = vld [vmem:[%s192 + $0xa0] sm:$0xff]
      %v223 = vld [vmem:[%s192 + $0xa8] sm:$0xff]
      %v224 = vld [vmem:[%s192 + $0xb0] sm:$0xff]
      %v225 = vld [vmem:[%s192 + $0xb8] sm:$0xff]
      %v226 = vld [vmem:[%s192 + $0xc0] sm:$0xff]
      %v227 = vld [vmem:[%s2] sm:$0xff]
      %v228 = vld [vmem:[%s2 + $0x8] sm:$0x3]
      %230 = vset.pattern.permute.xlu0 0
      %231 = vperm.xlu0 %230, %v227
      %v232 = vpop.permute.xlu0 %231
      %235 = vset.pattern.permute.xlu0 0
      %236 = vperm.xlu0 %235, %v228
      %v237 = vpop.permute.xlu0 %236
      %vm239 = vcmask 588800
      %v241 = vsel %vm239, %v199, 0
      %v244 = vsel %vm239, %v201, 0
      %246 = vmatprep.subr.mxu0 0.0
      %247 = vmatpush1.msra.mxu0 %v202
      %248 = vmatprep.subr.mxu0 0.0
      %249 = vmatpush1.msra.mxu0 %v203
      %250 = vmatprep.subr.mxu0 0.0
      %251 = vmatpush1.msra.mxu0 %v204
      %252 = vmatprep.subr.mxu0 0.0
      %253 = vmatpush1.msra.mxu0 %v205
      %254 = vmatprep.subr.mxu0 0.0
      %255 = vmatpush1.msra.mxu0 %v206
      %256 = vmatprep.subr.mxu0 0.0
      %257 = vmatpush1.msra.mxu0 %v207
      %258 = vmatprep.subr.mxu0 0.0
      %259 = vmatpush1.msra.mxu0 %v208
      %260 = vmatprep.subr.mxu0 0.0
      %261 = vmatpush1.msra.mxu0 %v209
      %262 = vmatprep.subr.mxu0 0.0
      %263 = vmatpush1.msra.mxu0 %v210
      %264 = vmatprep.subr.mxu0 0.0
      %265 = vmatpush1.msra.mxu0 %v211
      %266 = vmatprep.subr.mxu0 0.0
      %267 = vmatpush1.msra.mxu0 %v212
      %268 = vmatprep.subr.mxu0 0.0
      %269 = vmatpush1.msra.mxu0 %v213
      %270 = vmatprep.subr.mxu0 0.0
      %271 = vmatpush1.msra.mxu0 %v214
      %272 = vmatprep.subr.mxu0 0.0
      %273 = vmatpush1.msra.mxu0 %v215
      %274 = vmatprep.subr.mxu0 0.0
      %275 = vmatpush1.msra.mxu0 %v216
      %276 = vmatprep.subr.mxu0 0.0
      %277 = vmatpush1.msra.mxu0 %v217
      %278 = vmatprep.subr.mxu0 0.0
      %279 = vmatpush1.msra.mxu0 %v218
      %280 = vmatprep.subr.mxu0 0.0
      %281 = vmatpush1.msra.mxu0 %v219
      %282 = vmatprep.subr.mxu0 0.0
      %283 = vmatpush1.msra.mxu0 %v220
      %284 = vmatprep.subr.mxu0 0.0
      %285 = vmatpush1.msra.mxu0 %v221
      %286 = vmatprep.subr.mxu0 0.0
      %287 = vmatpush1.msra.mxu0 %v222
      %288 = vmatprep.subr.mxu0 0.0
      %289 = vmatpush1.msra.mxu0 %v223
      %290 = vmatprep.subr.mxu0 0.0
      %291 = vmatpush1.msra.mxu0 %v224
      %292 = vmatprep.subr.mxu0 0.0
      %293 = vmatpush1.msra.mxu0 %v225
      %294 = vmatprep.subr.mxu0 0.0
      %295 = vmatpush1.msra.mxu0 %v226
      %296 = vmatprep.subr.mxu0 0.0
      %297 = vmatpush1.msra.mxu0 0.0
      %298 = vmatprep.subr.mxu0 0.0
      %299 = vmatpush1.msra.mxu0 0.0
      %300 = vmatprep.subr.mxu0 0.0
      %301 = vmatpush1.msra.mxu0 0.0
      %302 = vmatprep.subr.mxu0 0.0
      %303 = vmatpush1.msra.mxu0 0.0
      %304 = vmatprep.subr.mxu0 0.0
      %305 = vmatpush1.msra.mxu0 0.0
      %306 = vmatprep.subr.mxu0 0.0
      %307 = vmatpush1.msra.mxu0 0.0
      %308 = vmatprep.subr.mxu0 0.0
      %309 = vmatpush1.msra.mxu0 0.0
      %310 = vmatprep.mubr.f32.mxu0 %v241
      %311 = vmatmul.mubr.f32.gmra.mrb[0].mxu0 %v198
      %v312 = vpop.f32.mrb[0].mxu0
      %v313 = vadd.f32 %v232, %v312
      %v314 = vpop.f32.mrb[0].mxu0
      %315 = vmatprep.mubr.f32.mxu0 %v244
      %316 = vmatmul.mubr.f32.gmra.mrb[0].mxu0 %v200
      %v317 = vpop.f32.mrb[0].mxu0
      %v318 = vadd.f32 %v237, %v317
      %v319 = vpop.f32.mrb[0].mxu0
      %320 = vdwg.mxu0
      %v321 = vld [vmem:[%s3] sm:$0xff]
      %v322 = vld [vmem:[%s3 + $0x8] sm:$0xff]
      %v323 = vld [vmem:[%s3 + $0x10] sm:$0xff]
      %v324 = vld [vmem:[%s3 + $0x18] sm:$0xff]
      %v325 = vld [vmem:[%s3 + $0x20] sm:$0xff]
      %v326 = vld [vmem:[%s3 + $0x28] sm:$0xff]
      %v327 = vld [vmem:[%s3 + $0x30] sm:$0xff]
      %v328 = vld [vmem:[%s3 + $0x38] sm:$0xff]
      %v329 = vld [vmem:[%s3 + $0x40] sm:$0xff]
      %v330 = vld [vmem:[%s3 + $0x48] sm:$0xff]
      %v331 = vld [vmem:[%s3 + $0x50] sm:$0xff]
      %v332 = vld [vmem:[%s3 + $0x58] sm:$0xff]
      %v333 = vld [vmem:[%s3 + $0x60] sm:$0xff]
      %v334 = vld [vmem:[%s3 + $0x68] sm:$0xff]
      %v335 = vld [vmem:[%s3 + $0x70] sm:$0xff]
      %v336 = vld [vmem:[%s3 + $0x78] sm:$0xff]
      %v337 = vld [vmem:[%s3 + $0x80] sm:$0xff]
      %v338 = vld [vmem:[%s3 + $0x88] sm:$0xff]
      %v339 = vld [vmem:[%s3 + $0x90] sm:$0xff]
      %v340 = vld [vmem:[%s3 + $0x98] sm:$0xff]
      %v341 = vld [vmem:[%s3 + $0xa0] sm:$0xff]
      %v342 = vld [vmem:[%s3 + $0xa8] sm:$0xff]
      %v343 = vld [vmem:[%s3 + $0xb0] sm:$0xff]
      %v344 = vld [vmem:[%s3 + $0xb8] sm:$0xff]
      %v345 = vld [vmem:[%s3 + $0xc0] sm:$0xff]
      %v346 = vld [vmem:[%s3 + $0xc8] sm:$0xff]
      %v347 = vld [vmem:[%s3 + $0xd0] sm:$0xff]
      %v348 = vld [vmem:[%s3 + $0xd8] sm:$0xff]
      %v349 = vld [vmem:[%s3 + $0xe0] sm:$0xff]
      %v350 = vld [vmem:[%s3 + $0xe8] sm:$0xff]
      %v351 = vld [vmem:[%s3 + $0xf0] sm:$0xff]
      %v352 = vld [vmem:[%s3 + $0xf8] sm:$0xff]
      %v353 = vld [vmem:[%s3 + $0x100] sm:$0xff]
      %v354 = vld [vmem:[%s3 + $0x108] sm:$0xff]
      %v355 = vld [vmem:[%s3 + $0x110] sm:$0xff]
      %v356 = vld [vmem:[%s3 + $0x118] sm:$0xff]
      %v357 = vld [vmem:[%s3 + $0x120] sm:$0xff]
      %v358 = vld [vmem:[%s3 + $0x128] sm:$0xff]
      %v359 = vld [vmem:[%s3 + $0x130] sm:$0xff]
      %v360 = vld [vmem:[%s3 + $0x138] sm:$0xff]
      %v361 = vld [vmem:[%s3 + $0x140] sm:$0xff]
      %v362 = vld [vmem:[%s3 + $0x148] sm:$0xff]
      %v363 = vld [vmem:[%s3 + $0x150] sm:$0xff]
      %v364 = vld [vmem:[%s3 + $0x158] sm:$0xff]
      %v365 = vld [vmem:[%s3 + $0x160] sm:$0xff]
      %v366 = vld [vmem:[%s3 + $0x168] sm:$0xff]
      %v367 = vld [vmem:[%s3 + $0x170] sm:$0xff]
      %v368 = vld [vmem:[%s3 + $0x178] sm:$0xff]
      %v369 = vld [vmem:[%s3 + $0x180] sm:$0xff]
      %v370 = vld [vmem:[%s3 + $0x188] sm:$0xff]
      %v371 = vld [vmem:[%s3 + $0x190] sm:$0xff]
      %v372 = vld [vmem:[%s3 + $0x198] sm:$0xff]
      %v373 = vld [vmem:[%s3 + $0x1a0] sm:$0xff]
      %v374 = vld [vmem:[%s3 + $0x1a8] sm:$0xff]
      %v375 = vld [vmem:[%s3 + $0x1b0] sm:$0xff]
      %v376 = vld [vmem:[%s3 + $0x1b8] sm:$0xff]
      %v377 = vld [vmem:[%s3 + $0x1c0] sm:$0xff]
      %v378 = vld [vmem:[%s3 + $0x1c8] sm:$0xff]
      %v379 = vld [vmem:[%s3 + $0x1d0] sm:$0xff]
      %v380 = vld [vmem:[%s3 + $0x1d8] sm:$0xff]
      %v381 = vld [vmem:[%s3 + $0x1e0] sm:$0xff]
      %v382 = vld [vmem:[%s3 + $0x1e8] sm:$0xff]
      %v383 = vld [vmem:[%s3 + $0x1f0] sm:$0xff]
      %v384 = vld [vmem:[%s3 + $0x1f8] sm:$0xff]
      %385 = vmatprep.subr.mxu0 %v322
      %386 = vmatpush1.msra.mxu0 %v321
      %387 = vmatprep.subr.mxu0 %v326
      %388 = vmatpush1.msra.mxu0 %v325
      %389 = vmatprep.subr.mxu0 %v330
      %390 = vmatpush1.msra.mxu0 %v329
      %391 = vmatprep.subr.mxu0 %v334
      %392 = vmatpush1.msra.mxu0 %v333
      %393 = vmatprep.subr.mxu0 %v338
      %394 = vmatpush1.msra.mxu0 %v337
      %395 = vmatprep.subr.mxu0 %v342
      %396 = vmatpush1.msra.mxu0 %v341
      %397 = vmatprep.subr.mxu0 %v346
      %398 = vmatpush1.msra.mxu0 %v345
      %399 = vmatprep.subr.mxu0 %v350
      %400 = vmatpush1.msra.mxu0 %v349
      %401 = vmatprep.subr.mxu0 %v354
      %402 = vmatpush1.msra.mxu0 %v353
      %403 = vmatprep.subr.mxu0 %v358
      %404 = vmatpush1.msra.mxu0 %v357
      %405 = vmatprep.subr.mxu0 %v362
      %406 = vmatpush1.msra.mxu0 %v361
      %407 = vmatprep.subr.mxu0 %v366
      %408 = vmatpush1.msra.mxu0 %v365
      %409 = vmatprep.subr.mxu0 %v370
      %410 = vmatpush1.msra.mxu0 %v369
      %411 = vmatprep.subr.mxu0 %v374
      %412 = vmatpush1.msra.mxu0 %v373
      %413 = vmatprep.subr.mxu0 %v378
      %414 = vmatpush1.msra.mxu0 %v377
      %415 = vmatprep.subr.mxu0 %v382
      %416 = vmatpush1.msra.mxu0 %v381
      %417 = vmatprep.subr.mxu0 0.0
      %418 = vmatpush1.msra.mxu0 0.0
      %419 = vmatprep.subr.mxu0 0.0
      %420 = vmatpush1.msra.mxu0 0.0
      %421 = vmatprep.subr.mxu0 0.0
      %422 = vmatpush1.msra.mxu0 0.0
      %423 = vmatprep.subr.mxu0 0.0
      %424 = vmatpush1.msra.mxu0 0.0
      %425 = vmatprep.subr.mxu0 0.0
      %426 = vmatpush1.msra.mxu0 0.0
      %427 = vmatprep.subr.mxu0 0.0
      %428 = vmatpush1.msra.mxu0 0.0
      %429 = vmatprep.subr.mxu0 0.0
      %430 = vmatpush1.msra.mxu0 0.0
      %431 = vmatprep.subr.mxu0 0.0
      %432 = vmatpush1.msra.mxu0 0.0
      %433 = vmatprep.subr.mxu0 0.0
      %434 = vmatpush1.msra.mxu0 0.0
      %435 = vmatprep.subr.mxu0 0.0
      %436 = vmatpush1.msra.mxu0 0.0
      %437 = vmatprep.subr.mxu0 0.0
      %438 = vmatpush1.msra.mxu0 0.0
      %439 = vmatprep.subr.mxu0 0.0
      %440 = vmatpush1.msra.mxu0 0.0
      %441 = vmatprep.subr.mxu0 0.0
      %442 = vmatpush1.msra.mxu0 0.0
      %443 = vmatprep.subr.mxu0 0.0
      %444 = vmatpush1.msra.mxu0 0.0
      %445 = vmatprep.subr.mxu0 0.0
      %446 = vmatpush1.msra.mxu0 0.0
      %447 = vmatprep.subr.mxu0 0.0
      %448 = vmatpush1.msra.mxu0 0.0
      %449 = vmatprep.mubr.f32.mxu0 0.0
      %450 = vmatmul.mubr.f32.gmra.mrb[0].mxu0 %v313
      %v451 = vpop.f32.mrb[0].mxu0
      %v452 = vadd.f32 0.0, %v451
      %v453 = vpop.f32.mrb[0].mxu0
      %v454 = vadd.f32 0.0, %v453
      %455 = vmatprep.mubr.f32.mxu0 0.0
      %456 = vmatmul.mubr.f32.gmra.mrb[0].mxu0 %v318
      %v457 = vpop.f32.mrb[0].mxu0
      %v458 = vadd.f32 0.0, %v457
      %v459 = vpop.f32.mrb[0].mxu0
      %v460 = vadd.f32 0.0, %v459
      %461 = vdwg.mxu0
      %462 = vmatprep.subr.mxu0 %v324
      %463 = vmatpush1.msra.mxu0 %v323
      %464 = vmatprep.subr.mxu0 %v328
      %465 = vmatpush1.msra.mxu0 %v327
      %466 = vmatprep.subr.mxu0 %v332
      %467 = vmatpush1.msra.mxu0 %v331
      %468 = vmatprep.subr.mxu0 %v336
      %469 = vmatpush1.msra.mxu0 %v335
      %470 = vmatprep.subr.mxu0 %v340
      %471 = vmatpush1.msra.mxu0 %v339
      %472 = vmatprep.subr.mxu0 %v344
      %473 = vmatpush1.msra.mxu0 %v343
      %474 = vmatprep.subr.mxu0 %v348
      %475 = vmatpush1.msra.mxu0 %v347
      %476 = vmatprep.subr.mxu0 %v352
      %477 = vmatpush1.msra.mxu0 %v351
      %478 = vmatprep.subr.mxu0 %v356
      %479 = vmatpush1.msra.mxu0 %v355
      %480 = vmatprep.subr.mxu0 %v360
      %481 = vmatpush1.msra.mxu0 %v359
      %482 = vmatprep.subr.mxu0 %v364
      %483 = vmatpush1.msra.mxu0 %v363
      %484 = vmatprep.subr.mxu0 %v368
      %485 = vmatpush1.msra.mxu0 %v367
      %486 = vmatprep.subr.mxu0 %v372
      %487 = vmatpush1.msra.mxu0 %v371
      %488 = vmatprep.subr.mxu0 %v376
      %489 = vmatpush1.msra.mxu0 %v375
      %490 = vmatprep.subr.mxu0 %v380
      %491 = vmatpush1.msra.mxu0 %v379
      %492 = vmatprep.subr.mxu0 %v384
      %493 = vmatpush1.msra.mxu0 %v383
      %494 = vmatprep.subr.mxu0 0.0
      %495 = vmatpush1.msra.mxu0 0.0
      %496 = vmatprep.subr.mxu0 0.0
      %497 = vmatpush1.msra.mxu0 0.0
      %498 = vmatprep.subr.mxu0 0.0
      %499 = vmatpush1.msra.mxu0 0.0
      %500 = vmatprep.subr.mxu0 0.0
      %501 = vmatpush1.msra.mxu0 0.0
      %502 = vmatprep.subr.mxu0 0.0
      %503 = vmatpush1.msra.mxu0 0.0
      %504 = vmatprep.subr.mxu0 0.0
      %505 = vmatpush1.msra.mxu0 0.0
      %506 = vmatprep.subr.mxu0 0.0
      %507 = vmatpush1.msra.mxu0 0.0
      %508 = vmatprep.subr.mxu0 0.0
      %509 = vmatpush1.msra.mxu0 0.0
      %510 = vmatprep.subr.mxu0 0.0
      %511 = vmatpush1.msra.mxu0 0.0
      %512 = vmatprep.subr.mxu0 0.0
      %513 = vmatpush1.msra.mxu0 0.0
      %514 = vmatprep.subr.mxu0 0.0
      %515 = vmatpush1.msra.mxu0 0.0
      %516 = vmatprep.subr.mxu0 0.0
      %517 = vmatpush1.msra.mxu0 0.0
      %518 = vmatprep.subr.mxu0 0.0
      %519 = vmatpush1.msra.mxu0 0.0
      %520 = vmatprep.subr.mxu0 0.0
      %521 = vmatpush1.msra.mxu0 0.0
      %522 = vmatprep.subr.mxu0 0.0
      %523 = vmatpush1.msra.mxu0 0.0
      %524 = vmatprep.subr.mxu0 0.0
      %525 = vmatpush1.msra.mxu0 0.0
      %526 = vmatprep.mubr.f32.mxu0 0.0
      %527 = vmatmul.mubr.f32.gmra.mrb[0].mxu0 %v313
      %v528 = vpop.f32.mrb[0].mxu0
      %v529 = vadd.f32 0.0, %v528
      %v530 = vpop.f32.mrb[0].mxu0
      %v531 = vadd.f32 0.0, %v530
      %532 = vmatprep.mubr.f32.mxu0 0.0
      %533 = vmatmul.mubr.f32.gmra.mrb[0].mxu0 %v318
      %v534 = vpop.f32.mrb[0].mxu0
      %v535 = vadd.f32 0.0, %v534
      %v536 = vpop.f32.mrb[0].mxu0
      %v537 = vadd.f32 0.0, %v536
      %538 = vdwg.mxu0
      %v539 = vmax.f32 %v452, %v454
      %v540 = vmax.f32 %v458, %v460
      %v541 = vmax.f32 %v529, %v531
      %v542 = vmax.f32 %v535, %v537
      %v543 = vmax.f32 %v539, %v541
      %v544 = vmax.f32 %v540, %v542
      %v545 = vmax.f32 %v543, 0.0
      %v546 = vmax.f32 %v544, 0.0
      %547 = vst [vmem:[%s197] sm:$0xff] %v545
      %548 = vst [vmem:[%s197 + $0x8] sm:$0x3] %v546
      %p549 = scmp.lt.s32.totalorder %s15, 1
      %s550 = scalar_select %p549, %s15, 1
      %s551 = smul.addr %s550, 2
      %s552 = smul.addr %s551, 8
      %s553 = scalar_lea.vmem %s4, %s552
      // Predicated region
      $region37: #{stn_forward.4} parent=35 // pred_check
        %p554 = pneg %p122
      $region38: #{stn_forward.4} parent=35 // pred_check_branch
        %556 = sbr.rel (%p554) target = $region40
      $region39: #{stn_forward.4} parent=35 // pred_region
        _
      $region40: #{stn_forward.4} parent=35 // pred_fallthru
        _
    $region36: #{stn_forward.4} parent=5 // pred_fallthru
      _
    %p557 = scmp.le.s32.totalorder 2, %s10
    // Predicated region
    $region41: #{stn_forward.4} parent=5 // pred_check
      %p558 = pneg %p557
    $region42: #{stn_forward.4} parent=5 // pred_check_branch
      %560 = sbr.rel (%p558) target = $region44
    $region43: #{stn_forward.4} parent=5 // pred_region
      %s561 = ssub.s32 %s10, 2
      // Predicated region
      $region45: #{stn_forward.4} parent=43 // pred_check
        %p562 = pneg %p128
      $region46: #{stn_forward.4} parent=43 // pred_check_branch
        %564 = sbr.rel (%p562) target = $region48
      $region47: #{stn_forward.4} parent=43 // pred_region
        %p565 = scmp.lt.s32.totalorder %s16, 1
        %s566 = scalar_select %p565, %s16, 1
        %s567 = smul.addr %s566, 2
        %s568 = smul.addr %s567, 8
        %s569 = scalar_lea.vmem %s4, %s568
      $region48: #{stn_forward.4} parent=43 // pred_fallthru
        _
    $region44: #{stn_forward.4} parent=5 // pred_fallthru
      _
  $region6: #{stn_forward.4} parent=0 // loop_footer
    %s14 = sadd.s32 1, %s10
  $region7: #{stn_forward.4} parent=0 // loop_footer_branch
    %9 = sbr.rel target = $region3
  $region8: #{stn_forward.4} parent=0 // loop_exit
    _

// kernel: stn_forward.5
$region0: #{stn_forward.5}
  #allocation0 [shape = 'u32[]', space=smem, size = 0x4, offset = 0x4, fixed_abs, tag = 'smem constant byte address 0x4 - core index']
  #allocation1 [shape = 'u32[144,128]{1,0:T(1,128)}', space=vmem, size = 0x12000, scoped, tag = 'internal scratch']
  %s0 = inlined_call_operand.vmem [shape: f32[2,1,90], index: 0, kind: input, shape index: {}]
  %s1 = inlined_call_operand.vmem [shape: f32[90,32], index: 1, kind: input, shape index: {}]
  %s2 = inlined_call_operand.vmem [shape: f32[1,32], index: 2, kind: input, shape index: {}]
  %s3 = inlined_call_operand.vmem [shape: f32[32,6], index: 3, kind: input, shape index: {}]
  %s4 = inlined_call_operand.vmem [shape: f32[1,6], index: 4, kind: input, shape index: {}]
  %s5 = inlined_call_operand.vmem [shape: f32[6,896], index: 5, kind: input, shape index: {}]
  %s6 = inlined_call_operand.vmem [shape: f32[6,896], index: 6, kind: input, shape index: {}]
  %s7 = inlined_call_operand.vmem [shape: f32[2,2,28,28], index: 7, kind: input, shape index: {}]
  %s8 = inlined_call_operand.vmem [shape: f32[2,2,896], index: 8, kind: output, shape index: {}]
  %s9 = sld [smem:[#allocation0]]
  $region65: #{stn_forward.5} parent=0
    _
  %s11 = ssub.s32 1, %s9
  %s12 = scalar_select 0, %s11, %s9
  loop: start=0, step=1, limit=4
  $region2: #{stn_forward.5} parent=0 // loop_pre_header
    _
  $region3: #{stn_forward.5} parent=0 // loop_header
    %s14 = sphi 0, %s18
    %p15 = scmp.ge.s32.totalorder %s14, 4
    %s24 = sphi 0, %s26
    %s27 = sphi 0, %s24
    %s28 = sphi 0, %s27
    %s44 = sphi 0, %s28
    %s48 = sphi 0, %s48
    %s50 = sphi 0, %s48
    %s51 = sphi 0, %s50
    %s65 = sphi 0, %s51
    %s69 = sphi 0, %s69
    %s71 = sphi 0, %s69
    %s72 = sphi 0, %s71
    %s86 = sphi 0, %s72
    %s90 = sphi 0, %s90
    %s92 = sphi 0, %s90
    %s93 = sphi 0, %s92
    %s107 = sphi 0, %s93
    %s111 = sphi 0, %s111
    %s113 = sphi 0, %s111
    %s114 = sphi 0, %s113
    %s128 = sphi 0, %s114
    %s132 = sphi 0, %s132
    %s134 = sphi 0, %s132
    %s135 = sphi 0, %s134
    %s149 = sphi 0, %s135
    %s153 = sphi 0, %s153
    %s155 = sphi 0, %s153
    %s156 = sphi 0, %s155
    %s170 = sphi 0, %s156
    %s176 = sphi 0, %s178
    %s179 = sphi 0, %s176
    %s180 = sphi 0, %s179
    %s196 = sphi 0, %s180
    %s202 = sphi 0, %s204
    %s205 = sphi 0, %s202
    %s206 = sphi 0, %s205
    %s222 = sphi 0, %s206
  $region4: #{stn_forward.5} parent=0 // loop_header_branch
    %17 = sbr.rel (%p15) target = $region8
  $region5: #{stn_forward.5} parent=0 // loop_body
    %s19 = ssub.s32 %s14, 1
    %s20 = ssub.s32 %s14, 2
    %s21 = sadd.s32 %s14, 1
    %s22 = ssub.s32 %s14, %s21
    %p23 = scmp.eq.s32.totalorder %s22, 0
    %s25 = sadd.s32 %s24, 1
    %s26 = scalar_select %p23, %s24, %s25
    %p29 = pneg %p23
    %p30 = scmp.eq.s32.totalorder %s14, 1
    %p31 = por %p29, %p30
    %p32 = scmp.ne.s32.totalorder %s24, %s27
    %p33 = scmp.eq.s32.totalorder %s14, 0
    %p34 = por %p32, %p33
    %p35 = scmp.ne.s32.totalorder %s24, %s27
    %p36 = scmp.eq.s32.totalorder %s19, 1
    %p37 = por %p35, %p36
    %p38 = scmp.ne.s32.totalorder %s27, %s28
    %p39 = scmp.eq.s32.totalorder %s19, 0
    %p40 = por %p38, %p39
    %p41 = scmp.ne.s32.totalorder %s27, %s28
    %p42 = scmp.eq.s32.totalorder %s20, 1
    %p43 = por %p41, %p42
    %p45 = scmp.ne.s32.totalorder %s28, %s44
    %p46 = scmp.eq.s32.totalorder %s20, 0
    %p47 = por %p45, %p46
    %s49 = sadd.s32 %s48, 1
    %p52 = scmp.eq.s32.totalorder %s14, 1
    %p53 = scmp.ne.s32.totalorder %s48, %s50
    %p54 = scmp.eq.s32.totalorder %s14, 0
    %p55 = por %p53, %p54
    %p56 = scmp.ne.s32.totalorder %s48, %s50
    %p57 = scmp.eq.s32.totalorder %s19, 1
    %p58 = por %p56, %p57
    %p59 = scmp.ne.s32.totalorder %s50, %s51
    %p60 = scmp.eq.s32.totalorder %s19, 0
    %p61 = por %p59, %p60
    %p62 = scmp.ne.s32.totalorder %s50, %s51
    %p63 = scmp.eq.s32.totalorder %s20, 1
    %p64 = por %p62, %p63
    %p66 = scmp.ne.s32.totalorder %s51, %s65
    %p67 = scmp.eq.s32.totalorder %s20, 0
    %p68 = por %p66, %p67
    %s70 = sadd.s32 %s69, 1
    %p73 = scmp.eq.s32.totalorder %s14, 1
    %p74 = scmp.ne.s32.totalorder %s69, %s71
    %p75 = scmp.eq.s32.totalorder %s14, 0
    %p76 = por %p74, %p75
    %p77 = scmp.ne.s32.totalorder %s69, %s71
    %p78 = scmp.eq.s32.totalorder %s19, 1
    %p79 = por %p77, %p78
    %p80 = scmp.ne.s32.totalorder %s71, %s72
    %p81 = scmp.eq.s32.totalorder %s19, 0
    %p82 = por %p80, %p81
    %p83 = scmp.ne.s32.totalorder %s71, %s72
    %p84 = scmp.eq.s32.totalorder %s20, 1
    %p85 = por %p83, %p84
    %p87 = scmp.ne.s32.totalorder %s72, %s86
    %p88 = scmp.eq.s32.totalorder %s20, 0
    %p89 = por %p87, %p88
    %s91 = sadd.s32 %s90, 1
    %p94 = scmp.eq.s32.totalorder %s14, 1
    %p95 = scmp.ne.s32.totalorder %s90, %s92
    %p96 = scmp.eq.s32.totalorder %s14, 0
    %p97 = por %p95, %p96
    %p98 = scmp.ne.s32.totalorder %s90, %s92
    %p99 = scmp.eq.s32.totalorder %s19, 1
    %p100 = por %p98, %p99
    %p101 = scmp.ne.s32.totalorder %s92, %s93
    %p102 = scmp.eq.s32.totalorder %s19, 0
    %p103 = por %p101, %p102
    %p104 = scmp.ne.s32.totalorder %s92, %s93
    %p105 = scmp.eq.s32.totalorder %s20, 1
    %p106 = por %p104, %p105
    %p108 = scmp.ne.s32.totalorder %s93, %s107
    %p109 = scmp.eq.s32.totalorder %s20, 0
    %p110 = por %p108, %p109
    %s112 = sadd.s32 %s111, 1
    %p115 = scmp.eq.s32.totalorder %s14, 1
    %p116 = scmp.ne.s32.totalorder %s111, %s113
    %p117 = scmp.eq.s32.totalorder %s14, 0
    %p118 = por %p116, %p117
    %p119 = scmp.ne.s32.totalorder %s111, %s113
    %p120 = scmp.eq.s32.totalorder %s19, 1
    %p121 = por %p119, %p120
    %p122 = scmp.ne.s32.totalorder %s113, %s114
    %p123 = scmp.eq.s32.totalorder %s19, 0
    %p124 = por %p122, %p123
    %p125 = scmp.ne.s32.totalorder %s113, %s114
    %p126 = scmp.eq.s32.totalorder %s20, 1
    %p127 = por %p125, %p126
    %p129 = scmp.ne.s32.totalorder %s114, %s128
    %p130 = scmp.eq.s32.totalorder %s20, 0
    %p131 = por %p129, %p130
    %s133 = sadd.s32 %s132, 1
    %p136 = scmp.eq.s32.totalorder %s14, 1
    %p137 = scmp.ne.s32.totalorder %s132, %s134
    %p138 = scmp.eq.s32.totalorder %s14, 0
    %p139 = por %p137, %p138
    %p140 = scmp.ne.s32.totalorder %s132, %s134
    %p141 = scmp.eq.s32.totalorder %s19, 1
    %p142 = por %p140, %p141
    %p143 = scmp.ne.s32.totalorder %s134, %s135
    %p144 = scmp.eq.s32.totalorder %s19, 0
    %p145 = por %p143, %p144
    %p146 = scmp.ne.s32.totalorder %s134, %s135
    %p147 = scmp.eq.s32.totalorder %s20, 1
    %p148 = por %p146, %p147
    %p150 = scmp.ne.s32.totalorder %s135, %s149
    %p151 = scmp.eq.s32.totalorder %s20, 0
    %p152 = por %p150, %p151
    %s154 = sadd.s32 %s153, 1
    %p157 = scmp.eq.s32.totalorder %s14, 1
    %p158 = scmp.ne.s32.totalorder %s153, %s155
    %p159 = scmp.eq.s32.totalorder %s14, 0
    %p160 = por %p158, %p159
    %p161 = scmp.ne.s32.totalorder %s153, %s155
    %p162 = scmp.eq.s32.totalorder %s19, 1
    %p163 = por %p161, %p162
    %p164 = scmp.ne.s32.totalorder %s155, %s156
    %p165 = scmp.eq.s32.totalorder %s19, 0
    %p166 = por %p164, %p165
    %p167 = scmp.ne.s32.totalorder %s155, %s156
    %p168 = scmp.eq.s32.totalorder %s20, 1
    %p169 = por %p167, %p168
    %p171 = scmp.ne.s32.totalorder %s156, %s170
    %p172 = scmp.eq.s32.totalorder %s20, 0
    %p173 = por %p171, %p172
    %s174 = ssub.s32 %s14, %s21
    %p175 = scmp.eq.s32.totalorder %s174, 0
    %s177 = sadd.s32 %s176, 1
    %s178 = scalar_select %p175, %s176, %s177
    %p181 = pneg %p175
    %p182 = scmp.eq.s32.totalorder %s14, 1
    %p183 = por %p181, %p182
    %p184 = scmp.ne.s32.totalorder %s176, %s179
    %p185 = scmp.eq.s32.totalorder %s14, 0
    %p186 = por %p184, %p185
    %p187 = scmp.ne.s32.totalorder %s176, %s179
    %p188 = scmp.eq.s32.totalorder %s19, 1
    %p189 = por %p187, %p188
    %p190 = scmp.ne.s32.totalorder %s179, %s180
    %p191 = scmp.eq.s32.totalorder %s19, 0
    %p192 = por %p190, %p191
    %p193 = scmp.ne.s32.totalorder %s179, %s180
    %p194 = scmp.eq.s32.totalorder %s20, 1
    %p195 = por %p193, %p194
    %p197 = scmp.ne.s32.totalorder %s180, %s196
    %p198 = scmp.eq.s32.totalorder %s20, 0
    %p199 = por %p197, %p198
    %s200 = ssub.s32 %s14, %s21
    %p201 = scmp.eq.s32.totalorder %s200, 0
    %s203 = sadd.s32 %s202, 1
    %s204 = scalar_select %p201, %s202, %s203
    %p207 = pneg %p201
    %p208 = scmp.eq.s32.totalorder %s14, 1
    %p209 = por %p207, %p208
    %p210 = scmp.ne.s32.totalorder %s202, %s205
    %p211 = scmp.eq.s32.totalorder %s14, 0
    %p212 = por %p210, %p211
    %p213 = scmp.ne.s32.totalorder %s202, %s205
    %p214 = scmp.eq.s32.totalorder %s19, 1
    %p215 = por %p213, %p214
    %p216 = scmp.ne.s32.totalorder %s205, %s206
    %p217 = scmp.eq.s32.totalorder %s19, 0
    %p218 = por %p216, %p217
    %p219 = scmp.ne.s32.totalorder %s205, %s206
    %p220 = scmp.eq.s32.totalorder %s20, 1
    %p221 = por %p219, %p220
    %p223 = scmp.ne.s32.totalorder %s206, %s222
    %p224 = scmp.eq.s32.totalorder %s20, 0
    %p225 = por %p223, %p224
    %p226 = scmp.le.s32.totalorder 1, %s14
    %p227 = scmp.lt.s32.totalorder %s14, 3
    %p228 = pnand %p226, %p227
    %p229 = pneg %p228
    // Predicated region
    $region9: #{stn_forward.5} parent=5 // pred_check
      _
    $region10: #{stn_forward.5} parent=5 // pred_check_branch
      %231 = sbr.rel (%p228) target = $region12
    $region11: #{stn_forward.5} parent=5 // pred_region
      %s232 = ssub.s32 %s14, 1
      // Predicated region
      $region13: #{stn_forward.5} parent=11 // pred_check
        %p233 = pneg %p61
      $region14: #{stn_forward.5} parent=11 // pred_check_branch
        %235 = sbr.rel (%p233) target = $region16
      $region15: #{stn_forward.5} parent=11 // pred_region
        _
      $region16: #{stn_forward.5} parent=11 // pred_fallthru
        _
      // Predicated region
      $region17: #{stn_forward.5} parent=11 // pred_check
        %p236 = pneg %p82
      $region18: #{stn_forward.5} parent=11 // pred_check_branch
        %238 = sbr.rel (%p236) target = $region20
      $region19: #{stn_forward.5} parent=11 // pred_region
        _
      $region20: #{stn_forward.5} parent=11 // pred_fallthru
        _
      // Predicated region
      $region21: #{stn_forward.5} parent=11 // pred_check
        %p239 = pneg %p103
      $region22: #{stn_forward.5} parent=11 // pred_check_branch
        %241 = sbr.rel (%p239) target = $region24
      $region23: #{stn_forward.5} parent=11 // pred_region
        _
      $region24: #{stn_forward.5} parent=11 // pred_fallthru
        _
      // Predicated region
      $region25: #{stn_forward.5} parent=11 // pred_check
        %p242 = pneg %p124
      $region26: #{stn_forward.5} parent=11 // pred_check_branch
        %244 = sbr.rel (%p242) target = $region28
      $region27: #{stn_forward.5} parent=11 // pred_region
        _
      $region28: #{stn_forward.5} parent=11 // pred_fallthru
        _
      // Predicated region
      $region29: #{stn_forward.5} parent=11 // pred_check
        %p245 = pneg %p145
      $region30: #{stn_forward.5} parent=11 // pred_check_branch
        %247 = sbr.rel (%p245) target = $region32
      $region31: #{stn_forward.5} parent=11 // pred_region
        _
      $region32: #{stn_forward.5} parent=11 // pred_fallthru
        _
      // Predicated region
      $region33: #{stn_forward.5} parent=11 // pred_check
        %p248 = pneg %p166
      $region34: #{stn_forward.5} parent=11 // pred_check_branch
        %250 = sbr.rel (%p248) target = $region36
      $region35: #{stn_forward.5} parent=11 // pred_region
        _
      $region36: #{stn_forward.5} parent=11 // pred_fallthru
        _
    $region12: #{stn_forward.5} parent=5 // pred_fallthru
      _
    %p251 = scmp.lt.s32.totalorder %s14, 2
    // Predicated region
    $region37: #{stn_forward.5} parent=5 // pred_check
      %p252 = pneg %p251
    $region38: #{stn_forward.5} parent=5 // pred_check_branch
      %254 = sbr.rel (%p252) target = $region40
    $region39: #{stn_forward.5} parent=5 // pred_region
      // Predicated region
      $region41: #{stn_forward.5} parent=39 // pred_check
        %p255 = pneg %p34
      $region42: #{stn_forward.5} parent=39 // pred_check_branch
        %257 = sbr.rel (%p255) target = $region44
      $region43: #{stn_forward.5} parent=39 // pred_region
        %p258 = scmp.lt.s32.totalorder %s14, 1
        %s259 = scalar_select %p258, %s14, 1
        %s260 = scalar_lea.vmem %s0, %s259
      $region44: #{stn_forward.5} parent=39 // pred_fallthru
        _
      // Predicated region
      $region45: #{stn_forward.5} parent=39 // pred_check
        %p261 = pneg %p186
      $region46: #{stn_forward.5} parent=39 // pred_check_branch
        %263 = sbr.rel (%p261) target = $region48
      $region47: #{stn_forward.5} parent=39 // pred_region
        %p264 = scmp.lt.s32.totalorder %s14, 1
        %s265 = scalar_select %p264, %s14, 1
        %s266 = smul.addr %s265, 8
        %s267 = smul.addr %s266, 8
        %s268 = scalar_lea.vmem %s7, %s267
      $region48: #{stn_forward.5} parent=39 // pred_fallthru
        _
    $region40: #{stn_forward.5} parent=5 // pred_fallthru
      _
    %p269 = scmp.le.s32.totalorder 1, %s14
    %p270 = scmp.lt.s32.totalorder %s14, 3
    %p271 = pnand %p269, %p270
    %p272 = pneg %p271
    // Predicated region
    $region49: #{stn_forward.5} parent=5 // pred_check
      _
    $region50: #{stn_forward.5} parent=5 // pred_check_branch
      %274 = sbr.rel (%p271) target = $region52
    $region51: #{stn_forward.5} parent=5 // pred_region
      %s275 = ssub.s32 %s14, 1
      %p276 = scmp.lt.s32.totalorder %s19, 1
      %s277 = scalar_select %p276, %s19, 1
      %s278 = scalar_lea.vmem %s0, %s277
      %p279 = pneg %p40
      %p280 = pneg %p37
      %p281 = pneg %p61
      %p282 = pneg %p58
      %p283 = pneg %p82
      %p284 = pneg %p79
      %p285 = pneg %p103
      %p286 = pneg %p100
      %p287 = pneg %p124
      %p288 = pneg %p121
      %p289 = pneg %p145
      %p290 = pneg %p142
      %p291 = pneg %p166
      %p292 = pneg %p163
      %p293 = scmp.lt.s32.totalorder %s19, 1
      %s294 = scalar_select %p293, %s19, 1
      %s295 = smul.addr %s294, 8
      %s296 = smul.addr %s295, 8
      %s297 = scalar_lea.vmem %s7, %s296
      %p298 = pneg %p192
      %p299 = pneg %p189
      %p300 = pneg %p218
      %p301 = pneg %p215
      %p302 = scmp.lt.s32.totalorder %s19, 1
      %s303 = scalar_select %p302, %s19, 1
      %s304 = smul.addr %s303, 7
      %s305 = smul.addr %s304, 2
      %s306 = scalar_lea.vmem %s8, %s305
      %p307 = scmp.lt.s32.totalorder %s19, 1
      %s308 = scalar_select %p307, %s19, 1
      %s309 = scalar_lea.vmem %s0, %s308
      %p310 = scmp.lt.s32.totalorder %s19, 1
      %s311 = scalar_select %p310, %s19, 1
      %s312 = smul.addr %s311, 8
      %s313 = smul.addr %s312, 8
      %s314 = scalar_lea.vmem %s7, %s313
      %p315 = scmp.lt.s32.totalorder %s19, 1
      %s316 = scalar_select %p315, %s19, 1
      %s317 = smul.addr %s316, 7
      %s318 = smul.addr %s317, 2
      %s319 = scalar_lea.vmem %s8, %s318
      %v320 = vld [vmem:[%s309] sm:$0x1]
      %v321 = vld [vmem:[%s1] sm:$0xff]
      %v322 = vld [vmem:[%s1 + $0x8] sm:$0xff]
      %v323 = vld [vmem:[%s1 + $0x10] sm:$0xff]
      %v324 = vld [vmem:[%s1 + $0x18] sm:$0xff]
      %v325 = vld [vmem:[%s1 + $0x20] sm:$0xff]
      %v326 = vld [vmem:[%s1 + $0x28] sm:$0xff]
      %v327 = vld [vmem:[%s1 + $0x30] sm:$0xff]
      %v328 = vld [vmem:[%s1 + $0x38] sm:$0xff]
      %v329 = vld [vmem:[%s1 + $0x40] sm:$0xff]
      %v330 = vld [vmem:[%s1 + $0x48] sm:$0xff]
      %v331 = vld [vmem:[%s1 + $0x50] sm:$0xff]
      %v332 = vld [vmem:[%s1 + $0x58] sm:$0x3]
      %v333 = vld [vmem:[%s2] sm:$0x1]
      %vm334 = vcmask 736256
      %v336 = vsel %vm334, %v320, 0
      %vm338 = vcmask 1041408
      %v340 = vsel %vm338, %v332, 0
      %342 = vmatprep.subr.mxu0 0.0
      %343 = vmatpush1.msra.mxu0 %v321
      %344 = vmatprep.subr.mxu0 0.0
      %345 = vmatpush1.msra.mxu0 %v322
      %346 = vmatprep.subr.mxu0 0.0
      %347 = vmatpush1.msra.mxu0 %v323
      %348 = vmatprep.subr.mxu0 0.0
      %349 = vmatpush1.msra.mxu0 %v324
      %350 = vmatprep.subr.mxu0 0.0
      %351 = vmatpush1.msra.mxu0 %v325
      %352 = vmatprep.subr.mxu0 0.0
      %353 = vmatpush1.msra.mxu0 %v326
      %354 = vmatprep.subr.mxu0 0.0
      %355 = vmatpush1.msra.mxu0 %v327
      %356 = vmatprep.subr.mxu0 0.0
      %357 = vmatpush1.msra.mxu0 %v328
      %358 = vmatprep.subr.mxu0 0.0
      %359 = vmatpush1.msra.mxu0 %v329
      %360 = vmatprep.subr.mxu0 0.0
      %361 = vmatpush1.msra.mxu0 %v330
      %362 = vmatprep.subr.mxu0 0.0
      %363 = vmatpush1.msra.mxu0 %v331
      %364 = vmatprep.subr.mxu0 0.0
      %365 = vmatpush1.msra.mxu0 %v340
      %366 = vmatprep.subr.mxu0 0.0
      %367 = vmatpush1.msra.mxu0 0.0
      %368 = vmatprep.subr.mxu0 0.0
      %369 = vmatpush1.msra.mxu0 0.0
      %370 = vmatprep.subr.mxu0 0.0
      %371 = vmatpush1.msra.mxu0 0.0
      %372 = vmatprep.subr.mxu0 0.0
      %373 = vmatpush1.msra.mxu0 0.0
      %374 = vmatprep.subr.mxu0 0.0
      %375 = vmatpush1.msra.mxu0 0.0
      %376 = vmatprep.subr.mxu0 0.0
      %377 = vmatpush1.msra.mxu0 0.0
      %378 = vmatprep.subr.mxu0 0.0
      %379 = vmatpush1.msra.mxu0 0.0
      %380 = vmatprep.subr.mxu0 0.0
      %381 = vmatpush1.msra.mxu0 0.0
      %382 = vmatprep.subr.mxu0 0.0
      %383 = vmatpush1.msra.mxu0 0.0
      %384 = vmatprep.subr.mxu0 0.0
      %385 = vmatpush1.msra.mxu0 0.0
      %386 = vmatprep.subr.mxu0 0.0
      %387 = vmatpush1.msra.mxu0 0.0
      %388 = vmatprep.subr.mxu0 0.0
      %389 = vmatpush1.msra.mxu0 0.0
      %390 = vmatprep.subr.mxu0 0.0
      %391 = vmatpush1.msra.mxu0 0.0
      %392 = vmatprep.subr.mxu0 0.0
      %393 = vmatpush1.msra.mxu0 0.0
      %394 = vmatprep.subr.mxu0 0.0
      %395 = vmatpush1.msra.mxu0 0.0
      %396 = vmatprep.subr.mxu0 0.0
      %397 = vmatpush1.msra.mxu0 0.0
      %398 = vmatprep.subr.mxu0 0.0
      %399 = vmatpush1.msra.mxu0 0.0
      %400 = vmatprep.subr.mxu0 0.0
      %401 = vmatpush1.msra.mxu0 0.0
      %402 = vmatprep.subr.mxu0 0.0
      %403 = vmatpush1.msra.mxu0 0.0
      %404 = vmatprep.subr.mxu0 0.0
      %405 = vmatpush1.msra.mxu0 0.0
      %406 = vmatprep.mubr.f32.mxu0 0.0
      %407 = vmatmul.mubr.f32.gmra.mrb[0].mxu0 %v336
      %v408 = vpop.f32.mrb[0].mxu0
      %v409 = vadd.f32 %v333, %v408
      %v410 = vpop.f32.mrb[0].mxu0
      %411 = vdwg.mxu0
      %v412 = vmax.f32 %v409, 0.0
      %v413 = vld [vmem:[%s3] sm:$0xff]
      %v414 = vld [vmem:[%s3 + $0x8] sm:$0xff]
      %v415 = vld [vmem:[%s3 + $0x10] sm:$0xff]
      %v416 = vld [vmem:[%s3 + $0x18] sm:$0xff]
      %v417 = vld [vmem:[%s4] sm:$0x1]
      %vm418 = vcmask 261120
      %v420 = vsel %vm418, %v412, 0
      %422 = vmatprep.subr.mxu0 0.0
      %423 = vmatpush1.msra.mxu0 %v413
      %424 = vmatprep.subr.mxu0 0.0
      %425 = vmatpush1.msra.mxu0 %v414
      %426 = vmatprep.subr.mxu0 0.0
      %427 = vmatpush1.msra.mxu0 %v415
      %428 = vmatprep.subr.mxu0 0.0
      %429 = vmatpush1.msra.mxu0 %v416
      %430 = vmatprep.subr.mxu0 0.0
      %431 = vmatpush1.msra.mxu0 0.0
      %432 = vmatprep.subr.mxu0 0.0
      %433 = vmatpush1.msra.mxu0 0.0
      %434 = vmatprep.subr.mxu0 0.0
      %435 = vmatpush1.msra.mxu0 0.0
      %436 = vmatprep.subr.mxu0 0.0
      %437 = vmatpush1.msra.mxu0 0.0
      %438 = vmatprep.subr.mxu0 0.0
      %439 = vmatpush1.msra.mxu0 0.0
      %440 = vmatprep.subr.mxu0 0.0
      %441 = vmatpush1.msra.mxu0 0.0
      %442 = vmatprep.subr.mxu0 0.0
      %443 = vmatpush1.msra.mxu0 0.0
      %444 = vmatprep.subr.mxu0 0.0
      %445 = vmatpush1.msra.mxu0 0.0
      %446 = vmatprep.subr.mxu0 0.0
      %447 = vmatpush1.msra.mxu0 0.0
      %448 = vmatprep.subr.mxu0 0.0
      %449 = vmatpush1.msra.mxu0 0.0
      %450 = vmatprep.subr.mxu0 0.0
      %451 = vmatpush1.msra.mxu0 0.0
      %452 = vmatprep.subr.mxu0 0.0
      %453 = vmatpush1.msra.mxu0 0.0
      %454 = vmatprep.subr.mxu0 0.0
      %455 = vmatpush1.msra.mxu0 0.0
      %456 = vmatprep.subr.mxu0 0.0
      %457 = vmatpush1.msra.mxu0 0.0
      %458 = vmatprep.subr.mxu0 0.0
      %459 = vmatpush1.msra.mxu0 0.0
      %460 = vmatprep.subr.mxu0 0.0
      %461 = vmatpush1.msra.mxu0 0.0
      %462 = vmatprep.subr.mxu0 0.0
      %463 = vmatpush1.msra.mxu0 0.0
      %464 = vmatprep.subr.mxu0 0.0
      %465 = vmatpush1.msra.mxu0 0.0
      %466 = vmatprep.subr.mxu0 0.0
      %467 = vmatpush1.msra.mxu0 0.0
      %468 = vmatprep.subr.mxu0 0.0
      %469 = vmatpush1.msra.mxu0 0.0
      %470 = vmatprep.subr.mxu0 0.0
      %471 = vmatpush1.msra.mxu0 0.0
      %472 = vmatprep.subr.mxu0 0.0
      %473 = vmatpush1.msra.mxu0 0.0
      %474 = vmatprep.subr.mxu0 0.0
      %475 = vmatpush1.msra.mxu0 0.0
      %476 = vmatprep.subr.mxu0 0.0
      %477 = vmatpush1.msra.mxu0 0.0
      %478 = vmatprep.subr.mxu0 0.0
      %479 = vmatpush1.msra.mxu0 0.0
      %480 = vmatprep.subr.mxu0 0.0
      %481 = vmatpush1.msra.mxu0 0.0
      %482 = vmatprep.subr.mxu0 0.0
      %483 = vmatpush1.msra.mxu0 0.0
      %484 = vmatprep.subr.mxu0 0.0
      %485 = vmatpush1.msra.mxu0 0.0
      %486 = vmatprep.mubr.f32.mxu0 0.0
      %487 = vmatmul.mubr.f32.gmra.mrb[0].mxu0 %v420
      %v488 = vpop.f32.mrb[0].mxu0
      %v489 = vadd.f32 %v417, %v488
      %v490 = vpop.f32.mrb[0].mxu0
      %491 = vdwg.mxu0
      %v492 = vld [vmem:[%s5] sm:$0x3f]
      %v493 = vld [vmem:[%s5 + $0x8] sm:$0x3f]
      %v494 = vld [vmem:[%s5 + $0x10] sm:$0x3f]
      %v495 = vld [vmem:[%s5 + $0x18] sm:$0x3f]
      %v496 = vld [vmem:[%s5 + $0x20] sm:$0x3f]
      %v497 = vld [vmem:[%s5 + $0x28] sm:$0x3f]
      %v498 = vld [vmem:[%s5 + $0x30] sm:$0x3f]
      %vm499 = vcmask 48128
      %v501 = vsel %vm499, %v489, 0
      %vm503 = vcmask 1045504
      %v505 = vsel %vm503, %v492, 0
      %v508 = vsel %vm503, %v493, 0
      %v511 = vsel %vm503, %v494, 0
      %v514 = vsel %vm503, %v495, 0
      %v517 = vsel %vm503, %v496, 0
      %v520 = vsel %vm503, %v497, 0
      %v523 = vsel %vm503, %v498, 0
      %525 = vmatprep.subr.mxu0 %v508
      %526 = vmatpush1.msra.mxu0 %v505
      %527 = vmatprep.subr.mxu0 0.0
      %528 = vmatpush1.msra.mxu0 0.0
      %529 = vmatprep.subr.mxu0 0.0
      %530 = vmatpush1.msra.mxu0 0.0
      %531 = vmatprep.subr.mxu0 0.0
      %532 = vmatpush1.msra.mxu0 0.0
      %533 = vmatprep.subr.mxu0 0.0
      %534 = vmatpush1.msra.mxu0 0.0
      %535 = vmatprep.subr.mxu0 0.0
      %536 = vmatpush1.msra.mxu0 0.0
      %537 = vmatprep.subr.mxu0 0.0
      %538 = vmatpush1.msra.mxu0 0.0
      %539 = vmatprep.subr.mxu0 0.0
      %540 = vmatpush1.msra.mxu0 0.0
      %541 = vmatprep.subr.mxu0 0.0
      %542 = vmatpush1.msra.mxu0 0.0
      %543 = vmatprep.subr.mxu0 0.0
      %544 = vmatpush1.msra.mxu0 0.0
      %545 = vmatprep.subr.mxu0 0.0
      %546 = vmatpush1.msra.mxu0 0.0
      %547 = vmatprep.subr.mxu0 0.0
      %548 = vmatpush1.msra.mxu0 0.0
      %549 = vmatprep.subr.mxu0 0.0
      %550 = vmatpush1.msra.mxu0 0.0
      %551 = vmatprep.subr.mxu0 0.0
      %552 = vmatpush1.msra.mxu0 0.0
      %553 = vmatprep.subr.mxu0 0.0
      %554 = vmatpush1.msra.mxu0 0.0
      %555 = vmatprep.subr.mxu0 0.0
      %556 = vmatpush1.msra.mxu0 0.0
      %557 = vmatprep.subr.mxu0 0.0
      %558 = vmatpush1.msra.mxu0 0.0
      %559 = vmatprep.subr.mxu0 0.0
      %560 = vmatpush1.msra.mxu0 0.0
      %561 = vmatprep.subr.mxu0 0.0
      %562 = vmatpush1.msra.mxu0 0.0
      %563 = vmatprep.subr.mxu0 0.0
      %564 = vmatpush1.msra.mxu0 0.0
      %565 = vmatprep.subr.mxu0 0.0
      %566 = vmatpush1.msra.mxu0 0.0
      %567 = vmatprep.subr.mxu0 0.0
      %568 = vmatpush1.msra.mxu0 0.0
      %569 = vmatprep.subr.mxu0 0.0
      %570 = vmatpush1.msra.mxu0 0.0
      %571 = vmatprep.subr.mxu0 0.0
      %572 = vmatpush1.msra.mxu0 0.0
      %573 = vmatprep.subr.mxu0 0.0
      %574 = vmatpush1.msra.mxu0 0.0
      %575 = vmatprep.subr.mxu0 0.0
      %576 = vmatpush1.msra.mxu0 0.0
      %577 = vmatprep.subr.mxu0 0.0
      %578 = vmatpush1.msra.mxu0 0.0
      %579 = vmatprep.subr.mxu0 0.0
      %580 = vmatpush1.msra.mxu0 0.0
      %581 = vmatprep.subr.mxu0 0.0
      %582 = vmatpush1.msra.mxu0 0.0
      %583 = vmatprep.subr.mxu0 0.0
      %584 = vmatpush1.msra.mxu0 0.0
      %585 = vmatprep.subr.mxu0 0.0
      %586 = vmatpush1.msra.mxu0 0.0
      %587 = vmatprep.subr.mxu0 0.0
      %588 = vmatpush1.msra.mxu0 0.0
      %589 = vmatprep.mubr.f32.mxu0 0.0
      %590 = vmatmul.mubr.f32.gmra.mrb[0].mxu0 %v501
      %v591 = vpop.f32.mrb[0].mxu0
      %v592 = vadd.f32 13.5, %v591
      %v593 = vpop.f32.mrb[0].mxu0
      %v594 = vadd.f32 13.5, %v593
      %595 = vdwg.mxu0
      %596 = vmatprep.subr.mxu0 %v514
      %597 = vmatpush1.msra.mxu0 %v511
      %598 = vmatprep.subr.mxu0 0.0
      %599 = vmatpush1.msra.mxu0 0.0
      %600 = vmatprep.subr.mxu0 0.0
      %601 = vmatpush1.msra.mxu0 0.0
      %602 = vmatprep.subr.mxu0 0.0
      %603 = vmatpush1.msra.mxu0 0.0
      %604 = vmatprep.subr.mxu0 0.0
      %605 = vmatpush1.msra.mxu0 0.0
      %606 = vmatprep.subr.mxu0 0.0
      %607 = vmatpush1.msra.mxu0 0.0
      %608 = vmatprep.subr.mxu0 0.0
      %609 = vmatpush1.msra.mxu0 0.0
      %610 = vmatprep.subr.mxu0 0.0
      %611 = vmatpush1.msra.mxu0 0.0
      %612 = vmatprep.subr.mxu0 0.0
      %613 = vmatpush1.msra.mxu0 0.0
      %614 = vmatprep.subr.mxu0 0.0
      %615 = vmatpush1.msra.mxu0 0.0
      %616 = vmatprep.subr.mxu0 0.0
      %617 = vmatpush1.msra.mxu0 0.0
      %618 = vmatprep.subr.mxu0 0.0
      %619 = vmatpush1.msra.mxu0 0.0
      %620 = vmatprep.subr.mxu0 0.0
      %621 = vmatpush1.msra.mxu0 0.0
      %622 = vmatprep.subr.mxu0 0.0
      %623 = vmatpush1.msra.mxu0 0.0
      %624 = vmatprep.subr.mxu0 0.0
      %625 = vmatpush1.msra.mxu0 0.0
      %626 = vmatprep.subr.mxu0 0.0
      %627 = vmatpush1.msra.mxu0 0.0
      %628 = vmatprep.subr.mxu0 0.0
      %629 = vmatpush1.msra.mxu0 0.0
      %630 = vmatprep.subr.mxu0 0.0
      %631 = vmatpush1.msra.mxu0 0.0
      %632 = vmatprep.subr.mxu0 0.0
      %633 = vmatpush1.msra.mxu0 0.0
      %634 = vmatprep.subr.mxu0 0.0
      %635 = vmatpush1.msra.mxu0 0.0
      %636 = vmatprep.subr.mxu0 0.0
      %637 = vmatpush1.msra.mxu0 0.0
      %638 = vmatprep.subr.mxu0 0.0
      %639 = vmatpush1.msra.mxu0 0.0
      %640 = vmatprep.subr.mxu0 0.0
      %641 = vmatpush1.msra.mxu0 0.0
      %642 = vmatprep.subr.mxu0 0.0
      %643 = vmatpush1.msra.mxu0 0.0
      %644 = vmatprep.subr.mxu0 0.0
      %645 = vmatpush1.msra.mxu0 0.0
      %646 = vmatprep.subr.mxu0 0.0
      %647 = vmatpush1.msra.mxu0 0.0
      %648 = vmatprep.subr.mxu0 0.0
      %649 = vmatpush1.msra.mxu0 0.0
      %650 = vmatprep.subr.mxu0 0.0
      %651 = vmatpush1.msra.mxu0 0.0
      %652 = vmatprep.subr.mxu0 0.0
      %653 = vmatpush1.msra.mxu0 0.0
      %654 = vmatprep.subr.mxu0 0.0
      %655 = vmatpush1.msra.mxu0 0.0
      %656 = vmatprep.subr.mxu0 0.0
      %657 = vmatpush1.msra.mxu0 0.0
      %658 = vmatprep.subr.mxu0 0.0
      %659 = vmatpush1.msra.mxu0 0.0
      %660 = vmatprep.mubr.f32.mxu0 0.0
      %661 = vmatmul.mubr.f32.gmra.mrb[0].mxu0 %v501
      %v662 = vpop.f32.mrb[0].mxu0
      %v663 = vadd.f32 13.5, %v662
      %v664 = vpop.f32.mrb[0].mxu0
      %v665 = vadd.f32 13.5, %v664
      %666 = vdwg.mxu0
      %667 = vmatprep.subr.mxu0 %v520
      %668 = vmatpush1.msra.mxu0 %v517
      %669 = vmatprep.subr.mxu0 0.0
      %670 = vmatpush1.msra.mxu0 0.0
      %671 = vmatprep.subr.mxu0 0.0
      %672 = vmatpush1.msra.mxu0 0.0
      %673 = vmatprep.subr.mxu0 0.0
      %674 = vmatpush1.msra.mxu0 0.0
      %675 = vmatprep.subr.mxu0 0.0
      %676 = vmatpush1.msra.mxu0 0.0
      %677 = vmatprep.subr.mxu0 0.0
      %678 = vmatpush1.msra.mxu0 0.0
      %679 = vmatprep.subr.mxu0 0.0
      %680 = vmatpush1.msra.mxu0 0.0
      %681 = vmatprep.subr.mxu0 0.0
      %682 = vmatpush1.msra.mxu0 0.0
      %683 = vmatprep.subr.mxu0 0.0
      %684 = vmatpush1.msra.mxu0 0.0
      %685 = vmatprep.subr.mxu0 0.0
      %686 = vmatpush1.msra.mxu0 0.0
      %687 = vmatprep.subr.mxu0 0.0
      %688 = vmatpush1.msra.mxu0 0.0
      %689 = vmatprep.subr.mxu0 0.0
      %690 = vmatpush1.msra.mxu0 0.0
      %691 = vmatprep.subr.mxu0 0.0
      %692 = vmatpush1.msra.mxu0 0.0
      %693 = vmatprep.subr.mxu0 0.0
      %694 = vmatpush1.msra.mxu0 0.0
      %695 = vmatprep.subr.mxu0 0.0
      %696 = vmatpush1.msra.mxu0 0.0
      %697 = vmatprep.subr.mxu0 0.0
      %698 = vmatpush1.msra.mxu0 0.0
      %699 = vmatprep.subr.mxu0 0.0
      %700 = vmatpush1.msra.mxu0 0.0
      %701 = vmatprep.subr.mxu0 0.0
      %702 = vmatpush1.msra.mxu0 0.0
      %703 = vmatprep.subr.mxu0 0.0
      %704 = vmatpush1.msra.mxu0 0.0
      %705 = vmatprep.subr.mxu0 0.0
      %706 = vmatpush1.msra.mxu0 0.0
      %707 = vmatprep.subr.mxu0 0.0
      %708 = vmatpush1.msra.mxu0 0.0
      %709 = vmatprep.subr.mxu0 0.0
      %710 = vmatpush1.msra.mxu0 0.0
      %711 = vmatprep.subr.mxu0 0.0
      %712 = vmatpush1.msra.mxu0 0.0
      %713 = vmatprep.subr.mxu0 0.0
      %714 = vmatpush1.msra.mxu0 0.0
      %715 = vmatprep.subr.mxu0 0.0
      %716 = vmatpush1.msra.mxu0 0.0
      %717 = vmatprep.subr.mxu0 0.0
      %718 = vmatpush1.msra.mxu0 0.0
      %719 = vmatprep.subr.mxu0 0.0
      %720 = vmatpush1.msra.mxu0 0.0
      %721 = vmatprep.subr.mxu0 0.0
      %722 = vmatpush1.msra.mxu0 0.0
      %723 = vmatprep.subr.mxu0 0.0
      %724 = vmatpush1.msra.mxu0 0.0
      %725 = vmatprep.subr.mxu0 0.0
      %726 = vmatpush1.msra.mxu0 0.0
      %727 = vmatprep.subr.mxu0 0.0
      %728 = vmatpush1.msra.mxu0 0.0
      %729 = vmatprep.subr.mxu0 0.0
      %730 = vmatpush1.msra.mxu0 0.0
      %731 = vmatprep.mubr.f32.mxu0 0.0
      %732 = vmatmul.mubr.f32.gmra.mrb[0].mxu0 %v501
      %v733 = vpop.f32.mrb[0].mxu0
      %v734 = vadd.f32 13.5, %v733
      %v735 = vpop.f32.mrb[0].mxu0
      %v736 = vadd.f32 13.5, %v735
      %737 = vdwg.mxu0
      %738 = vmatprep.subr.mxu0 0.0
      %739 = vmatpush1.msra.mxu0 %v523
      %740 = vmatprep.subr.mxu0 0.0
      %741 = vmatpush1.msra.mxu0 0.0
      %742 = vmatprep.subr.mxu0 0.0
      %743 = vmatpush1.msra.mxu0 0.0
      %744 = vmatprep.subr.mxu0 0.0
      %745 = vmatpush1.msra.mxu0 0.0
      %746 = vmatprep.subr.mxu0 0.0
      %747 = vmatpush1.msra.mxu0 0.0
      %748 = vmatprep.subr.mxu0 0.0
      %749 = vmatpush1.msra.mxu0 0.0
      %750 = vmatprep.subr.mxu0 0.0
      %751 = vmatpush1.msra.mxu0 0.0
      %752 = vmatprep.subr.mxu0 0.0
      %753 = vmatpush1.msra.mxu0 0.0
      %754 = vmatprep.subr.mxu0 0.0
      %755 = vmatpush1.msra.mxu0 0.0
      %756 = vmatprep.subr.mxu0 0.0
      %757 = vmatpush1.msra.mxu0 0.0
      %758 = vmatprep.subr.mxu0 0.0
      %759 = vmatpush1.msra.mxu0 0.0
      %760 = vmatprep.subr.mxu0 0.0
      %761 = vmatpush1.msra.mxu0 0.0
      %762 = vmatprep.subr.mxu0 0.0
      %763 = vmatpush1.msra.mxu0 0.0
      %764 = vmatprep.subr.mxu0 0.0
      %765 = vmatpush1.msra.mxu0 0.0
      %766 = vmatprep.subr.mxu0 0.0
      %767 = vmatpush1.msra.mxu0 0.0
      %768 = vmatprep.subr.mxu0 0.0
      %769 = vmatpush1.msra.mxu0 0.0
      %770 = vmatprep.subr.mxu0 0.0
      %771 = vmatpush1.msra.mxu0 0.0
      %772 = vmatprep.subr.mxu0 0.0
      %773 = vmatpush1.msra.mxu0 0.0
      %774 = vmatprep.subr.mxu0 0.0
      %775 = vmatpush1.msra.mxu0 0.0
      %776 = vmatprep.subr.mxu0 0.0
      %777 = vmatpush1.msra.mxu0 0.0
      %778 = vmatprep.subr.mxu0 0.0
      %779 = vmatpush1.msra.mxu0 0.0
      %780 = vmatprep.subr.mxu0 0.0
      %781 = vmatpush1.msra.mxu0 0.0
      %782 = vmatprep.subr.mxu0 0.0
      %783 = vmatpush1.msra.mxu0 0.0
      %784 = vmatprep.subr.mxu0 0.0
      %785 = vmatpush1.msra.mxu0 0.0
      %786 = vmatprep.subr.mxu0 0.0
      %787 = vmatpush1.msra.mxu0 0.0
      %788 = vmatprep.subr.mxu0 0.0
      %789 = vmatpush1.msra.mxu0 0.0
      %790 = vmatprep.subr.mxu0 0.0
      %791 = vmatpush1.msra.mxu0 0.0
      %792 = vmatprep.subr.mxu0 0.0
      %793 = vmatpush1.msra.mxu0 0.0
      %794 = vmatprep.subr.mxu0 0.0
      %795 = vmatpush1.msra.mxu0 0.0
      %796 = vmatprep.subr.mxu0 0.0
      %797 = vmatpush1.msra.mxu0 0.0
      %798 = vmatprep.subr.mxu0 0.0
      %799 = vmatpush1.msra.mxu0 0.0
      %800 = vmatprep.subr.mxu0 0.0
      %801 = vmatpush1.msra.mxu0 0.0
      %802 = vmatprep.mubr.f32.mxu0 0.0
      %803 = vmatmul.mubr.f32.gmra.mrb[0].mxu0 %v501
      %v804 = vpop.f32.mrb[0].mxu0
      %v805 = vadd.f32 13.5, %v804
      %v806 = vpop.f32.mrb[0].mxu0
      %807 = vdwg.mxu0
      %v808 = vld [vmem:[%s6] sm:$0x3f]
      %v809 = vld [vmem:[%s6 + $0x8] sm:$0x3f]
      %v810 = vld [vmem:[%s6 + $0x10] sm:$0x3f]
      %v811 = vld [vmem:[%s6 + $0x18] sm:$0x3f]
      %v812 = vld [vmem:[%s6 + $0x20] sm:$0x3f]
      %v813 = vld [vmem:[%s6 + $0x28] sm:$0x3f]
      %v814 = vld [vmem:[%s6 + $0x30] sm:$0x3f]
      %v816 = vsel %vm503, %v808, 0
      %v819 = vsel %vm503, %v809, 0
      %v822 = vsel %vm503, %v810, 0
      %v825 = vsel %vm503, %v811, 0
      %v828 = vsel %vm503, %v812, 0
      %v831 = vsel %vm503, %v813, 0
      %v834 = vsel %vm503, %v814, 0
      %836 = vmatprep.subr.mxu0 %v819
      %837 = vmatpush1.msra.mxu0 %v816
      %838 = vmatprep.subr.mxu0 0.0
      %839 = vmatpush1.msra.mxu0 0.0
      %840 = vmatprep.subr.mxu0 0.0
      %841 = vmatpush1.msra.mxu0 0.0
      %842 = vmatprep.subr.mxu0 0.0
      %843 = vmatpush1.msra.mxu0 0.0
      %844 = vmatprep.subr.mxu0 0.0
      %845 = vmatpush1.msra.mxu0 0.0
      %846 = vmatprep.subr.mxu0 0.0
      %847 = vmatpush1.msra.mxu0 0.0
      %848 = vmatprep.subr.mxu0 0.0
      %849 = vmatpush1.msra.mxu0 0.0
      %850 = vmatprep.subr.mxu0 0.0
      %851 = vmatpush1.msra.mxu0 0.0
      %852 = vmatprep.subr.mxu0 0.0
      %853 = vmatpush1.msra.mxu0 0.0
      %854 = vmatprep.subr.mxu0 0.0
      %855 = vmatpush1.msra.mxu0 0.0
      %856 = vmatprep.subr.mxu0 0.0
      %857 = vmatpush1.msra.mxu0 0.0
      %858 = vmatprep.subr.mxu0 0.0
      %859 = vmatpush1.msra.mxu0 0.0
      %860 = vmatprep.subr.mxu0 0.0
      %861 = vmatpush1.msra.mxu0 0.0
      %862 = vmatprep.subr.mxu0 0.0
      %863 = vmatpush1.msra.mxu0 0.0
      %864 = vmatprep.subr.mxu0 0.0
      %865 = vmatpush1.msra.mxu0 0.0
      %866 = vmatprep.subr.mxu0 0.0
      %867 = vmatpush1.msra.mxu0 0.0
      %868 = vmatprep.subr.mxu0 0.0
      %869 = vmatpush1.msra.mxu0 0.0
      %870 = vmatprep.subr.mxu0 0.0
      %871 = vmatpush1.msra.mxu0 0.0
      %872 = vmatprep.subr.mxu0 0.0
      %873 = vmatpush1.msra.mxu0 0.0
      %874 = vmatprep.subr.mxu0 0.0
      %875 = vmatpush1.msra.mxu0 0.0
      %876 = vmatprep.subr.mxu0 0.0
      %877 = vmatpush1.msra.mxu0 0.0
      %878 = vmatprep.subr.mxu0 0.0
      %879 = vmatpush1.msra.mxu0 0.0
      %880 = vmatprep.subr.mxu0 0.0
      %881 = vmatpush1.msra.mxu0 0.0
      %882 = vmatprep.subr.mxu0 0.0
      %883 = vmatpush1.msra.mxu0 0.0
      %884 = vmatprep.subr.mxu0 0.0
      %885 = vmatpush1.msra.mxu0 0.0
      %886 = vmatprep.subr.mxu0 0.0
      %887 = vmatpush1.msra.mxu0 0.0
      %888 = vmatprep.subr.mxu0 0.0
      %889 = vmatpush1.msra.mxu0 0.0
      %890 = vmatprep.subr.mxu0 0.0
      %891 = vmatpush1.msra.mxu0 0.0
      %892 = vmatprep.subr.mxu0 0.0
      %893 = vmatpush1.msra.mxu0 0.0
      %894 = vmatprep.subr.mxu0 0.0
      %895 = vmatpush1.msra.mxu0 0.0
      %896 = vmatprep.subr.mxu0 0.0
      %897 = vmatpush1.msra.mxu0 0.0
      %898 = vmatprep.subr.mxu0 0.0
      %899 = vmatpush1.msra.mxu0 0.0
      %900 = vmatprep.mubr.f32.mxu0 0.0
      %901 = vmatmul.mubr.f32.gmra.mrb[0].mxu0 %v501
      %v902 = vpop.f32.mrb[0].mxu0
      %v903 = vadd.f32 13.5, %v902
      %v904 = vpop.f32.mrb[0].mxu0
      %v905 = vadd.f32 13.5, %v904
      %906 = vdwg.mxu0
      %907 = vmatprep.subr.mxu0 %v825
      %908 = vmatpush1.msra.mxu0 %v822
      %909 = vmatprep.subr.mxu0 0.0
      %910 = vmatpush1.msra.mxu0 0.0
      %911 = vmatprep.subr.mxu0 0.0
      %912 = vmatpush1.msra.mxu0 0.0
      %913 = vmatprep.subr.mxu0 0.0
      %914 = vmatpush1.msra.mxu0 0.0
      %915 = vmatprep.subr.mxu0 0.0
      %916 = vmatpush1.msra.mxu0 0.0
      %917 = vmatprep.subr.mxu0 0.0
      %918 = vmatpush1.msra.mxu0 0.0
      %919 = vmatprep.subr.mxu0 0.0
      %920 = vmatpush1.msra.mxu0 0.0
      %921 = vmatprep.subr.mxu0 0.0
      %922 = vmatpush1.msra.mxu0 0.0
      %923 = vmatprep.subr.mxu0 0.0
      %924 = vmatpush1.msra.mxu0 0.0
      %925 = vmatprep.subr.mxu0 0.0
      %926 = vmatpush1.msra.mxu0 0.0
      %927 = vmatprep.subr.mxu0 0.0
      %928 = vmatpush1.msra.mxu0 0.0
      %929 = vmatprep.subr.mxu0 0.0
      %930 = vmatpush1.msra.mxu0 0.0
      %931 = vmatprep.subr.mxu0 0.0
      %932 = vmatpush1.msra.mxu0 0.0
      %933 = vmatprep.subr.mxu0 0.0
      %934 = vmatpush1.msra.mxu0 0.0
      %935 = vmatprep.subr.mxu0 0.0
      %936 = vmatpush1.msra.mxu0 0.0
      %937 = vmatprep.subr.mxu0 0.0
      %938 = vmatpush1.msra.mxu0 0.0
      %939 = vmatprep.subr.mxu0 0.0
      %940 = vmatpush1.msra.mxu0 0.0
      %941 = vmatprep.subr.mxu0 0.0
      %942 = vmatpush1.msra.mxu0 0.0
      %943 = vmatprep.subr.mxu0 0.0
      %944 = vmatpush1.msra.mxu0 0.0
      %945 = vmatprep.subr.mxu0 0.0
      %946 = vmatpush1.msra.mxu0 0.0
      %947 = vmatprep.subr.mxu0 0.0
      %948 = vmatpush1.msra.mxu0 0.0
      %949 = vmatprep.subr.mxu0 0.0
      %950 = vmatpush1.msra.mxu0 0.0
      %951 = vmatprep.subr.mxu0 0.0
      %952 = vmatpush1.msra.mxu0 0.0
      %953 = vmatprep.subr.mxu0 0.0
      %954 = vmatpush1.msra.mxu0 0.0
      %955 = vmatprep.subr.mxu0 0.0
      %956 = vmatpush1.msra.mxu0 0.0
      %957 = vmatprep.subr.mxu0 0.0
      %958 = vmatpush1.msra.mxu0 0.0
      %959 = vmatprep.subr.mxu0 0.0
      %960 = vmatpush1.msra.mxu0 0.0
      %961 = vmatprep.subr.mxu0 0.0
      %962 = vmatpush1.msra.mxu0 0.0
      %963 = vmatprep.subr.mxu0 0.0
      %964 = vmatpush1.msra.mxu0 0.0
      %965 = vmatprep.subr.mxu0 0.0
      %966 = vmatpush1.msra.mxu0 0.0
      %967 = vmatprep.subr.mxu0 0.0
      %968 = vmatpush1.msra.mxu0 0.0
      %969 = vmatprep.subr.mxu0 0.0
      %970 = vmatpush1.msra.mxu0 0.0
      %971 = vmatprep.mubr.f32.mxu0 0.0
      %972 = vmatmul.mubr.f32.gmra.mrb[0].mxu0 %v501
      %v973 = vpop.f32.mrb[0].mxu0
      %v974 = vadd.f32 13.5, %v973
      %v975 = vpop.f32.mrb[0].mxu0
      %v976 = vadd.f32 13.5, %v975
      %977 = vdwg.mxu0
      %978 = vmatprep.subr.mxu0 %v831
      %979 = vmatpush1.msra.mxu0 %v828
      %980 = vmatprep.subr.mxu0 0.0
      %981 = vmatpush1.msra.mxu0 0.0
      %982 = vmatprep.subr.mxu0 0.0
      %983 = vmatpush1.msra.mxu0 0.0
      %984 = vmatprep.subr.mxu0 0.0
      %985 = vmatpush1.msra.mxu0 0.0
      %986 = vmatprep.subr.mxu0 0.0
      %987 = vmatpush1.msra.mxu0 0.0
      %988 = vmatprep.subr.mxu0 0.0
      %989 = vmatpush1.msra.mxu0 0.0
      %990 = vmatprep.subr.mxu0 0.0
      %991 = vmatpush1.msra.mxu0 0.0
      %992 = vmatprep.subr.mxu0 0.0
      %993 = vmatpush1.msra.mxu0 0.0
      %994 = vmatprep.subr.mxu0 0.0
      %995 = vmatpush1.msra.mxu0 0.0
      %996 = vmatprep.subr.mxu0 0.0
      %997 = vmatpush1.msra.mxu0 0.0
      %998 = vmatprep.subr.mxu0 0.0
      %999 = vmatpush1.msra.mxu0 0.0
      %1000 = vmatprep.subr.mxu0 0.0
      %1001 = vmatpush1.msra.mxu0 0.0
      %1002 = vmatprep.subr.mxu0 0.0
      %1003 = vmatpush1.msra.mxu0 0.0
      %1004 = vmatprep.subr.mxu0 0.0
      %1005 = vmatpush1.msra.mxu0 0.0
      %1006 = vmatprep.subr.mxu0 0.0
      %1007 = vmatpush1.msra.mxu0 0.0
      %1008 = vmatprep.subr.mxu0 0.0
      %1009 = vmatpush1.msra.mxu0 0.0
      %1010 = vmatprep.subr.mxu0 0.0
      %1011 = vmatpush1.msra.mxu0 0.0
      %1012 = vmatprep.subr.mxu0 0.0
      %1013 = vmatpush1.msra.mxu0 0.0
      %1014 = vmatprep.subr.mxu0 0.0
      %1015 = vmatpush1.msra.mxu0 0.0
      %1016 = vmatprep.subr.mxu0 0.0
      %1017 = vmatpush1.msra.mxu0 0.0
      %1018 = vmatprep.subr.mxu0 0.0
      %1019 = vmatpush1.msra.mxu0 0.0
      %1020 = vmatprep.subr.mxu0 0.0
      %1021 = vmatpush1.msra.mxu0 0.0
      %1022 = vmatprep.subr.mxu0 0.0
      %1023 = vmatpush1.msra.mxu0 0.0
      %1024 = vmatprep.subr.mxu0 0.0
      %1025 = vmatpush1.msra.mxu0 0.0
      %1026 = vmatprep.subr.mxu0 0.0
      %1027 = vmatpush1.msra.mxu0 0.0
      %1028 = vmatprep.subr.mxu0 0.0
      %1029 = vmatpush1.msra.mxu0 0.0
      %1030 = vmatprep.subr.mxu0 0.0
      %1031 = vmatpush1.msra.mxu0 0.0
      %1032 = vmatprep.subr.mxu0 0.0
      %1033 = vmatpush1.msra.mxu0 0.0
      %1034 = vmatprep.subr.mxu0 0.0
      %1035 = vmatpush1.msra.mxu0 0.0
      %1036 = vmatprep.subr.mxu0 0.0
      %1037 = vmatpush1.msra.mxu0 0.0
      %1038 = vmatprep.subr.mxu0 0.0
      %1039 = vmatpush1.msra.mxu0 0.0
      %1040 = vmatprep.subr.mxu0 0.0
      %1041 = vmatpush1.msra.mxu0 0.0
      %1042 = vmatprep.mubr.f32.mxu0 0.0
      %1043 = vmatmul.mubr.f32.gmra.mrb[0].mxu0 %v501
      %v1044 = vpop.f32.mrb[0].mxu0
      %v1045 = vadd.f32 13.5, %v1044
      %v1046 = vpop.f32.mrb[0].mxu0
      %v1047 = vadd.f32 13.5, %v1046
      %1048 = vdwg.mxu0
      %1049 = vmatprep.subr.mxu0 0.0
      %1050 = vmatpush1.msra.mxu0 %v834
      %1051 = vmatprep.subr.mxu0 0.0
      %1052 = vmatpush1.msra.mxu0 0.0
      %1053 = vmatprep.subr.mxu0 0.0
      %1054 = vmatpush1.msra.mxu0 0.0
      %1055 = vmatprep.subr.mxu0 0.0
      %1056 = vmatpush1.msra.mxu0 0.0
      %1057 = vmatprep.subr.mxu0 0.0
      %1058 = vmatpush1.msra.mxu0 0.0
      %1059 = vmatprep.subr.mxu0 0.0
      %1060 = vmatpush1.msra.mxu0 0.0
      %1061 = vmatprep.subr.mxu0 0.0
      %1062 = vmatpush1.msra.mxu0 0.0
      %1063 = vmatprep.subr.mxu0 0.0
      %1064 = vmatpush1.msra.mxu0 0.0
      %1065 = vmatprep.subr.mxu0 0.0
      %1066 = vmatpush1.msra.mxu0 0.0
      %1067 = vmatprep.subr.mxu0 0.0
      %1068 = vmatpush1.msra.mxu0 0.0
      %1069 = vmatprep.subr.mxu0 0.0
      %1070 = vmatpush1.msra.mxu0 0.0
      %1071 = vmatprep.subr.mxu0 0.0
      %1072 = vmatpush1.msra.mxu0 0.0
      %1073 = vmatprep.subr.mxu0 0.0
      %1074 = vmatpush1.msra.mxu0 0.0
      %1075 = vmatprep.subr.mxu0 0.0
      %1076 = vmatpush1.msra.mxu0 0.0
      %1077 = vmatprep.subr.mxu0 0.0
      %1078 = vmatpush1.msra.mxu0 0.0
      %1079 = vmatprep.subr.mxu0 0.0
      %1080 = vmatpush1.msra.mxu0 0.0
      %1081 = vmatprep.subr.mxu0 0.0
      %1082 = vmatpush1.msra.mxu0 0.0
      %1083 = vmatprep.subr.mxu0 0.0
      %1084 = vmatpush1.msra.mxu0 0.0
      %1085 = vmatprep.subr.mxu0 0.0
      %1086 = vmatpush1.msra.mxu0 0.0
      %1087 = vmatprep.subr.mxu0 0.0
      %1088 = vmatpush1.msra.mxu0 0.0
      %1089 = vmatprep.subr.mxu0 0.0
      %1090 = vmatpush1.msra.mxu0 0.0
      %1091 = vmatprep.subr.mxu0 0.0
      %1092 = vmatpush1.msra.mxu0 0.0
      %1093 = vmatprep.subr.mxu0 0.0
      %1094 = vmatpush1.msra.mxu0 0.0
      %1095 = vmatprep.subr.mxu0 0.0
      %1096 = vmatpush1.msra.mxu0 0.0
      %1097 = vmatprep.subr.mxu0 0.0
      %1098 = vmatpush1.msra.mxu0 0.0
      %1099 = vmatprep.subr.mxu0 0.0
      %1100 = vmatpush1.msra.mxu0 0.0
      %1101 = vmatprep.subr.mxu0 0.0
      %1102 = vmatpush1.msra.mxu0 0.0
      %1103 = vmatprep.subr.mxu0 0.0
      %1104 = vmatpush1.msra.mxu0 0.0
      %1105 = vmatprep.subr.mxu0 0.0
      %1106 = vmatpush1.msra.mxu0 0.0
      %1107 = vmatprep.subr.mxu0 0.0
      %1108 = vmatpush1.msra.mxu0 0.0
      %1109 = vmatprep.subr.mxu0 0.0
      %1110 = vmatpush1.msra.mxu0 0.0
      %1111 = vmatprep.subr.mxu0 0.0
      %1112 = vmatpush1.msra.mxu0 0.0
      %1113 = vmatprep.mubr.f32.mxu0 0.0
      %1114 = vmatmul.mubr.f32.gmra.mrb[0].mxu0 %v501
      %v1115 = vpop.f32.mrb[0].mxu0
      %v1116 = vadd.f32 13.5, %v1115
      %v1117 = vpop.f32.mrb[0].mxu0
      %1118 = vdwg.mxu0
      %v1119 = vlaneseq
      %v1120 = vshrl.u32 %v1119, 7
      %v1121 = vadd.s32 %v1120, 8
      %v1122 = vadd.s32 %v1120, 16
      %v1123 = vadd.s32 %v1120, 24
      %v1124 = vcvt.s32.f32 %v1120
      %v1125 = vcvt.s32.f32 %v1121
      %v1126 = vcvt.s32.f32 %v1122
      %v1127 = vcvt.s32.f32 %v1123
      %v1128 = vlaneseq
      %v1129 = vshrl.u32 %v1128, 7
      %v1130 = vsub.s32 0, %v1129
      %v1131 = vrot.slane %v592, %v1130
      %v1132 = vlaneseq
      %v1133 = vshrl.u32 %v1132, 7
      %v1134 = vsub.s32 0, %v1133
      %v1135 = vrot.slane %v594, %v1134
      %v1136 = vlaneseq
      %v1137 = vshrl.u32 %v1136, 7
      %v1138 = vsub.s32 0, %v1137
      %v1139 = vrot.slane %v663, %v1138
      %v1140 = vlaneseq
      %v1141 = vshrl.u32 %v1140, 7
      %v1142 = vsub.s32 0, %v1141
      %v1143 = vrot.slane %v665, %v1142
      %v1144 = vlaneseq
      %v1145 = vshrl.u32 %v1144, 7
      %v1146 = vsub.s32 0, %v1145
      %v1147 = vrot.slane %v734, %v1146
      %v1148 = vlaneseq
      %v1149 = vshrl.u32 %v1148, 7
      %v1150 = vsub.s32 0, %v1149
      %v1151 = vrot.slane %v736, %v1150
      %v1152 = vlaneseq
      %v1153 = vshrl.u32 %v1152, 7
      %v1154 = vsub.s32 0, %v1153
      %v1155 = vrot.slane %v805, %v1154
      %v1156 = vsub.f32 %v1124, %v1131
      %v1157 = vsub.f32 %v1124, %v1135
      %v1158 = vsub.f32 %v1124, %v1139
      %v1159 = vsub.f32 %v1124, %v1143
      %v1160 = vsub.f32 %v1124, %v1147
      %v1161 = vsub.f32 %v1124, %v1151
      %v1162 = vsub.f32 %v1124, %v1155
      %v1163 = vsub.f32 %v1125, %v1131
      %v1164 = vsub.f32 %v1125, %v1135
      %v1165 = vsub.f32 %v1125, %v1139
      %v1166 = vsub.f32 %v1125, %v1143
      %v1167 = vsub.f32 %v1125, %v1147
      %v1168 = vsub.f32 %v1125, %v1151
      %v1169 = vsub.f32 %v1125, %v1155
      %v1170 = vsub.f32 %v1126, %v1131
      %v1171 = vsub.f32 %v1126, %v1135
      %v1172 = vsub.f32 %v1126, %v1139
      %v1173 = vsub.f32 %v1126, %v1143
      %v1174 = vsub.f32 %v1126, %v1147
      %v1175 = vsub.f32 %v1126, %v1151
      %v1176 = vsub.f32 %v1126, %v1155
      %v1177 = vsub.f32 %v1127, %v1131
      %v1178 = vsub.f32 %v1127, %v1135
      %v1179 = vsub.f32 %v1127, %v1139
      %v1180 = vsub.f32 %v1127, %v1143
      %v1181 = vsub.f32 %v1127, %v1147
      %v1182 = vsub.f32 %v1127, %v1151
      %v1183 = vsub.f32 %v1127, %v1155
      %v1184 = vand.u32 2147483647, %v1156
      %v1185 = vand.u32 2147483647, %v1157
      %v1186 = vand.u32 2147483647, %v1158
      %v1187 = vand.u32 2147483647, %v1159
      %v1188 = vand.u32 2147483647, %v1160
      %v1189 = vand.u32 2147483647, %v1161
      %v1190 = vand.u32 2147483647, %v1162
      %v1191 = vand.u32 2147483647, %v1163
      %v1192 = vand.u32 2147483647, %v1164
      %v1193 = vand.u32 2147483647, %v1165
      %v1194 = vand.u32 2147483647, %v1166
      %v1195 = vand.u32 2147483647, %v1167
      %v1196 = vand.u32 2147483647, %v1168
      %v1197 = vand.u32 2147483647, %v1169
      %v1198 = vand.u32 2147483647, %v1170
      %v1199 = vand.u32 2147483647, %v1171
      %v1200 = vand.u32 2147483647, %v1172
      %v1201 = vand.u32 2147483647, %v1173
      %v1202 = vand.u32 2147483647, %v1174
      %v1203 = vand.u32 2147483647, %v1175
      %v1204 = vand.u32 2147483647, %v1176
      %v1205 = vand.u32 2147483647, %v1177
      %v1206 = vand.u32 2147483647, %v1178
      %v1207 = vand.u32 2147483647, %v1179
      %v1208 = vand.u32 2147483647, %v1180
      %v1209 = vand.u32 2147483647, %v1181
      %v1210 = vand.u32 2147483647, %v1182
      %v1211 = vand.u32 2147483647, %v1183
      %v1212 = vsub.f32 1.0, %v1184
      %v1213 = vsub.f32 1.0, %v1185
      %v1214 = vsub.f32 1.0, %v1186
      %v1215 = vsub.f32 1.0, %v1187
      %v1216 = vsub.f32 1.0, %v1188
      %v1217 = vsub.f32 1.0, %v1189
      %v1218 = vsub.f32 1.0, %v1190
      %v1219 = vsub.f32 1.0, %v1191
      %v1220 = vsub.f32 1.0, %v1192
      %v1221 = vsub.f32 1.0, %v1193
      %v1222 = vsub.f32 1.0, %v1194
      %v1223 = vsub.f32 1.0, %v1195
      %v1224 = vsub.f32 1.0, %v1196
      %v1225 = vsub.f32 1.0, %v1197
      %v1226 = vsub.f32 1.0, %v1198
      %v1227 = vsub.f32 1.0, %v1199
      %v1228 = vsub.f32 1.0, %v1200
      %v1229 = vsub.f32 1.0, %v1201
      %v1230 = vsub.f32 1.0, %v1202
      %v1231 = vsub.f32 1.0, %v1203
      %v1232 = vsub.f32 1.0, %v1204
      %v1233 = vsub.f32 1.0, %v1205
      %v1234 = vsub.f32 1.0, %v1206
      %v1235 = vsub.f32 1.0, %v1207
      %v1236 = vsub.f32 1.0, %v1208
      %v1237 = vsub.f32 1.0, %v1209
      %v1238 = vsub.f32 1.0, %v1210
      %v1239 = vsub.f32 1.0, %v1211
      %v1240 = vmax.f32 %v1212, 0.0
      %v1241 = vmax.f32 %v1213, 0.0
      %v1242 = vmax.f32 %v1214, 0.0
      %v1243 = vmax.f32 %v1215, 0.0
      %v1244 = vmax.f32 %v1216, 0.0
      %v1245 = vmax.f32 %v1217, 0.0
      %v1246 = vmax.f32 %v1218, 0.0
      %v1247 = vmax.f32 %v1219, 0.0
      %v1248 = vmax.f32 %v1220, 0.0
      %v1249 = vmax.f32 %v1221, 0.0
      %v1250 = vmax.f32 %v1222, 0.0
      %v1251 = vmax.f32 %v1223, 0.0
      %v1252 = vmax.f32 %v1224, 0.0
      %v1253 = vmax.f32 %v1225, 0.0
      %v1254 = vmax.f32 %v1226, 0.0
      %v1255 = vmax.f32 %v1227, 0.0
      %v1256 = vmax.f32 %v1228, 0.0
      %v1257 = vmax.f32 %v1229, 0.0
      %v1258 = vmax.f32 %v1230, 0.0
      %v1259 = vmax.f32 %v1231, 0.0
      %v1260 = vmax.f32 %v1232, 0.0
      %v1261 = vmax.f32 %v1233, 0.0
      %v1262 = vmax.f32 %v1234, 0.0
      %v1263 = vmax.f32 %v1235, 0.0
      %v1264 = vmax.f32 %v1236, 0.0
      %v1265 = vmax.f32 %v1237, 0.0
      %v1266 = vmax.f32 %v1238, 0.0
      %v1267 = vmax.f32 %v1239, 0.0
      %v1268 = vlaneseq
      %v1269 = vshrl.u32 %v1268, 7
      %v1270 = vsub.s32 0, %v1269
      %v1271 = vrot.slane %v903, %v1270
      %v1272 = vlaneseq
      %v1273 = vshrl.u32 %v1272, 7
      %v1274 = vsub.s32 0, %v1273
      %v1275 = vrot.slane %v905, %v1274
      %v1276 = vlaneseq
      %v1277 = vshrl.u32 %v1276, 7
      %v1278 = vsub.s32 0, %v1277
      %v1279 = vrot.slane %v974, %v1278
      %v1280 = vlaneseq
      %v1281 = vshrl.u32 %v1280, 7
      %v1282 = vsub.s32 0, %v1281
      %v1283 = vrot.slane %v976, %v1282
      %v1284 = vlaneseq
      %v1285 = vshrl.u32 %v1284, 7
      %v1286 = vsub.s32 0, %v1285
      %v1287 = vrot.slane %v1045, %v1286
      %v1288 = vlaneseq
      %v1289 = vshrl.u32 %v1288, 7
      %v1290 = vsub.s32 0, %v1289
      %v1291 = vrot.slane %v1047, %v1290
      %v1292 = vlaneseq
      %v1293 = vshrl.u32 %v1292, 7
      %v1294 = vsub.s32 0, %v1293
      %v1295 = vrot.slane %v1116, %v1294
      %v1296 = vsub.f32 %v1124, %v1271
      %v1297 = vsub.f32 %v1124, %v1275
      %v1298 = vsub.f32 %v1124, %v1279
      %v1299 = vsub.f32 %v1124, %v1283
      %v1300 = vsub.f32 %v1124, %v1287
      %v1301 = vsub.f32 %v1124, %v1291
      %v1302 = vsub.f32 %v1124, %v1295
      %v1303 = vsub.f32 %v1125, %v1271
      %v1304 = vsub.f32 %v1125, %v1275
      %v1305 = vsub.f32 %v1125, %v1279
      %v1306 = vsub.f32 %v1125, %v1283
      %v1307 = vsub.f32 %v1125, %v1287
      %v1308 = vsub.f32 %v1125, %v1291
      %v1309 = vsub.f32 %v1125, %v1295
      %v1310 = vsub.f32 %v1126, %v1271
      %v1311 = vsub.f32 %v1126, %v1275
      %v1312 = vsub.f32 %v1126, %v1279
      %v1313 = vsub.f32 %v1126, %v1283
      %v1314 = vsub.f32 %v1126, %v1287
      %v1315 = vsub.f32 %v1126, %v1291
      %v1316 = vsub.f32 %v1126, %v1295
      %v1317 = vsub.f32 %v1127, %v1271
      %v1318 = vsub.f32 %v1127, %v1275
      %v1319 = vsub.f32 %v1127, %v1279
      %v1320 = vsub.f32 %v1127, %v1283
      %v1321 = vsub.f32 %v1127, %v1287
      %v1322 = vsub.f32 %v1127, %v1291
      %v1323 = vsub.f32 %v1127, %v1295
      %v1324 = vand.u32 2147483647, %v1296
      %v1325 = vand.u32 2147483647, %v1297
      %v1326 = vand.u32 2147483647, %v1298
      %v1327 = vand.u32 2147483647, %v1299
      %v1328 = vand.u32 2147483647, %v1300
      %v1329 = vand.u32 2147483647, %v1301
      %v1330 = vand.u32 2147483647, %v1302
      %v1331 = vand.u32 2147483647, %v1303
      %v1332 = vand.u32 2147483647, %v1304
      %v1333 = vand.u32 2147483647, %v1305
      %v1334 = vand.u32 2147483647, %v1306
      %v1335 = vand.u32 2147483647, %v1307
      %v1336 = vand.u32 2147483647, %v1308
      %v1337 = vand.u32 2147483647, %v1309
      %v1338 = vand.u32 2147483647, %v1310
      %v1339 = vand.u32 2147483647, %v1311
      %v1340 = vand.u32 2147483647, %v1312
      %v1341 = vand.u32 2147483647, %v1313
      %v1342 = vand.u32 2147483647, %v1314
      %v1343 = vand.u32 2147483647, %v1315
      %v1344 = vand.u32 2147483647, %v1316
      %v1345 = vand.u32 2147483647, %v1317
      %v1346 = vand.u32 2147483647, %v1318
      %v1347 = vand.u32 2147483647, %v1319
      %v1348 = vand.u32 2147483647, %v1320
      %v1349 = vand.u32 2147483647, %v1321
      %v1350 = vand.u32 2147483647, %v1322
      %v1351 = vand.u32 2147483647, %v1323
      %v1352 = vsub.f32 1.0, %v1324
      %v1353 = vsub.f32 1.0, %v1325
      %v1354 = vsub.f32 1.0, %v1326
      %v1355 = vsub.f32 1.0, %v1327
      %v1356 = vsub.f32 1.0, %v1328
      %v1357 = vsub.f32 1.0, %v1329
      %v1358 = vsub.f32 1.0, %v1330
      %v1359 = vsub.f32 1.0, %v1331
      %v1360 = vsub.f32 1.0, %v1332
      %v1361 = vsub.f32 1.0, %v1333
      %v1362 = vsub.f32 1.0, %v1334
      %v1363 = vsub.f32 1.0, %v1335
      %v1364 = vsub.f32 1.0, %v1336
      %v1365 = vsub.f32 1.0, %v1337
      %v1366 = vsub.f32 1.0, %v1338
      %v1367 = vsub.f32 1.0, %v1339
      %v1368 = vsub.f32 1.0, %v1340
      %v1369 = vsub.f32 1.0, %v1341
      %v1370 = vsub.f32 1.0, %v1342
      %v1371 = vsub.f32 1.0, %v1343
      %v1372 = vsub.f32 1.0, %v1344
      %v1373 = vsub.f32 1.0, %v1345
      %v1374 = vsub.f32 1.0, %v1346
      %v1375 = vsub.f32 1.0, %v1347
      %v1376 = vsub.f32 1.0, %v1348
      %v1377 = vsub.f32 1.0, %v1349
      %v1378 = vsub.f32 1.0, %v1350
      %v1379 = vsub.f32 1.0, %v1351
      %v1380 = vmax.f32 %v1352, 0.0
      %v1381 = vmax.f32 %v1353, 0.0
      %v1382 = vmax.f32 %v1354, 0.0
      %v1383 = vmax.f32 %v1355, 0.0
      %v1384 = vmax.f32 %v1356, 0.0
      %v1385 = vmax.f32 %v1357, 0.0
      %v1386 = vmax.f32 %v1358, 0.0
      %v1387 = vmax.f32 %v1359, 0.0
      %v1388 = vmax.f32 %v1360, 0.0
      %v1389 = vmax.f32 %v1361, 0.0
      %v1390 = vmax.f32 %v1362, 0.0
      %v1391 = vmax.f32 %v1363, 0.0
      %v1392 = vmax.f32 %v1364, 0.0
      %v1393 = vmax.f32 %v1365, 0.0
      %v1394 = vmax.f32 %v1366, 0.0
      %v1395 = vmax.f32 %v1367, 0.0
      %v1396 = vmax.f32 %v1368, 0.0
      %v1397 = vmax.f32 %v1369, 0.0
      %v1398 = vmax.f32 %v1370, 0.0
      %v1399 = vmax.f32 %v1371, 0.0
      %v1400 = vmax.f32 %v1372, 0.0
      %v1401 = vmax.f32 %v1373, 0.0
      %v1402 = vmax.f32 %v1374, 0.0
      %v1403 = vmax.f32 %v1375, 0.0
      %v1404 = vmax.f32 %v1376, 0.0
      %v1405 = vmax.f32 %v1377, 0.0
      %v1406 = vmax.f32 %v1378, 0.0
      %v1407 = vmax.f32 %v1379, 0.0
      %v1408 = vld [vmem:[%s314] sm:$0xff]
      %v1409 = vld [vmem:[%s314 + $0x8] sm:$0xff]
      %v1410 = vld [vmem:[%s314 + $0x10] sm:$0xff]
      %v1411 = vld [vmem:[%s314 + $0x18] sm:$0xf]
      %vm1412 = vcmask 228352
      %v1414 = vsel %vm1412, %v1408, 0
      %v1417 = vsel %vm1412, %v1409, 0
      %v1420 = vsel %vm1412, %v1410, 0
      %v1423 = vsel %vm1412, %v1411, 0
      %vm1425 = vcmask 1043456
      %v1427 = vsel %vm1425, %v1261, 0
      %v1430 = vsel %vm1425, %v1262, 0
      %v1433 = vsel %vm1425, %v1263, 0
      %v1436 = vsel %vm1425, %v1264, 0
      %v1439 = vsel %vm1425, %v1265, 0
      %v1442 = vsel %vm1425, %v1266, 0
      %v1445 = vsel %vm1425, %v1267, 0
      %1447 = vmatprep.subr.mxu0 %v1241
      %1448 = vmatpush1.msra.mxu0 %v1240
      %1449 = vmatprep.subr.mxu0 %v1248
      %1450 = vmatpush1.msra.mxu0 %v1247
      %1451 = vmatprep.subr.mxu0 %v1255
      %1452 = vmatpush1.msra.mxu0 %v1254
      %1453 = vmatprep.subr.mxu0 %v1430
      %1454 = vmatpush1.msra.mxu0 %v1427
      %1455 = vmatprep.subr.mxu0 0.0
      %1456 = vmatpush1.msra.mxu0 0.0
      %1457 = vmatprep.subr.mxu0 0.0
      %1458 = vmatpush1.msra.mxu0 0.0
      %1459 = vmatprep.subr.mxu0 0.0
      %1460 = vmatpush1.msra.mxu0 0.0
      %1461 = vmatprep.subr.mxu0 0.0
      %1462 = vmatpush1.msra.mxu0 0.0
      %1463 = vmatprep.subr.mxu0 0.0
      %1464 = vmatpush1.msra.mxu0 0.0
      %1465 = vmatprep.subr.mxu0 0.0
      %1466 = vmatpush1.msra.mxu0 0.0
      %1467 = vmatprep.subr.mxu0 0.0
      %1468 = vmatpush1.msra.mxu0 0.0
      %1469 = vmatprep.subr.mxu0 0.0
      %1470 = vmatpush1.msra.mxu0 0.0
      %1471 = vmatprep.subr.mxu0 0.0
      %1472 = vmatpush1.msra.mxu0 0.0
      %1473 = vmatprep.subr.mxu0 0.0
      %1474 = vmatpush1.msra.mxu0 0.0
      %1475 = vmatprep.subr.mxu0 0.0
      %1476 = vmatpush1.msra.mxu0 0.0
      %1477 = vmatprep.subr.mxu0 0.0
      %1478 = vmatpush1.msra.mxu0 0.0
      %1479 = vmatprep.subr.mxu0 0.0
      %1480 = vmatpush1.msra.mxu0 0.0
      %1481 = vmatprep.subr.mxu0 0.0
      %1482 = vmatpush1.msra.mxu0 0.0
      %1483 = vmatprep.subr.mxu0 0.0
      %1484 = vmatpush1.msra.mxu0 0.0
      %1485 = vmatprep.subr.mxu0 0.0
      %1486 = vmatpush1.msra.mxu0 0.0
      %1487 = vmatprep.subr.mxu0 0.0
      %1488 = vmatpush1.msra.mxu0 0.0
      %1489 = vmatprep.subr.mxu0 0.0
      %1490 = vmatpush1.msra.mxu0 0.0
      %1491 = vmatprep.subr.mxu0 0.0
      %1492 = vmatpush1.msra.mxu0 0.0
      %1493 = vmatprep.subr.mxu0 0.0
      %1494 = vmatpush1.msra.mxu0 0.0
      %1495 = vmatprep.subr.mxu0 0.0
      %1496 = vmatpush1.msra.mxu0 0.0
      %1497 = vmatprep.subr.mxu0 0.0
      %1498 = vmatpush1.msra.mxu0 0.0
      %1499 = vmatprep.subr.mxu0 0.0
      %1500 = vmatpush1.msra.mxu0 0.0
      %1501 = vmatprep.subr.mxu0 0.0
      %1502 = vmatpush1.msra.mxu0 0.0
      %1503 = vmatprep.subr.mxu0 0.0
      %1504 = vmatpush1.msra.mxu0 0.0
      %1505 = vmatprep.subr.mxu0 0.0
      %1506 = vmatpush1.msra.mxu0 0.0
      %1507 = vmatprep.subr.mxu0 0.0
      %1508 = vmatpush1.msra.mxu0 0.0
      %1509 = vmatprep.subr.mxu0 0.0
      %1510 = vmatpush1.msra.mxu0 0.0
      %1511 = vmatprep.mubr.f32.mxu0 0.0
      %1512 = vmatmul.mubr.f32.gmra.mrb[0].mxu0 %v1414
      %v1513 = vpop.f32.mrb[0].mxu0
      %v1514 = vadd.f32 0.0, %v1513
      %v1515 = vpop.f32.mrb[0].mxu0
      %v1516 = vadd.f32 0.0, %v1515
      %1517 = vmatprep.mubr.f32.mxu0 0.0
      %1518 = vmatmul.mubr.f32.gmra.mrb[0].mxu0 %v1417
      %v1519 = vpop.f32.mrb[0].mxu0
      %v1520 = vadd.f32 0.0, %v1519
      %v1521 = vpop.f32.mrb[0].mxu0
      %v1522 = vadd.f32 0.0, %v1521
      %1523 = vmatprep.mubr.f32.mxu0 0.0
      %1524 = vmatmul.mubr.f32.gmra.mrb[0].mxu0 %v1420
      %v1525 = vpop.f32.mrb[0].mxu0
      %v1526 = vadd.f32 0.0, %v1525
      %v1527 = vpop.f32.mrb[0].mxu0
      %v1528 = vadd.f32 0.0, %v1527
      %1529 = vmatprep.mubr.f32.mxu0 0.0
      %1530 = vmatmul.mubr.f32.gmra.mrb[0].mxu0 %v1423
      %v1531 = vpop.f32.mrb[0].mxu0
      %v1532 = vadd.f32 0.0, %v1531
      %v1533 = vpop.f32.mrb[0].mxu0
      %v1534 = vadd.f32 0.0, %v1533
      %1535 = vdwg.mxu0
      %1536 = vmatprep.subr.mxu0 %v1243
      %1537 = vmatpush1.msra.mxu0 %v1242
      %1538 = vmatprep.subr.mxu0 %v1250
      %1539 = vmatpush1.msra.mxu0 %v1249
      %1540 = vmatprep.subr.mxu0 %v1257
      %1541 = vmatpush1.msra.mxu0 %v1256
      %1542 = vmatprep.subr.mxu0 %v1436
      %1543 = vmatpush1.msra.mxu0 %v1433
      %1544 = vmatprep.subr.mxu0 0.0
      %1545 = vmatpush1.msra.mxu0 0.0
      %1546 = vmatprep.subr.mxu0 0.0
      %1547 = vmatpush1.msra.mxu0 0.0
      %1548 = vmatprep.subr.mxu0 0.0
      %1549 = vmatpush1.msra.mxu0 0.0
      %1550 = vmatprep.subr.mxu0 0.0
      %1551 = vmatpush1.msra.mxu0 0.0
      %1552 = vmatprep.subr.mxu0 0.0
      %1553 = vmatpush1.msra.mxu0 0.0
      %1554 = vmatprep.subr.mxu0 0.0
      %1555 = vmatpush1.msra.mxu0 0.0
      %1556 = vmatprep.subr.mxu0 0.0
      %1557 = vmatpush1.msra.mxu0 0.0
      %1558 = vmatprep.subr.mxu0 0.0
      %1559 = vmatpush1.msra.mxu0 0.0
      %1560 = vmatprep.subr.mxu0 0.0
      %1561 = vmatpush1.msra.mxu0 0.0
      %1562 = vmatprep.subr.mxu0 0.0
      %1563 = vmatpush1.msra.mxu0 0.0
      %1564 = vmatprep.subr.mxu0 0.0
      %1565 = vmatpush1.msra.mxu0 0.0
      %1566 = vmatprep.subr.mxu0 0.0
      %1567 = vmatpush1.msra.mxu0 0.0
      %1568 = vmatprep.subr.mxu0 0.0
      %1569 = vmatpush1.msra.mxu0 0.0
      %1570 = vmatprep.subr.mxu0 0.0
      %1571 = vmatpush1.msra.mxu0 0.0
      %1572 = vmatprep.subr.mxu0 0.0
      %1573 = vmatpush1.msra.mxu0 0.0
      %1574 = vmatprep.subr.mxu0 0.0
      %1575 = vmatpush1.msra.mxu0 0.0
      %1576 = vmatprep.subr.mxu0 0.0
      %1577 = vmatpush1.msra.mxu0 0.0
      %1578 = vmatprep.subr.mxu0 0.0
      %1579 = vmatpush1.msra.mxu0 0.0
      %1580 = vmatprep.subr.mxu0 0.0
      %1581 = vmatpush1.msra.mxu0 0.0
      %1582 = vmatprep.subr.mxu0 0.0
      %1583 = vmatpush1.msra.mxu0 0.0
      %1584 = vmatprep.subr.mxu0 0.0
      %1585 = vmatpush1.msra.mxu0 0.0
      %1586 = vmatprep.subr.mxu0 0.0
      %1587 = vmatpush1.msra.mxu0 0.0
      %1588 = vmatprep.subr.mxu0 0.0
      %1589 = vmatpush1.msra.mxu0 0.0
      %1590 = vmatprep.subr.mxu0 0.0
      %1591 = vmatpush1.msra.mxu0 0.0
      %1592 = vmatprep.subr.mxu0 0.0
      %1593 = vmatpush1.msra.mxu0 0.0
      %1594 = vmatprep.subr.mxu0 0.0
      %1595 = vmatpush1.msra.mxu0 0.0
      %1596 = vmatprep.subr.mxu0 0.0
      %1597 = vmatpush1.msra.mxu0 0.0
      %1598 = vmatprep.subr.mxu0 0.0
      %1599 = vmatpush1.msra.mxu0 0.0
      %1600 = vmatprep.mubr.f32.mxu0 0.0
      %1601 = vmatmul.mubr.f32.gmra.mrb[0].mxu0 %v1414
      %v1602 = vpop.f32.mrb[0].mxu0
      %v1603 = vadd.f32 0.0, %v1602
      %v1604 = vpop.f32.mrb[0].mxu0
      %v1605 = vadd.f32 0.0, %v1604
      %1606 = vmatprep.mubr.f32.mxu0 0.0
      %1607 = vmatmul.mubr.f32.gmra.mrb[0].mxu0 %v1417
      %v1608 = vpop.f32.mrb[0].mxu0
      %v1609 = vadd.f32 0.0, %v1608
      %v1610 = vpop.f32.mrb[0].mxu0
      %v1611 = vadd.f32 0.0, %v1610
      %1612 = vmatprep.mubr.f32.mxu0 0.0
      %1613 = vmatmul.mubr.f32.gmra.mrb[0].mxu0 %v1420
      %v1614 = vpop.f32.mrb[0].mxu0
      %v1615 = vadd.f32 0.0, %v1614
      %v1616 = vpop.f32.mrb[0].mxu0
      %v1617 = vadd.f32 0.0, %v1616
      %1618 = vmatprep.mubr.f32.mxu0 0.0
      %1619 = vmatmul.mubr.f32.gmra.mrb[0].mxu0 %v1423
      %v1620 = vpop.f32.mrb[0].mxu0
      %v1621 = vadd.f32 0.0, %v1620
      %v1622 = vpop.f32.mrb[0].mxu0
      %v1623 = vadd.f32 0.0, %v1622
      %1624 = vdwg.mxu0
      %1625 = vmatprep.subr.mxu0 %v1245
      %1626 = vmatpush1.msra.mxu0 %v1244
      %1627 = vmatprep.subr.mxu0 %v1252
      %1628 = vmatpush1.msra.mxu0 %v1251
      %1629 = vmatprep.subr.mxu0 %v1259
      %1630 = vmatpush1.msra.mxu0 %v1258
      %1631 = vmatprep.subr.mxu0 %v1442
      %1632 = vmatpush1.msra.mxu0 %v1439
      %1633 = vmatprep.subr.mxu0 0.0
      %1634 = vmatpush1.msra.mxu0 0.0
      %1635 = vmatprep.subr.mxu0 0.0
      %1636 = vmatpush1.msra.mxu0 0.0
      %1637 = vmatprep.subr.mxu0 0.0
      %1638 = vmatpush1.msra.mxu0 0.0
      %1639 = vmatprep.subr.mxu0 0.0
      %1640 = vmatpush1.msra.mxu0 0.0
      %1641 = vmatprep.subr.mxu0 0.0
      %1642 = vmatpush1.msra.mxu0 0.0
      %1643 = vmatprep.subr.mxu0 0.0
      %1644 = vmatpush1.msra.mxu0 0.0
      %1645 = vmatprep.subr.mxu0 0.0
      %1646 = vmatpush1.msra.mxu0 0.0
      %1647 = vmatprep.subr.mxu0 0.0
      %1648 = vmatpush1.msra.mxu0 0.0
      %1649 = vmatprep.subr.mxu0 0.0
      %1650 = vmatpush1.msra.mxu0 0.0
      %1651 = vmatprep.subr.mxu0 0.0
      %1652 = vmatpush1.msra.mxu0 0.0
      %1653 = vmatprep.subr.mxu0 0.0
      %1654 = vmatpush1.msra.mxu0 0.0
      %1655 = vmatprep.subr.mxu0 0.0
      %1656 = vmatpush1.msra.mxu0 0.0
      %1657 = vmatprep.subr.mxu0 0.0
      %1658 = vmatpush1.msra.mxu0 0.0
      %1659 = vmatprep.subr.mxu0 0.0
      %1660 = vmatpush1.msra.mxu0 0.0
      %1661 = vmatprep.subr.mxu0 0.0
      %1662 = vmatpush1.msra.mxu0 0.0
      %1663 = vmatprep.subr.mxu0 0.0
      %1664 = vmatpush1.msra.mxu0 0.0
      %1665 = vmatprep.subr.mxu0 0.0
      %1666 = vmatpush1.msra.mxu0 0.0
      %1667 = vmatprep.subr.mxu0 0.0
      %1668 = vmatpush1.msra.mxu0 0.0
      %1669 = vmatprep.subr.mxu0 0.0
      %1670 = vmatpush1.msra.mxu0 0.0
      %1671 = vmatprep.subr.mxu0 0.0
      %1672 = vmatpush1.msra.mxu0 0.0
      %1673 = vmatprep.subr.mxu0 0.0
      %1674 = vmatpush1.msra.mxu0 0.0
      %1675 = vmatprep.subr.mxu0 0.0
      %1676 = vmatpush1.msra.mxu0 0.0
      %1677 = vmatprep.subr.mxu0 0.0
      %1678 = vmatpush1.msra.mxu0 0.0
      %1679 = vmatprep.subr.mxu0 0.0
      %1680 = vmatpush1.msra.mxu0 0.0
      %1681 = vmatprep.subr.mxu0 0.0
      %1682 = vmatpush1.msra.mxu0 0.0
      %1683 = vmatprep.subr.mxu0 0.0
      %1684 = vmatpush1.msra.mxu0 0.0
      %1685 = vmatprep.subr.mxu0 0.0
      %1686 = vmatpush1.msra.mxu0 0.0
      %1687 = vmatprep.subr.mxu0 0.0
      %1688 = vmatpush1.msra.mxu0 0.0
      %1689 = vmatprep.mubr.f32.mxu0 0.0
      %1690 = vmatmul.mubr.f32.gmra.mrb[0].mxu0 %v1414
      %v1691 = vpop.f32.mrb[0].mxu0
      %v1692 = vadd.f32 0.0, %v1691
      %v1693 = vpop.f32.mrb[0].mxu0
      %v1694 = vadd.f32 0.0, %v1693
      %1695 = vmatprep.mubr.f32.mxu0 0.0
      %1696 = vmatmul.mubr.f32.gmra.mrb[0].mxu0 %v1417
      %v1697 = vpop.f32.mrb[0].mxu0
      %v1698 = vadd.f32 0.0, %v1697
      %v1699 = vpop.f32.mrb[0].mxu0
      %v1700 = vadd.f32 0.0, %v1699
      %1701 = vmatprep.mubr.f32.mxu0 0.0
      %1702 = vmatmul.mubr.f32.gmra.mrb[0].mxu0 %v1420
      %v1703 = vpop.f32.mrb[0].mxu0
      %v1704 = vadd.f32 0.0, %v1703
      %v1705 = vpop.f32.mrb[0].mxu0
      %v1706 = vadd.f32 0.0, %v1705
      %1707 = vmatprep.mubr.f32.mxu0 0.0
      %1708 = vmatmul.mubr.f32.gmra.mrb[0].mxu0 %v1423
      %v1709 = vpop.f32.mrb[0].mxu0
      %v1710 = vadd.f32 0.0, %v1709
      %v1711 = vpop.f32.mrb[0].mxu0
      %v1712 = vadd.f32 0.0, %v1711
      %1713 = vdwg.mxu0
      %1714 = vmatprep.subr.mxu0 0.0
      %1715 = vmatpush1.msra.mxu0 %v1246
      %1716 = vmatprep.subr.mxu0 0.0
      %1717 = vmatpush1.msra.mxu0 %v1253
      %1718 = vmatprep.subr.mxu0 0.0
      %1719 = vmatpush1.msra.mxu0 %v1260
      %1720 = vmatprep.subr.mxu0 0.0
      %1721 = vmatpush1.msra.mxu0 %v1445
      %1722 = vmatprep.subr.mxu0 0.0
      %1723 = vmatpush1.msra.mxu0 0.0
      %1724 = vmatprep.subr.mxu0 0.0
      %1725 = vmatpush1.msra.mxu0 0.0
      %1726 = vmatprep.subr.mxu0 0.0
      %1727 = vmatpush1.msra.mxu0 0.0
      %1728 = vmatprep.subr.mxu0 0.0
      %1729 = vmatpush1.msra.mxu0 0.0
      %1730 = vmatprep.subr.mxu0 0.0
      %1731 = vmatpush1.msra.mxu0 0.0
      %1732 = vmatprep.subr.mxu0 0.0
      %1733 = vmatpush1.msra.mxu0 0.0
      %1734 = vmatprep.subr.mxu0 0.0
      %1735 = vmatpush1.msra.mxu0 0.0
      %1736 = vmatprep.subr.mxu0 0.0
      %1737 = vmatpush1.msra.mxu0 0.0
      %1738 = vmatprep.subr.mxu0 0.0
      %1739 = vmatpush1.msra.mxu0 0.0
      %1740 = vmatprep.subr.mxu0 0.0
      %1741 = vmatpush1.msra.mxu0 0.0
      %1742 = vmatprep.subr.mxu0 0.0
      %1743 = vmatpush1.msra.mxu0 0.0
      %1744 = vmatprep.subr.mxu0 0.0
      %1745 = vmatpush1.msra.mxu0 0.0
      %1746 = vmatprep.subr.mxu0 0.0
      %1747 = vmatpush1.msra.mxu0 0.0
      %1748 = vmatprep.subr.mxu0 0.0
      %1749 = vmatpush1.msra.mxu0 0.0
      %1750 = vmatprep.subr.mxu0 0.0
      %1751 = vmatpush1.msra.mxu0 0.0
      %1752 = vmatprep.subr.mxu0 0.0
      %1753 = vmatpush1.msra.mxu0 0.0
      %1754 = vmatprep.subr.mxu0 0.0
      %1755 = vmatpush1.msra.mxu0 0.0
      %1756 = vmatprep.subr.mxu0 0.0
      %1757 = vmatpush1.msra.mxu0 0.0
      %1758 = vmatprep.subr.mxu0 0.0
      %1759 = vmatpush1.msra.mxu0 0.0
      %1760 = vmatprep.subr.mxu0 0.0
      %1761 = vmatpush1.msra.mxu0 0.0
      %1762 = vmatprep.subr.mxu0 0.0
      %1763 = vmatpush1.msra.mxu0 0.0
      %1764 = vmatprep.subr.mxu0 0.0
      %1765 = vmatpush1.msra.mxu0 0.0
      %1766 = vmatprep.subr.mxu0 0.0
      %1767 = vmatpush1.msra.mxu0 0.0
      %1768 = vmatprep.subr.mxu0 0.0
      %1769 = vmatpush1.msra.mxu0 0.0
      %1770 = vmatprep.subr.mxu0 0.0
      %1771 = vmatpush1.msra.mxu0 0.0
      %1772 = vmatprep.subr.mxu0 0.0
      %1773 = vmatpush1.msra.mxu0 0.0
      %1774 = vmatprep.subr.mxu0 0.0
      %1775 = vmatpush1.msra.mxu0 0.0
      %1776 = vmatprep.subr.mxu0 0.0
      %1777 = vmatpush1.msra.mxu0 0.0
      %1778 = vmatprep.mubr.f32.mxu0 0.0
      %1779 = vmatmul.mubr.f32.gmra.mrb[0].mxu0 %v1414
      %v1780 = vpop.f32.mrb[0].mxu0
      %v1781 = vadd.f32 0.0, %v1780
      %v1782 = vpop.f32.mrb[0].mxu0
      %1783 = vmatprep.mubr.f32.mxu0 0.0
      %1784 = vmatmul.mubr.f32.gmra.mrb[0].mxu0 %v1417
      %v1785 = vpop.f32.mrb[0].mxu0
      %v1786 = vadd.f32 0.0, %v1785
      %v1787 = vpop.f32.mrb[0].mxu0
      %1788 = vmatprep.mubr.f32.mxu0 0.0
      %1789 = vmatmul.mubr.f32.gmra.mrb[0].mxu0 %v1420
      %v1790 = vpop.f32.mrb[0].mxu0
      %v1791 = vadd.f32 0.0, %v1790
      %v1792 = vpop.f32.mrb[0].mxu0
      %1793 = vmatprep.mubr.f32.mxu0 0.0
      %1794 = vmatmul.mubr.f32.gmra.mrb[0].mxu0 %v1423
      %v1795 = vpop.f32.mrb[0].mxu0
      %v1796 = vadd.f32 0.0, %v1795
      %v1797 = vpop.f32.mrb[0].mxu0
      %1798 = vdwg.mxu0
      %v1799 = vmul.f32 %v1514, %v1380
      %v1800 = vmul.f32 %v1516, %v1381
      %v1801 = vmul.f32 %v1603, %v1382
      %v1802 = vmul.f32 %v1605, %v1383
      %v1803 = vmul.f32 %v1692, %v1384
      %v1804 = vmul.f32 %v1694, %v1385
      %v1805 = vmul.f32 %v1781, %v1386
      %v1806 = vmul.f32 %v1520, %v1387
      %v1807 = vmul.f32 %v1522, %v1388
      %v1808 = vmul.f32 %v1609, %v1389
      %v1809 = vmul.f32 %v1611, %v1390
      %v1810 = vmul.f32 %v1698, %v1391
      %v1811 = vmul.f32 %v1700, %v1392
      %v1812 = vmul.f32 %v1786, %v1393
      %v1813 = vmul.f32 %v1526, %v1394
      %v1814 = vmul.f32 %v1528, %v1395
      %v1815 = vmul.f32 %v1615, %v1396
      %v1816 = vmul.f32 %v1617, %v1397
      %v1817 = vmul.f32 %v1704, %v1398
      %v1818 = vmul.f32 %v1706, %v1399
      %v1819 = vmul.f32 %v1791, %v1400
      %v1820 = vmul.f32 %v1532, %v1401
      %v1821 = vmul.f32 %v1534, %v1402
      %v1822 = vmul.f32 %v1621, %v1403
      %v1823 = vmul.f32 %v1623, %v1404
      %v1824 = vmul.f32 %v1710, %v1405
      %v1825 = vmul.f32 %v1712, %v1406
      %v1826 = vmul.f32 %v1796, %v1407
      %v1827 = vadd.f32 %v1799, %v1806
      %v1828 = vadd.f32 %v1827, %v1813
      %v1829 = vsel %vm1425, %v1820, 0.0
      %v1830 = vadd.f32 %v1828, %v1829
      %v1831 = vrot.slane %v1830, 4
      %v1832 = vadd.f32 %v1830, %v1831
      %v1833 = vrot.slane %v1832, 2
      %v1834 = vadd.f32 %v1832, %v1833
      %v1835 = vrot.slane %v1834, 1
      %v1836 = vadd.f32 %v1834, %v1835
      %v1837 = vadd.f32 %v1800, %v1807
      %v1838 = vadd.f32 %v1837, %v1814
      %v1839 = vsel %vm1425, %v1821, 0.0
      %v1840 = vadd.f32 %v1838, %v1839
      %v1841 = vrot.slane %v1840, 4
      %v1842 = vadd.f32 %v1840, %v1841
      %v1843 = vrot.slane %v1842, 2
      %v1844 = vadd.f32 %v1842, %v1843
      %v1845 = vrot.slane %v1844, 1
      %v1846 = vadd.f32 %v1844, %v1845
      %v1847 = vadd.f32 %v1801, %v1808
      %v1848 = vadd.f32 %v1847, %v1815
      %v1849 = vsel %vm1425, %v1822, 0.0
      %v1850 = vadd.f32 %v1848, %v1849
      %v1851 = vrot.slane %v1850, 4
      %v1852 = vadd.f32 %v1850, %v1851
      %v1853 = vrot.slane %v1852, 2
      %v1854 = vadd.f32 %v1852, %v1853
      %v1855 = vrot.slane %v1854, 1
      %v1856 = vadd.f32 %v1854, %v1855
      %v1857 = vadd.f32 %v1802, %v1809
      %v1858 = vadd.f32 %v1857, %v1816
      %v1859 = vsel %vm1425, %v1823, 0.0
      %v1860 = vadd.f32 %v1858, %v1859
      %v1861 = vrot.slane %v1860, 4
      %v1862 = vadd.f32 %v1860, %v1861
      %v1863 = vrot.slane %v1862, 2
      %v1864 = vadd.f32 %v1862, %v1863
      %v1865 = vrot.slane %v1864, 1
      %v1866 = vadd.f32 %v1864, %v1865
      %v1867 = vadd.f32 %v1803, %v1810
      %v1868 = vadd.f32 %v1867, %v1817
      %v1869 = vsel %vm1425, %v1824, 0.0
      %v1870 = vadd.f32 %v1868, %v1869
      %v1871 = vrot.slane %v1870, 4
      %v1872 = vadd.f32 %v1870, %v1871
      %v1873 = vrot.slane %v1872, 2
      %v1874 = vadd.f32 %v1872, %v1873
      %v1875 = vrot.slane %v1874, 1
      %v1876 = vadd.f32 %v1874, %v1875
      %v1877 = vadd.f32 %v1804, %v1811
      %v1878 = vadd.f32 %v1877, %v1818
      %v1879 = vsel %vm1425, %v1825, 0.0
      %v1880 = vadd.f32 %v1878, %v1879
      %v1881 = vrot.slane %v1880, 4
      %v1882 = vadd.f32 %v1880, %v1881
      %v1883 = vrot.slane %v1882, 2
      %v1884 = vadd.f32 %v1882, %v1883
      %v1885 = vrot.slane %v1884, 1
      %v1886 = vadd.f32 %v1884, %v1885
      %v1887 = vadd.f32 %v1805, %v1812
      %v1888 = vadd.f32 %v1887, %v1819
      %v1889 = vsel %vm1425, %v1826, 0.0
      %v1890 = vadd.f32 %v1888, %v1889
      %v1891 = vrot.slane %v1890, 4
      %v1892 = vadd.f32 %v1890, %v1891
      %v1893 = vrot.slane %v1892, 2
      %v1894 = vadd.f32 %v1892, %v1893
      %v1895 = vrot.slane %v1894, 1
      %v1896 = vadd.f32 %v1894, %v1895
      %v1904 = vcombine.low %v1836, %v1846
      %v1905 = vcombine.low %v1856, %v1866
      %v1906 = vcombine.low %v1876, %v1886
      %v1908 = vunpack.c.l.s4 1966171168
      %v1909 = vunpack.c.0.s8 %v1908
      %v1910 = vlaneseq
      %v1911 = vshrl.u32 %v1910, 7
      %v1912 = vsub.s32 %v1909, %v1911
      %v1913 = vrot.slane %v1904, %v1912
      %v1915 = vunpack.c.l.s4 1966171168
      %v1916 = vunpack.c.0.s8 %v1915
      %v1917 = vlaneseq
      %v1918 = vshrl.u32 %v1917, 7
      %v1919 = vsub.s32 %v1916, %v1918
      %v1920 = vrot.slane %v1905, %v1919
      %v1922 = vunpack.c.l.s4 1966171168
      %v1923 = vunpack.c.0.s8 %v1922
      %v1924 = vlaneseq
      %v1925 = vshrl.u32 %v1924, 7
      %v1926 = vsub.s32 %v1923, %v1925
      %v1927 = vrot.slane %v1906, %v1926
      %v1929 = vunpack.c.l.s4 1966171168
      %v1930 = vunpack.c.0.s8 %v1929
      %v1931 = vlaneseq
      %v1932 = vshrl.u32 %v1931, 7
      %v1933 = vsub.s32 %v1930, %v1932
      %v1934 = vrot.slane %v1896, %v1933
      %v1935 = vcombine.low %v1913, %v1920
      %v1936 = vcombine.low %v1927, %v1934
      %v1938 = vunpack.c.l.s4 1966171168
      %v1939 = vunpack.c.0.s8 %v1938
      %v1940 = vlaneseq
      %v1941 = vshrl.u32 %v1940, 7
      %v1942 = vsub.s32 %v1939, %v1941
      %v1943 = vrot.slane %v1935, %v1942
      %v1945 = vunpack.c.l.s4 1966171168
      %v1946 = vunpack.c.0.s8 %v1945
      %v1947 = vlaneseq
      %v1948 = vshrl.u32 %v1947, 7
      %v1949 = vsub.s32 %v1946, %v1948
      %v1950 = vrot.slane %v1936, %v1949
      %v1951 = vcombine.low %v1943, %v1950
      %v1953 = vlaneseq
      %vm1954 = vcmp.ge.s32.totalorder %v1953, 0
      %vm1955 = vcmp.lt.s32.totalorder %v1953, 896
      %vm1956 = vmand %vm1954, %vm1955
      %1957 = vst.msk [vmem:[%s319] ss:$2 sm:$0x7f] %vm1956, %v1951
      %s1958 = scalar_lea.vmem %s314, 32
      %v1959 = vld [vmem:[%s1958] sm:$0xff]
      %v1960 = vld [vmem:[%s1958 + $0x8] sm:$0xff]
      %v1961 = vld [vmem:[%s1958 + $0x10] sm:$0xff]
      %v1962 = vld [vmem:[%s1958 + $0x18] sm:$0xf]
      %v1964 = vsel %vm1412, %v1959, 0
      %v1967 = vsel %vm1412, %v1960, 0
      %v1970 = vsel %vm1412, %v1961, 0
      %v1973 = vsel %vm1412, %v1962, 0
      %1975 = vmatprep.subr.mxu0 %v1241
      %1976 = vmatpush1.msra.mxu0 %v1240
      %1977 = vmatprep.subr.mxu0 %v1248
      %1978 = vmatpush1.msra.mxu0 %v1247
      %1979 = vmatprep.subr.mxu0 %v1255
      %1980 = vmatpush1.msra.mxu0 %v1254
      %1981 = vmatprep.subr.mxu0 %v1430
      %1982 = vmatpush1.msra.mxu0 %v1427
      %1983 = vmatprep.subr.mxu0 0.0
      %1984 = vmatpush1.msra.mxu0 0.0
      %1985 = vmatprep.subr.mxu0 0.0
      %1986 = vmatpush1.msra.mxu0 0.0
      %1987 = vmatprep.subr.mxu0 0.0
      %1988 = vmatpush1.msra.mxu0 0.0
      %1989 = vmatprep.subr.mxu0 0.0
      %1990 = vmatpush1.msra.mxu0 0.0
      %1991 = vmatprep.subr.mxu0 0.0
      %1992 = vmatpush1.msra.mxu0 0.0
      %1993 = vmatprep.subr.mxu0 0.0
      %1994 = vmatpush1.msra.mxu0 0.0
      %1995 = vmatprep.subr.mxu0 0.0
      %1996 = vmatpush1.msra.mxu0 0.0
      %1997 = vmatprep.subr.mxu0 0.0
      %1998 = vmatpush1.msra.mxu0 0.0
      %1999 = vmatprep.subr.mxu0 0.0
      %2000 = vmatpush1.msra.mxu0 0.0
      %2001 = vmatprep.subr.mxu0 0.0
      %2002 = vmatpush1.msra.mxu0 0.0
      %2003 = vmatprep.subr.mxu0 0.0
      %2004 = vmatpush1.msra.mxu0 0.0
      %2005 = vmatprep.subr.mxu0 0.0
      %2006 = vmatpush1.msra.mxu0 0.0
      %2007 = vmatprep.subr.mxu0 0.0
      %2008 = vmatpush1.msra.mxu0 0.0
      %2009 = vmatprep.subr.mxu0 0.0
      %2010 = vmatpush1.msra.mxu0 0.0
      %2011 = vmatprep.subr.mxu0 0.0
      %2012 = vmatpush1.msra.mxu0 0.0
      %2013 = vmatprep.subr.mxu0 0.0
      %2014 = vmatpush1.msra.mxu0 0.0
      %2015 = vmatprep.subr.mxu0 0.0
      %2016 = vmatpush1.msra.mxu0 0.0
      %2017 = vmatprep.subr.mxu0 0.0
      %2018 = vmatpush1.msra.mxu0 0.0
      %2019 = vmatprep.subr.mxu0 0.0
      %2020 = vmatpush1.msra.mxu0 0.0
      %2021 = vmatprep.subr.mxu0 0.0
      %2022 = vmatpush1.msra.mxu0 0.0
      %2023 = vmatprep.subr.mxu0 0.0
      %2024 = vmatpush1.msra.mxu0 0.0
      %2025 = vmatprep.subr.mxu0 0.0
      %2026 = vmatpush1.msra.mxu0 0.0
      %2027 = vmatprep.subr.mxu0 0.0
      %2028 = vmatpush1.msra.mxu0 0.0
      %2029 = vmatprep.subr.mxu0 0.0
      %2030 = vmatpush1.msra.mxu0 0.0
      %2031 = vmatprep.subr.mxu0 0.0
      %2032 = vmatpush1.msra.mxu0 0.0
      %2033 = vmatprep.subr.mxu0 0.0
      %2034 = vmatpush1.msra.mxu0 0.0
      %2035 = vmatprep.subr.mxu0 0.0
      %2036 = vmatpush1.msra.mxu0 0.0
      %2037 = vmatprep.subr.mxu0 0.0
      %2038 = vmatpush1.msra.mxu0 0.0
      %2039 = vmatprep.mubr.f32.mxu0 0.0
      %2040 = vmatmul.mubr.f32.gmra.mrb[0].mxu0 %v1964
      %v2041 = vpop.f32.mrb[0].mxu0
      %v2042 = vadd.f32 0.0, %v2041
      %v2043 = vpop.f32.mrb[0].mxu0
      %v2044 = vadd.f32 0.0, %v2043
      %2045 = vmatprep.mubr.f32.mxu0 0.0
      %2046 = vmatmul.mubr.f32.gmra.mrb[0].mxu0 %v1967
      %v2047 = vpop.f32.mrb[0].mxu0
      %v2048 = vadd.f32 0.0, %v2047
      %v2049 = vpop.f32.mrb[0].mxu0
      %v2050 = vadd.f32 0.0, %v2049
      %2051 = vmatprep.mubr.f32.mxu0 0.0
      %2052 = vmatmul.mubr.f32.gmra.mrb[0].mxu0 %v1970
      %v2053 = vpop.f32.mrb[0].mxu0
      %v2054 = vadd.f32 0.0, %v2053
      %v2055 = vpop.f32.mrb[0].mxu0
      %v2056 = vadd.f32 0.0, %v2055
      %2057 = vmatprep.mubr.f32.mxu0 0.0
      %2058 = vmatmul.mubr.f32.gmra.mrb[0].mxu0 %v1973
      %v2059 = vpop.f32.mrb[0].mxu0
      %v2060 = vadd.f32 0.0, %v2059
      %v2061 = vpop.f32.mrb[0].mxu0
      %v2062 = vadd.f32 0.0, %v2061
      %2063 = vdwg.mxu0
      %2064 = vmatprep.subr.mxu0 %v1243
      %2065 = vmatpush1.msra.mxu0 %v1242
      %2066 = vmatprep.subr.mxu0 %v1250
      %2067 = vmatpush1.msra.mxu0 %v1249
      %2068 = vmatprep.subr.mxu0 %v1257
      %2069 = vmatpush1.msra.mxu0 %v1256
      %2070 = vmatprep.subr.mxu0 %v1436
      %2071 = vmatpush1.msra.mxu0 %v1433
      %2072 = vmatprep.subr.mxu0 0.0
      %2073 = vmatpush1.msra.mxu0 0.0
      %2074 = vmatprep.subr.mxu0 0.0
      %2075 = vmatpush1.msra.mxu0 0.0
      %2076 = vmatprep.subr.mxu0 0.0
      %2077 = vmatpush1.msra.mxu0 0.0
      %2078 = vmatprep.subr.mxu0 0.0
      %2079 = vmatpush1.msra.mxu0 0.0
      %2080 = vmatprep.subr.mxu0 0.0
      %2081 = vmatpush1.msra.mxu0 0.0
      %2082 = vmatprep.subr.mxu0 0.0
      %2083 = vmatpush1.msra.mxu0 0.0
      %2084 = vmatprep.subr.mxu0 0.0
      %2085 = vmatpush1.msra.mxu0 0.0
      %2086 = vmatprep.subr.mxu0 0.0
      %2087 = vmatpush1.msra.mxu0 0.0
      %2088 = vmatprep.subr.mxu0 0.0
      %2089 = vmatpush1.msra.mxu0 0.0
      %2090 = vmatprep.subr.mxu0 0.0
      %2091 = vmatpush1.msra.mxu0 0.0
      %2092 = vmatprep.subr.mxu0 0.0
      %2093 = vmatpush1.msra.mxu0 0.0
      %2094 = vmatprep.subr.mxu0 0.0
      %2095 = vmatpush1.msra.mxu0 0.0
      %2096 = vmatprep.subr.mxu0 0.0
      %2097 = vmatpush1.msra.mxu0 0.0
      %2098 = vmatprep.subr.mxu0 0.0
      %2099 = vmatpush1.msra.mxu0 0.0
      %2100 = vmatprep.subr.mxu0 0.0
      %2101 = vmatpush1.msra.mxu0 0.0
      %2102 = vmatprep.subr.mxu0 0.0
      %2103 = vmatpush1.msra.mxu0 0.0
      %2104 = vmatprep.subr.mxu0 0.0
      %2105 = vmatpush1.msra.mxu0 0.0
      %2106 = vmatprep.subr.mxu0 0.0
      %2107 = vmatpush1.msra.mxu0 0.0
      %2108 = vmatprep.subr.mxu0 0.0
      %2109 = vmatpush1.msra.mxu0 0.0
      %2110 = vmatprep.subr.mxu0 0.0
      %2111 = vmatpush1.msra.mxu0 0.0
      %2112 = vmatprep.subr.mxu0 0.0
      %2113 = vmatpush1.msra.mxu0 0.0
      %2114 = vmatprep.subr.mxu0 0.0
      %2115 = vmatpush1.msra.mxu0 0.0
      %2116 = vmatprep.subr.mxu0 0.0
      %2117 = vmatpush1.msra.mxu0 0.0
      %2118 = vmatprep.subr.mxu0 0.0
      %2119 = vmatpush1.msra.mxu0 0.0
      %2120 = vmatprep.subr.mxu0 0.0
      %2121 = vmatpush1.msra.mxu0 0.0
      %2122 = vmatprep.subr.mxu0 0.0
      %2123 = vmatpush1.msra.mxu0 0.0
      %2124 = vmatprep.subr.mxu0 0.0
      %2125 = vmatpush1.msra.mxu0 0.0
      %2126 = vmatprep.subr.mxu0 0.0
      %2127 = vmatpush1.msra.mxu0 0.0
      %2128 = vmatprep.mubr.f32.mxu0 0.0
      %2129 = vmatmul.mubr.f32.gmra.mrb[0].mxu0 %v1964
      %v2130 = vpop.f32.mrb[0].mxu0
      %v2131 = vadd.f32 0.0, %v2130
      %v2132 = vpop.f32.mrb[0].mxu0
      %v2133 = vadd.f32 0.0, %v2132
      %2134 = vmatprep.mubr.f32.mxu0 0.0
      %2135 = vmatmul.mubr.f32.gmra.mrb[0].mxu0 %v1967
      %v2136 = vpop.f32.mrb[0].mxu0
      %v2137 = vadd.f32 0.0, %v2136
      %v2138 = vpop.f32.mrb[0].mxu0
      %v2139 = vadd.f32 0.0, %v2138
      %2140 = vmatprep.mubr.f32.mxu0 0.0
      %2141 = vmatmul.mubr.f32.gmra.mrb[0].mxu0 %v1970
      %v2142 = vpop.f32.mrb[0].mxu0
      %v2143 = vadd.f32 0.0, %v2142
      %v2144 = vpop.f32.mrb[0].mxu0
      %v2145 = vadd.f32 0.0, %v2144
      %2146 = vmatprep.mubr.f32.mxu0 0.0
      %2147 = vmatmul.mubr.f32.gmra.mrb[0].mxu0 %v1973
      %v2148 = vpop.f32.mrb[0].mxu0
      %v2149 = vadd.f32 0.0, %v2148
      %v2150 = vpop.f32.mrb[0].mxu0
      %v2151 = vadd.f32 0.0, %v2150
      %2152 = vdwg.mxu0
      %2153 = vmatprep.subr.mxu0 %v1245
      %2154 = vmatpush1.msra.mxu0 %v1244
      %2155 = vmatprep.subr.mxu0 %v1252
      %2156 = vmatpush1.msra.mxu0 %v1251
      %2157 = vmatprep.subr.mxu0 %v1259
      %2158 = vmatpush1.msra.mxu0 %v1258
      %2159 = vmatprep.subr.mxu0 %v1442
      %2160 = vmatpush1.msra.mxu0 %v1439
      %2161 = vmatprep.subr.mxu0 0.0
      %2162 = vmatpush1.msra.mxu0 0.0
      %2163 = vmatprep.subr.mxu0 0.0
      %2164 = vmatpush1.msra.mxu0 0.0
      %2165 = vmatprep.subr.mxu0 0.0
      %2166 = vmatpush1.msra.mxu0 0.0
      %2167 = vmatprep.subr.mxu0 0.0
      %2168 = vmatpush1.msra.mxu0 0.0
      %2169 = vmatprep.subr.mxu0 0.0
      %2170 = vmatpush1.msra.mxu0 0.0
      %2171 = vmatprep.subr.mxu0 0.0
      %2172 = vmatpush1.msra.mxu0 0.0
      %2173 = vmatprep.subr.mxu0 0.0
      %2174 = vmatpush1.msra.mxu0 0.0
      %2175 = vmatprep.subr.mxu0 0.0
      %2176 = vmatpush1.msra.mxu0 0.0
      %2177 = vmatprep.subr.mxu0 0.0
      %2178 = vmatpush1.msra.mxu0 0.0
      %2179 = vmatprep.subr.mxu0 0.0
      %2180 = vmatpush1.msra.mxu0 0.0
      %2181 = vmatprep.subr.mxu0 0.0
      %2182 = vmatpush1.msra.mxu0 0.0
      %2183 = vmatprep.subr.mxu0 0.0
      %2184 = vmatpush1.msra.mxu0 0.0
      %2185 = vmatprep.subr.mxu0 0.0
      %2186 = vmatpush1.msra.mxu0 0.0
      %2187 = vmatprep.subr.mxu0 0.0
      %2188 = vmatpush1.msra.mxu0 0.0
      %2189 = vmatprep.subr.mxu0 0.0
      %2190 = vmatpush1.msra.mxu0 0.0
      %2191 = vmatprep.subr.mxu0 0.0
      %2192 = vmatpush1.msra.mxu0 0.0
      %2193 = vmatprep.subr.mxu0 0.0
      %2194 = vmatpush1.msra.mxu0 0.0
      %2195 = vmatprep.subr.mxu0 0.0
      %2196 = vmatpush1.msra.mxu0 0.0
      %2197 = vmatprep.subr.mxu0 0.0
      %2198 = vmatpush1.msra.mxu0 0.0
      %2199 = vmatprep.subr.mxu0 0.0
      %2200 = vmatpush1.msra.mxu0 0.0
      %2201 = vmatprep.subr.mxu0 0.0
      %2202 = vmatpush1.msra.mxu0 0.0
      %2203 = vmatprep.subr.mxu0 0.0
      %2204 = vmatpush1.msra.mxu0 0.0
      %2205 = vmatprep.subr.mxu0 0.0
      %2206 = vmatpush1.msra.mxu0 0.0
      %2207 = vmatprep.subr.mxu0 0.0
      %2208 = vmatpush1.msra.mxu0 0.0
      %2209 = vmatprep.subr.mxu0 0.0
      %2210 = vmatpush1.msra.mxu0 0.0
      %2211 = vmatprep.subr.mxu0 0.0
      %2212 = vmatpush1.msra.mxu0 0.0
      %2213 = vmatprep.subr.mxu0 0.0
      %2214 = vmatpush1.msra.mxu0 0.0
      %2215 = vmatprep.subr.mxu0 0.0
      %2216 = vmatpush1.msra.mxu0 0.0
      %2217 = vmatprep.mubr.f32.mxu0 0.0
      %2218 = vmatmul.mubr.f32.gmra.mrb[0].mxu0 %v1964
      %v2219 = vpop.f32.mrb[0].mxu0
      %v2220 = vadd.f32 0.0, %v2219
      %v2221 = vpop.f32.mrb[0].mxu0
      %v2222 = vadd.f32 0.0, %v2221
      %2223 = vmatprep.mubr.f32.mxu0 0.0
      %2224 = vmatmul.mubr.f32.gmra.mrb[0].mxu0 %v1967
      %v2225 = vpop.f32.mrb[0].mxu0
      %v2226 = vadd.f32 0.0, %v2225
      %v2227 = vpop.f32.mrb[0].mxu0
      %v2228 = vadd.f32 0.0, %v2227
      %2229 = vmatprep.mubr.f32.mxu0 0.0
      %2230 = vmatmul.mubr.f32.gmra.mrb[0].mxu0 %v1970
      %v2231 = vpop.f32.mrb[0].mxu0
      %v2232 = vadd.f32 0.0, %v2231
      %v2233 = vpop.f32.mrb[0].mxu0
      %v2234 = vadd.f32 0.0, %v2233
      %2235 = vmatprep.mubr.f32.mxu0 0.0
      %2236 = vmatmul.mubr.f32.gmra.mrb[0].mxu0 %v1973
      %v2237 = vpop.f32.mrb[0].mxu0
      %v2238 = vadd.f32 0.0, %v2237
      %v2239 = vpop.f32.mrb[0].mxu0
      %v2240 = vadd.f32 0.0, %v2239
      %2241 = vdwg.mxu0
      %2242 = vmatprep.subr.mxu0 0.0
      %2243 = vmatpush1.msra.mxu0 %v1246
      %2244 = vmatprep.subr.mxu0 0.0
      %2245 = vmatpush1.msra.mxu0 %v1253
      %2246 = vmatprep.subr.mxu0 0.0
      %2247 = vmatpush1.msra.mxu0 %v1260
      %2248 = vmatprep.subr.mxu0 0.0
      %2249 = vmatpush1.msra.mxu0 %v1445
      %2250 = vmatprep.subr.mxu0 0.0
      %2251 = vmatpush1.msra.mxu0 0.0
      %2252 = vmatprep.subr.mxu0 0.0
      %2253 = vmatpush1.msra.mxu0 0.0
      %2254 = vmatprep.subr.mxu0 0.0
      %2255 = vmatpush1.msra.mxu0 0.0
      %2256 = vmatprep.subr.mxu0 0.0
      %2257 = vmatpush1.msra.mxu0 0.0
      %2258 = vmatprep.subr.mxu0 0.0
      %2259 = vmatpush1.msra.mxu0 0.0
      %2260 = vmatprep.subr.mxu0 0.0
      %2261 = vmatpush1.msra.mxu0 0.0
      %2262 = vmatprep.subr.mxu0 0.0
      %2263 = vmatpush1.msra.mxu0 0.0
      %2264 = vmatprep.subr.mxu0 0.0
      %2265 = vmatpush1.msra.mxu0 0.0
      %2266 = vmatprep.subr.mxu0 0.0
      %2267 = vmatpush1.msra.mxu0 0.0
      %2268 = vmatprep.subr.mxu0 0.0
      %2269 = vmatpush1.msra.mxu0 0.0
      %2270 = vmatprep.subr.mxu0 0.0
      %2271 = vmatpush1.msra.mxu0 0.0
      %2272 = vmatprep.subr.mxu0 0.0
      %2273 = vmatpush1.msra.mxu0 0.0
      %2274 = vmatprep.subr.mxu0 0.0
      %2275 = vmatpush1.msra.mxu0 0.0
      %2276 = vmatprep.subr.mxu0 0.0
      %2277 = vmatpush1.msra.mxu0 0.0
      %2278 = vmatprep.subr.mxu0 0.0
      %2279 = vmatpush1.msra.mxu0 0.0
      %2280 = vmatprep.subr.mxu0 0.0
      %2281 = vmatpush1.msra.mxu0 0.0
      %2282 = vmatprep.subr.mxu0 0.0
      %2283 = vmatpush1.msra.mxu0 0.0
      %2284 = vmatprep.subr.mxu0 0.0
      %2285 = vmatpush1.msra.mxu0 0.0
      %2286 = vmatprep.subr.mxu0 0.0
      %2287 = vmatpush1.msra.mxu0 0.0
      %2288 = vmatprep.subr.mxu0 0.0
      %2289 = vmatpush1.msra.mxu0 0.0
      %2290 = vmatprep.subr.mxu0 0.0
      %2291 = vmatpush1.msra.mxu0 0.0
      %2292 = vmatprep.subr.mxu0 0.0
      %2293 = vmatpush1.msra.mxu0 0.0
      %2294 = vmatprep.subr.mxu0 0.0
      %2295 = vmatpush1.msra.mxu0 0.0
      %2296 = vmatprep.subr.mxu0 0.0
      %2297 = vmatpush1.msra.mxu0 0.0
      %2298 = vmatprep.subr.mxu0 0.0
      %2299 = vmatpush1.msra.mxu0 0.0
      %2300 = vmatprep.subr.mxu0 0.0
      %2301 = vmatpush1.msra.mxu0 0.0
      %2302 = vmatprep.subr.mxu0 0.0
      %2303 = vmatpush1.msra.mxu0 0.0
      %2304 = vmatprep.subr.mxu0 0.0
      %2305 = vmatpush1.msra.mxu0 0.0
      %2306 = vmatprep.mubr.f32.mxu0 0.0
      %2307 = vmatmul.mubr.f32.gmra.mrb[0].mxu0 %v1964
      %v2308 = vpop.f32.mrb[0].mxu0
      %v2309 = vadd.f32 0.0, %v2308
      %v2310 = vpop.f32.mrb[0].mxu0
      %2311 = vmatprep.mubr.f32.mxu0 0.0
      %2312 = vmatmul.mubr.f32.gmra.mrb[0].mxu0 %v1967
      %v2313 = vpop.f32.mrb[0].mxu0
      %v2314 = vadd.f32 0.0, %v2313
      %v2315 = vpop.f32.mrb[0].mxu0
      %2316 = vmatprep.mubr.f32.mxu0 0.0
      %2317 = vmatmul.mubr.f32.gmra.mrb[0].mxu0 %v1970
      %v2318 = vpop.f32.mrb[0].mxu0
      %v2319 = vadd.f32 0.0, %v2318
      %v2320 = vpop.f32.mrb[0].mxu0
      %2321 = vmatprep.mubr.f32.mxu0 0.0
      %2322 = vmatmul.mubr.f32.gmra.mrb[0].mxu0 %v1973
      %v2323 = vpop.f32.mrb[0].mxu0
      %v2324 = vadd.f32 0.0, %v2323
      %v2325 = vpop.f32.mrb[0].mxu0
      %2326 = vdwg.mxu0
      %v2327 = vmul.f32 %v2042, %v1380
      %v2328 = vmul.f32 %v2044, %v1381
      %v2329 = vmul.f32 %v2131, %v1382
      %v2330 = vmul.f32 %v2133, %v1383
      %v2331 = vmul.f32 %v2220, %v1384
      %v2332 = vmul.f32 %v2222, %v1385
      %v2333 = vmul.f32 %v2309, %v1386
      %v2334 = vmul.f32 %v2048, %v1387
      %v2335 = vmul.f32 %v2050, %v1388
      %v2336 = vmul.f32 %v2137, %v1389
      %v2337 = vmul.f32 %v2139, %v1390
      %v2338 = vmul.f32 %v2226, %v1391
      %v2339 = vmul.f32 %v2228, %v1392
      %v2340 = vmul.f32 %v2314, %v1393
      %v2341 = vmul.f32 %v2054, %v1394
      %v2342 = vmul.f32 %v2056, %v1395
      %v2343 = vmul.f32 %v2143, %v1396
      %v2344 = vmul.f32 %v2145, %v1397
      %v2345 = vmul.f32 %v2232, %v1398
      %v2346 = vmul.f32 %v2234, %v1399
      %v2347 = vmul.f32 %v2319, %v1400
      %v2348 = vmul.f32 %v2060, %v1401
      %v2349 = vmul.f32 %v2062, %v1402
      %v2350 = vmul.f32 %v2149, %v1403
      %v2351 = vmul.f32 %v2151, %v1404
      %v2352 = vmul.f32 %v2238, %v1405
      %v2353 = vmul.f32 %v2240, %v1406
      %v2354 = vmul.f32 %v2324, %v1407
      %v2355 = vadd.f32 %v2327, %v2334
      %v2356 = vadd.f32 %v2355, %v2341
      %v2357 = vsel %vm1425, %v2348, 0.0
      %v2358 = vadd.f32 %v2356, %v2357
      %v2359 = vrot.slane %v2358, 4
      %v2360 = vadd.f32 %v2358, %v2359
      %v2361 = vrot.slane %v2360, 2
      %v2362 = vadd.f32 %v2360, %v2361
      %v2363 = vrot.slane %v2362, 1
      %v2364 = vadd.f32 %v2362, %v2363
      %v2365 = vadd.f32 %v2328, %v2335
      %v2366 = vadd.f32 %v2365, %v2342
      %v2367 = vsel %vm1425, %v2349, 0.0
      %v2368 = vadd.f32 %v2366, %v2367
      %v2369 = vrot.slane %v2368, 4
      %v2370 = vadd.f32 %v2368, %v2369
      %v2371 = vrot.slane %v2370, 2
      %v2372 = vadd.f32 %v2370, %v2371
      %v2373 = vrot.slane %v2372, 1
      %v2374 = vadd.f32 %v2372, %v2373
      %v2375 = vadd.f32 %v2329, %v2336
      %v2376 = vadd.f32 %v2375, %v2343
      %v2377 = vsel %vm1425, %v2350, 0.0
      %v2378 = vadd.f32 %v2376, %v2377
      %v2379 = vrot.slane %v2378, 4
      %v2380 = vadd.f32 %v2378, %v2379
      %v2381 = vrot.slane %v2380, 2
      %v2382 = vadd.f32 %v2380, %v2381
      %v2383 = vrot.slane %v2382, 1
      %v2384 = vadd.f32 %v2382, %v2383
      %v2385 = vadd.f32 %v2330, %v2337
      %v2386 = vadd.f32 %v2385, %v2344
      %v2387 = vsel %vm1425, %v2351, 0.0
      %v2388 = vadd.f32 %v2386, %v2387
      %v2389 = vrot.slane %v2388, 4
      %v2390 = vadd.f32 %v2388, %v2389
      %v2391 = vrot.slane %v2390, 2
      %v2392 = vadd.f32 %v2390, %v2391
      %v2393 = vrot.slane %v2392, 1
      %v2394 = vadd.f32 %v2392, %v2393
      %v2395 = vadd.f32 %v2331, %v2338
      %v2396 = vadd.f32 %v2395, %v2345
      %v2397 = vsel %vm1425, %v2352, 0.0
      %v2398 = vadd.f32 %v2396, %v2397
      %v2399 = vrot.slane %v2398, 4
      %v2400 = vadd.f32 %v2398, %v2399
      %v2401 = vrot.slane %v2400, 2
      %v2402 = vadd.f32 %v2400, %v2401
      %v2403 = vrot.slane %v2402, 1
      %v2404 = vadd.f32 %v2402, %v2403
      %v2405 = vadd.f32 %v2332, %v2339
      %v2406 = vadd.f32 %v2405, %v2346
      %v2407 = vsel %vm1425, %v2353, 0.0
      %v2408 = vadd.f32 %v2406, %v2407
      %v2409 = vrot.slane %v2408, 4
      %v2410 = vadd.f32 %v2408, %v2409
      %v2411 = vrot.slane %v2410, 2
      %v2412 = vadd.f32 %v2410, %v2411
      %v2413 = vrot.slane %v2412, 1
      %v2414 = vadd.f32 %v2412, %v2413
      %v2415 = vadd.f32 %v2333, %v2340
      %v2416 = vadd.f32 %v2415, %v2347
      %v2417 = vsel %vm1425, %v2354, 0.0
      %v2418 = vadd.f32 %v2416, %v2417
      %v2419 = vrot.slane %v2418, 4
      %v2420 = vadd.f32 %v2418, %v2419
      %v2421 = vrot.slane %v2420, 2
      %v2422 = vadd.f32 %v2420, %v2421
      %v2423 = vrot.slane %v2422, 1
      %v2424 = vadd.f32 %v2422, %v2423
      %v2432 = vcombine.low %v2364, %v2374
      %v2433 = vcombine.low %v2384, %v2394
      %v2434 = vcombine.low %v2404, %v2414
      %v2436 = vunpack.c.l.s4 1966171168
      %v2437 = vunpack.c.0.s8 %v2436
      %v2438 = vlaneseq
      %v2439 = vshrl.u32 %v2438, 7
      %v2440 = vsub.s32 %v2437, %v2439
      %v2441 = vrot.slane %v2432, %v2440
      %v2443 = vunpack.c.l.s4 1966171168
      %v2444 = vunpack.c.0.s8 %v2443
      %v2445 = vlaneseq
      %v2446 = vshrl.u32 %v2445, 7
      %v2447 = vsub.s32 %v2444, %v2446
      %v2448 = vrot.slane %v2433, %v2447
      %v2450 = vunpack.c.l.s4 1966171168
      %v2451 = vunpack.c.0.s8 %v2450
      %v2452 = vlaneseq
      %v2453 = vshrl.u32 %v2452, 7
      %v2454 = vsub.s32 %v2451, %v2453
      %v2455 = vrot.slane %v2434, %v2454
      %v2457 = vunpack.c.l.s4 1966171168
      %v2458 = vunpack.c.0.s8 %v2457
      %v2459 = vlaneseq
      %v2460 = vshrl.u32 %v2459, 7
      %v2461 = vsub.s32 %v2458, %v2460
      %v2462 = vrot.slane %v2424, %v2461
      %v2463 = vcombine.low %v2441, %v2448
      %v2464 = vcombine.low %v2455, %v2462
      %v2466 = vunpack.c.l.s4 1966171168
      %v2467 = vunpack.c.0.s8 %v2466
      %v2468 = vlaneseq
      %v2469 = vshrl.u32 %v2468, 7
      %v2470 = vsub.s32 %v2467, %v2469
      %v2471 = vrot.slane %v2463, %v2470
      %v2473 = vunpack.c.l.s4 1966171168
      %v2474 = vunpack.c.0.s8 %v2473
      %v2475 = vlaneseq
      %v2476 = vshrl.u32 %v2475, 7
      %v2477 = vsub.s32 %v2474, %v2476
      %v2478 = vrot.slane %v2464, %v2477
      %v2479 = vcombine.low %v2471, %v2478
      %s2481 = scalar_lea.vmem %s319, 1
      %2482 = vst.msk [vmem:[%s2481] ss:$2 sm:$0x7f] %vm1956, %v2479
      %p2483 = scmp.lt.s32.totalorder %s19, 1
      %s2484 = scalar_select %p2483, %s19, 1
      %s2485 = smul.addr %s2484, 7
      %s2486 = smul.addr %s2485, 2
      %s2487 = scalar_lea.vmem %s8, %s2486
      // Predicated region
      $region53: #{stn_forward.5} parent=51 // pred_check
        %p2488 = pneg %p215
      $region54: #{stn_forward.5} parent=51 // pred_check_branch
        %2490 = sbr.rel (%p2488) target = $region56
      $region55: #{stn_forward.5} parent=51 // pred_region
        _
      $region56: #{stn_forward.5} parent=51 // pred_fallthru
        _
    $region52: #{stn_forward.5} parent=5 // pred_fallthru
      _
    %p2491 = scmp.le.s32.totalorder 2, %s14
    // Predicated region
    $region57: #{stn_forward.5} parent=5 // pred_check
      %p2492 = pneg %p2491
    $region58: #{stn_forward.5} parent=5 // pred_check_branch
      %2494 = sbr.rel (%p2492) target = $region60
    $region59: #{stn_forward.5} parent=5 // pred_region
      %s2495 = ssub.s32 %s14, 2
      // Predicated region
      $region61: #{stn_forward.5} parent=59 // pred_check
        %p2496 = pneg %p221
      $region62: #{stn_forward.5} parent=59 // pred_check_branch
        %2498 = sbr.rel (%p2496) target = $region64
      $region63: #{stn_forward.5} parent=59 // pred_region
        %p2499 = scmp.lt.s32.totalorder %s20, 1
        %s2500 = scalar_select %p2499, %s20, 1
        %s2501 = smul.addr %s2500, 7
        %s2502 = smul.addr %s2501, 2
        %s2503 = scalar_lea.vmem %s8, %s2502
      $region64: #{stn_forward.5} parent=59 // pred_fallthru
        _
    $region60: #{stn_forward.5} parent=5 // pred_fallthru
      _
  $region6: #{stn_forward.5} parent=0 // loop_footer
    %s18 = sadd.s32 1, %s14
  $region7: #{stn_forward.5} parent=0 // loop_footer_branch
    %13 = sbr.rel target = $region3
  $region8: #{stn_forward.5} parent=0 // loop_exit
    _

</llo_original>
